<compile_context>
chip_gen: v7x
topology: tpu7x:2x2x1
jax: 0.10.0
libtpu: 0.0.40
codegen_flags: <defaults>
</compile_context>

<pallas_src>
from types import SimpleNamespace

import jax
import jax.numpy as jnp
from jax.experimental import pallas as pl
from jax.experimental.pallas import tpu as pltpu

F32 = jnp.float32


# ----------------------------------------------------------------------------
# small helpers
# ----------------------------------------------------------------------------
def _dot(a, b):
    return jnp.dot(a, b, preferred_element_type=F32)


def _dot_bt(a, b):
    # a @ b.T -- contract the last dims of both operands on the MXU instead of
    # materializing an XLU transpose.
    return jax.lax.dot_general(a, b, (((1,), (1,)), ((), ())),
                               preferred_element_type=F32)


def _eye_mask(n):
    row = jax.lax.broadcasted_iota(jnp.int32, (n, n), 0)
    col = jax.lax.broadcasted_iota(jnp.int32, (n, n), 1)
    return row == col


# ----------------------------------------------------------------------------
# In-kernel top-k node selection as selection matrices (no host round-trip)
# ----------------------------------------------------------------------------
def _topk_selection(scores_col, n, kk):
    """Selection matrices for the top-kk nodes by descending score.

    Ties break toward the lower node index (matching torch.topk / lax.top_k).
      P  (kk, n): P[r, i]  = 1 iff node i has rank r (< kk)
      PT (n, kk): PT[i, r] = P[r, i]
      vals (kk, 1): kept scores, descending.
    Pool gather becomes P @ X / P @ A @ PT and the unpool scatter PT @ X --
    tiny MXU matmuls.
    """
    scores_row = scores_col.T                                        # (1, n)
    row = jax.lax.broadcasted_iota(jnp.int32, (n, n), 0)
    col = jax.lax.broadcasted_iota(jnp.int32, (n, n), 1)
    # loses[i, j] == 1 iff node j is ordered strictly before node i.
    loses = ((scores_row > scores_col)
             | ((scores_row == scores_col) & (col < row))).astype(F32)
    rank_col_f = jnp.sum(loses, axis=1, keepdims=True)               # (n, 1)
    rank_row_f = rank_col_f.T                                        # (1, n)
    p = (jax.lax.broadcasted_iota(jnp.int32, (kk, n), 0)
         == rank_row_f.astype(jnp.int32)).astype(F32)
    pt = (jax.lax.broadcasted_iota(jnp.int32, (n, kk), 1)
          == rank_col_f.astype(jnp.int32)).astype(F32)
    vals = jnp.sum(p * scores_row, axis=1, keepdims=True)            # (kk, 1)
    return p, pt, vals


# ----------------------------------------------------------------------------
# Fused kernel: GraphUnet + GSR layer + residual convs + final output packing
# ----------------------------------------------------------------------------
def _make_fused_kernel(lr_dim, hr_dim, unet_dim, ks, num_res):
    l_n = len(ks)
    # Static pooled sizes per GraphUnet level (matches int(k * n) of the ref).
    kks, n = [], lr_dim
    for k in ks:
        n = int(k * n)
        kks.append(n)

    def kernel(adj_ref, ut_ref, start_w_ref, gcn_w_ref, gcn_b_ref,
               pool_w_ref, pool_b_ref, end_w_ref, end_b_ref, gsr_w_ref,
               res_w1_ref, res_w2_ref, out_ref):

        def gcn(a, x, w, b):
            # GraphUnet GCN: Linear(A @ X)   (dropout p = 0 / eval mode)
            return _dot(_dot(a, x), w) + b

        A0 = adj_ref[...]

        # ---------------- GraphUnet ----------------
        # start_gcn on the identity feature matrix: A @ I == A exactly.
        X = _dot(A0, start_w_ref[...]) + gcn_b_ref[0]
        start_gcn_outs = X
        org_X = X

        adj_ms, down_outs, sel_t = [], [], []
        A, n_cur = A0, lr_dim
        for i in range(l_n):
            X = gcn(A, X, gcn_w_ref[i], gcn_b_ref[1 + i])
            adj_ms.append(A)
            down_outs.append(X)
            # Pool scores: sigmoid(Linear_{d->1}(X) / 100) -- kept as a VPU
            # multiply + lane reduce, off the serial MXU chain.
            s = jnp.sum(X * pool_w_ref[i], axis=1, keepdims=True) + pool_b_ref[i]
            scores = jax.nn.sigmoid(s / 100.0)                 # (n_cur, 1)
            kk = kks[i]
            P, PT, vals = _topk_selection(scores, n_cur, kk)
            X = _dot(P, X) * vals                              # gather + scale
            A = _dot(_dot(P, A), PT)                           # A[idx][:, idx]
            sel_t.append(PT)
            n_cur = kk

        X = gcn(A, X, gcn_w_ref[l_n], gcn_b_ref[1 + l_n])

        for i in range(l_n):
            up_idx = l_n - 1 - i
            A = adj_ms[up_idx]
            X = _dot(sel_t[up_idx], X)                         # unpool scatter
            X = gcn(A, X, gcn_w_ref[l_n + 1 + i], gcn_b_ref[2 + l_n + i])
            X = X + down_outs[up_idx]

        # end_gcn on concat([X, org_X], axis=1): end weight split into its two
        # row blocks (mathematically identical, avoids an in-kernel concat).
        net_outs = (_dot(_dot(A, X), end_w_ref[0])
                    + _dot(_dot(A, org_X), end_w_ref[1]) + end_b_ref[...])

        # ---------------- GSR layer ----------------
        # a = W_gsr @ s_d with s_d = [I_lr; I_lr]  ==  W[:, :lr] + W[:, lr:]
        # (requires hr_dim == 2 * lr_dim, asserted in the wrapper).
        g = gsr_w_ref[...]
        a = g[:, :lr_dim] + g[:, lr_dim:2 * lr_dim]            # (hr, lr)
        b = _dot(a, ut_ref[...])                               # a @ U.T (U pre-T'd)
        f_d = jnp.abs(_dot(b, net_outs))                       # (hr, hr)
        eye_hr = _eye_mask(hr_dim)
        adj_out = jnp.where(eye_hr, 1.0, f_d)                  # fill_diagonal_(1)
        xg = _dot_bt(adj_out, adj_out)                         # adj @ adj.T (symmetric)
        z_gsr = jnp.abs(jnp.where(eye_hr, 1.0, xg))

        # ------------- residual graph convolutions -------------
        # TODO(synk): GraphConvolutionWithResidual source not provided; assumed
        # relu(adj @ (x @ W1)) -> relu(adj @ (. @ W2)) with additive residual.
        h = z_gsr
        for i in range(num_res):
            h1 = jnp.maximum(_dot(adj_out, _dot(h, res_w1_ref[i])), 0.0)
            h2 = jnp.maximum(_dot(adj_out, _dot(h1, res_w2_ref[i])), 0.0)
            h = h2 + h

        # ------------- final symmetrization + packed lane-dense store -------
        z = (h + h.T) * 0.5
        abs_z = jnp.abs(jnp.where(eye_hr, 1.0, z))

        pad = hr_dim - lr_dim
        if pad > 0:
            net_p = jnp.concatenate(
                [net_outs, jnp.zeros((pad, hr_dim), F32)], axis=0)
            sg_p = jnp.concatenate(
                [start_gcn_outs, jnp.zeros((pad, unet_dim), F32)], axis=0)
        else:
            net_p, sg_p = net_outs, start_gcn_outs
        # Single (hr, 3*hr + unet) slab -> one output DMA (128 lanes at the
        # example sizes, i.e. an unmasked store).
        out_ref[...] = jnp.concatenate([abs_z, adj_out, net_p, sg_p], axis=1)

    return kernel


# ----------------------------------------------------------------------------
# Forward pass
# ----------------------------------------------------------------------------
def gsrnet_forward(params, lr, hps, ks):
    lr = jnp.asarray(lr, F32)
    squeeze = lr.ndim == 2
    if squeeze:
        lr = lr[None]
    batch, lr_dim, _ = lr.shape
    hr_dim = hps.hr_dim
    assert hr_dim == 2 * lr_dim, "GSRLayer requires hr_dim == 2 * lr_dim"

    # Adjacency normalization in plain XLA (tiny op; fuses into eigh prologue):
    #   mx @ D^-1/2, transpose, @ D^-1/2  ==  mx.T * r[:,None] * r[None,:]
    rowsum = jnp.sum(lr, axis=-1, keepdims=True)
    r = jnp.where(rowsum == 0.0, 0.0, jax.lax.rsqrt(rowsum))
    adj_mx = jnp.swapaxes(lr, -1, -2) * r * jnp.swapaxes(r, -1, -2)

    # TODO(synk): torch.symeig / eigendecomposition has no Pallas equivalent;
    # computed with batched jnp.linalg.eigh in plain JAX (adj_mx is symmetric).
    _, u = jnp.linalg.eigh(adj_mx)
    ut = jnp.swapaxes(u, -1, -2)                      # pre-transposed U

    net = params["net"]
    start_w, start_b = net["start_gcn"]
    unet_dim = start_w.shape[1]
    num_res = hps.num_residual_conv

    # ---- stacked parameter slabs (12 input refs total) ----
    gcn_w = jnp.stack([w for w, _ in net["down_gcns"]]
                      + [net["bottom_gcn"][0]]
                      + [w for w, _ in net["up_gcns"]])            # (2l+1, d, d)
    gcn_b = jnp.stack([start_b]
                      + [b for _, b in net["down_gcns"]]
                      + [net["bottom_gcn"][1]]
                      + [b for _, b in net["up_gcns"]])            # (2l+2, 1, d)
    pool_w = jnp.stack([w.T for w, _ in net["pools"]])             # (l, 1, d)
    pool_b = jnp.stack([b for _, b in net["pools"]])               # (l, 1, 1)
    end_w, end_b = net["end_gcn"]
    end_w2 = jnp.stack([end_w[:unet_dim], end_w[unet_dim:]])       # (2, d, hr)
    res_w1 = jnp.stack([w1 for w1, _ in params["res_gc"]])         # (r, hr, hid)
    res_w2 = jnp.stack([w2 for _, w2 in params["res_gc"]])         # (r, hid, hr)
    gsr_w = params["gsr_weights"]

    width = 3 * hr_dim + unet_dim       # == 128 at the example sizes

    def _batched(arr):
        tail = arr.shape[1:]
        return pl.BlockSpec((None,) + tail,
                            lambda b, _nd=len(tail): (b,) + (0,) * _nd)

    def _rep(arr):
        return pl.BlockSpec(arr.shape, lambda b, _nd=arr.ndim: (0,) * _nd)

    inputs = (adj_mx, ut, start_w, gcn_w, gcn_b, pool_w, pool_b,
              end_w2, end_b, gsr_w, res_w1, res_w2)
    in_specs = [_batched(adj_mx), _batched(ut)] + [_rep(a) for a in inputs[2:]]

    kernel = _make_fused_kernel(lr_dim, hr_dim, unet_dim, tuple(ks), num_res)
    packed = pl.pallas_call(
        kernel,
        grid=(batch,),
        out_shape=jax.ShapeDtypeStruct((batch, hr_dim, width), F32),
        in_specs=in_specs,
        out_specs=pl.BlockSpec((None, hr_dim, width), lambda b: (b, 0, 0)),
        compiler_params=pltpu.CompilerParams(
            dimension_semantics=("parallel",)),
    )(*inputs)

    abs_z = packed[:, :, :hr_dim]
    outputs = packed[:, :, hr_dim:2 * hr_dim]
    net_outs = packed[:, :lr_dim, 2 * hr_dim:3 * hr_dim]
    start_gcn_outs = packed[:, :lr_dim, 3 * hr_dim:3 * hr_dim + unet_dim]
    if squeeze:
        abs_z, net_outs, start_gcn_outs, outputs = (
            abs_z[0], net_outs[0], start_gcn_outs[0], outputs[0])
    return abs_z, net_outs, start_gcn_outs, outputs


# ----------------------------------------------------------------------------
# Deterministic parameter initialization (glorot-uniform, zero biases)
# ----------------------------------------------------------------------------
def _glorot(key, shape):
    limit = (6.0 / (shape[0] + shape[1])) ** 0.5
    return jax.random.uniform(key, shape, F32, -limit, limit)


def init_params(key, hps, ks, unet_dim):
    keys = iter(jax.random.split(key, 64))

    def linear(in_d, out_d):
        return (_glorot(next(keys), (in_d, out_d)),
                jnp.zeros((1, out_d), F32))

    net = {
        "start_gcn": linear(hps.lr_dim, unet_dim),
        "bottom_gcn": linear(unet_dim, unet_dim),
        "end_gcn": linear(2 * unet_dim, hps.hr_dim),
        "down_gcns": [linear(unet_dim, unet_dim) for _ in ks],
        "up_gcns": [linear(unet_dim, unet_dim) for _ in ks],
        "pools": [linear(unet_dim, 1) for _ in ks],
    }
    return {
        "net": net,
        "gsr_weights": _glorot(next(keys), (hps.hr_dim, hps.hr_dim)),
        "res_gc": [
            (_glorot(next(keys), (hps.hr_dim, hps.hidden_dim)),
             _glorot(next(keys), (hps.hidden_dim, hps.hr_dim)))
            for _ in range(hps.num_residual_conv)
        ],
    }


# ----------------------------------------------------------------------------
if __name__ == "__main__":
    hps = SimpleNamespace(
        lr_dim=16,          # low-resolution graph size
        hr_dim=32,          # high-resolution graph size (must be 2 * lr_dim)
        hidden_dim=32,
        num_ks=2,
        k_multiplier=0.5,   # ks = [1.0, 0.5]
        num_residual_conv=2,
        dropout=0.0,
    )
    unet_dim = 32   # GraphUnet internal feature dim (small stand-in for 320)
    batch = 2       # graphs per pallas_call (parallel grid axis)
    ks = [hps.k_multiplier ** i for i in range(hps.num_ks)]

    key = jax.random.PRNGKey(0)
    k_lr, k_params = jax.random.split(key)

    raw = jax.random.uniform(k_lr, (batch, hps.lr_dim, hps.lr_dim), F32)
    lr = (raw + jnp.swapaxes(raw, -1, -2)) / 2.0   # symmetric LR connectomes

    params = init_params(k_params, hps, ks, unet_dim)

    forward = jax.jit(lambda p, x: gsrnet_forward(p, x, hps, ks))
    out = forward(params, lr)
    abs_z, net_outs, start_gcn_outs, outputs = jax.block_until_ready(out)

    assert abs_z.shape == (batch, hps.hr_dim, hps.hr_dim)
    assert net_outs.shape == (batch, hps.lr_dim, hps.hr_dim)
    assert start_gcn_outs.shape == (batch, hps.lr_dim, unet_dim)
    assert outputs.shape == (batch, hps.hr_dim, hps.hr_dim)
    assert bool(jnp.all(jnp.isfinite(abs_z)))
    assert bool(jnp.allclose(abs_z, jnp.swapaxes(abs_z, -1, -2)))
    diag = jnp.diagonal(abs_z, axis1=-2, axis2=-1)
    assert bool(jnp.all(diag == 1.0))

    print("KERNEL_OK")
</pallas_src>

<mosaic_0001>
module attributes {stable_mosaic.version = 11 : i64} {
  func.func @kernel(%arg0: i32, %arg1: memref<1x16x16xf32, #tpu.memory_space<vmem>>, %arg2: memref<1x16x16xf32, #tpu.memory_space<vmem>>, %arg3: memref<16x32xf32, #tpu.memory_space<vmem>>, %arg4: memref<5x32x32xf32, #tpu.memory_space<vmem>>, %arg5: memref<6x1x32xf32, #tpu.memory_space<vmem>>, %arg6: memref<2x1x32xf32, #tpu.memory_space<vmem>>, %arg7: memref<2x1x1xf32, #tpu.memory_space<vmem>>, %arg8: memref<2x32x32xf32, #tpu.memory_space<vmem>>, %arg9: memref<1x32xf32, #tpu.memory_space<vmem>>, %arg10: memref<32x32xf32, #tpu.memory_space<vmem>>, %arg11: memref<2x32x32xf32, #tpu.memory_space<vmem>>, %arg12: memref<2x32x32xf32, #tpu.memory_space<vmem>>, %arg13: memref<1x32x128xf32, #tpu.memory_space<vmem>>) attributes {dimension_semantics = [#tpu.dimension_semantics<parallel>], iteration_bounds = array<i64: 2>, scalar_prefetch = 0 : i64, scratch_operands = 0 : i64, tpu.core_type = #tpu.core_type<tc>, window_params = [{transform_indices = @transform_0, window_bounds = array<i64: 1, 16, 16>}, {transform_indices = @transform_1, window_bounds = array<i64: 1, 16, 16>}, {pipeline_mode = #tpu.pipeline_mode<synchronous>, transform_indices = @transform_2, window_bounds = array<i64: 16, 32>}, {pipeline_mode = #tpu.pipeline_mode<synchronous>, transform_indices = @transform_3, window_bounds = array<i64: 5, 32, 32>}, {pipeline_mode = #tpu.pipeline_mode<synchronous>, transform_indices = @transform_4, window_bounds = array<i64: 6, 1, 32>}, {pipeline_mode = #tpu.pipeline_mode<synchronous>, transform_indices = @transform_5, window_bounds = array<i64: 2, 1, 32>}, {pipeline_mode = #tpu.pipeline_mode<synchronous>, transform_indices = @transform_6, window_bounds = array<i64: 2, 1, 1>}, {pipeline_mode = #tpu.pipeline_mode<synchronous>, transform_indices = @transform_7, window_bounds = array<i64: 2, 32, 32>}, {pipeline_mode = #tpu.pipeline_mode<synchronous>, transform_indices = @transform_8, window_bounds = array<i64: 1, 32>}, {pipeline_mode = #tpu.pipeline_mode<synchronous>, transform_indices = @transform_9, window_bounds = array<i64: 32, 32>}, {pipeline_mode = #tpu.pipeline_mode<synchronous>, transform_indices = @transform_10, window_bounds = array<i64: 2, 32, 32>}, {pipeline_mode = #tpu.pipeline_mode<synchronous>, transform_indices = @transform_11, window_bounds = array<i64: 2, 32, 32>}, {transform_indices = @transform_12, window_bounds = array<i64: 1, 32, 128>}]} {
    %c0 = arith.constant 0 : index
    %c0_0 = arith.constant 0 : index
    %c0_1 = arith.constant 0 : index
    %0 = vector.load %arg1[%c0, %c0_0, %c0_1] : memref<1x16x16xf32, #tpu.memory_space<vmem>>, vector<1x16x16xf32>
    %1 = vector.shape_cast %0 : vector<1x16x16xf32> to vector<16x16xf32>
    %c0_2 = arith.constant 0 : index
    %c0_3 = arith.constant 0 : index
    %2 = vector.load %arg3[%c0_2, %c0_3] : memref<16x32xf32, #tpu.memory_space<vmem>>, vector<16x32xf32>
    %cst = arith.constant dense<0.000000e+00> : vector<16x32xf32>
    %3 = tpu.matmul %1, %2, %cst {dimension_numbers = #tpu.dot_dimension_numbers<[1], [0], [0], [1], [0, 0, 1, 1], [], []>} : vector<16x16xf32>, vector<16x32xf32>, vector<16x32xf32> -> vector<16x32xf32>
    %c0_4 = arith.constant 0 : index
    %c0_5 = arith.constant 0 : index
    %c0_6 = arith.constant 0 : index
    %4 = vector.load %arg5[%c0_4, %c0_5, %c0_6] : memref<6x1x32xf32, #tpu.memory_space<vmem>>, vector<1x1x32xf32>
    %5 = vector.shape_cast %4 : vector<1x1x32xf32> to vector<1x32xf32>
    %6 = vector.broadcast %5 : vector<1x32xf32> to vector<16x32xf32>
    %7 = arith.addf %3, %6 : vector<16x32xf32>
    %c0_7 = arith.constant 0 : index
    %c0_8 = arith.constant 0 : index
    %c0_9 = arith.constant 0 : index
    %8 = vector.load %arg4[%c0_7, %c0_8, %c0_9] : memref<5x32x32xf32, #tpu.memory_space<vmem>>, vector<1x32x32xf32>
    %9 = vector.shape_cast %8 : vector<1x32x32xf32> to vector<32x32xf32>
    %c1 = arith.constant 1 : index
    %c0_10 = arith.constant 0 : index
    %c0_11 = arith.constant 0 : index
    %10 = vector.load %arg5[%c1, %c0_10, %c0_11] : memref<6x1x32xf32, #tpu.memory_space<vmem>>, vector<1x1x32xf32>
    %11 = vector.shape_cast %10 : vector<1x1x32xf32> to vector<1x32xf32>
    %cst_12 = arith.constant dense<0.000000e+00> : vector<16x32xf32>
    %12 = tpu.matmul %1, %7, %cst_12 {dimension_numbers = #tpu.dot_dimension_numbers<[1], [0], [0], [1], [0, 0, 1, 1], [], []>} : vector<16x16xf32>, vector<16x32xf32>, vector<16x32xf32> -> vector<16x32xf32>
    %cst_13 = arith.constant dense<0.000000e+00> : vector<16x32xf32>
    %13 = tpu.matmul %12, %9, %cst_13 {dimension_numbers = #tpu.dot_dimension_numbers<[1], [0], [0], [1], [0, 0, 1, 1], [], []>} : vector<16x32xf32>, vector<32x32xf32>, vector<16x32xf32> -> vector<16x32xf32>
    %14 = vector.broadcast %11 : vector<1x32xf32> to vector<16x32xf32>
    %15 = arith.addf %13, %14 : vector<16x32xf32>
    %c0_14 = arith.constant 0 : index
    %c0_15 = arith.constant 0 : index
    %c0_16 = arith.constant 0 : index
    %16 = vector.load %arg6[%c0_14, %c0_15, %c0_16] : memref<2x1x32xf32, #tpu.memory_space<vmem>>, vector<1x1x32xf32>
    %17 = vector.shape_cast %16 : vector<1x1x32xf32> to vector<1x32xf32>
    %18 = vector.broadcast %17 : vector<1x32xf32> to vector<16x32xf32>
    %19 = arith.mulf %15, %18 : vector<16x32xf32>
    %cst_17 = arith.constant dense<0.000000e+00> : vector<16xf32>
    %20 = vector.multi_reduction <add>, %19, %cst_17 [1] : vector<16x32xf32> to vector<16xf32>
    %21 = vector.shape_cast %20 : vector<16xf32> to vector<16x1xf32>
    %c0_18 = arith.constant 0 : index
    %c0_19 = arith.constant 0 : index
    %c0_20 = arith.constant 0 : index
    %22 = vector.load %arg7[%c0_18, %c0_19, %c0_20] : memref<2x1x1xf32, #tpu.memory_space<vmem>>, vector<1x1x1xf32>
    %23 = vector.shape_cast %22 : vector<1x1x1xf32> to vector<1x1xf32>
    %24 = vector.broadcast %23 : vector<1x1xf32> to vector<16x1xf32>
    %25 = arith.addf %21, %24 : vector<16x1xf32>
    %cst_21 = arith.constant 1.000000e+02 : f32
    %26 = vector.broadcast %cst_21 : f32 to vector<16x1xf32>
    %27 = arith.divf %25, %26 : vector<16x1xf32>
    %28 = arith.negf %27 : vector<16x1xf32>
    %29 = math.exp %28 : vector<16x1xf32>
    %cst_22 = arith.constant 1.000000e+00 : f32
    %30 = vector.broadcast %cst_22 : f32 to vector<16x1xf32>
    %31 = arith.addf %30, %29 : vector<16x1xf32>
    %32 = arith.divf %30, %31 : vector<16x1xf32>
    %33 = tpu.transpose %32, [1, 0] : vector<16x1xf32> -> vector<1x16xf32>
    %34 = tpu.iota {dimensions = array<i32: 0>} : vector<16x16xi32>
    %35 = tpu.iota {dimensions = array<i32: 1>} : vector<16x16xi32>
    %36 = vector.broadcast %33 : vector<1x16xf32> to vector<16x16xf32>
    %37 = vector.broadcast %32 : vector<16x1xf32> to vector<16x16xf32>
    %38 = arith.cmpf ogt, %36, %37 : vector<16x16xf32>
    %39 = vector.broadcast %33 : vector<1x16xf32> to vector<16x16xf32>
    %40 = vector.broadcast %32 : vector<16x1xf32> to vector<16x16xf32>
    %41 = arith.cmpf oeq, %39, %40 : vector<16x16xf32>
    %42 = arith.cmpi slt, %35, %34 : vector<16x16xi32>
    %43 = arith.andi %41, %42 : vector<16x16xi1>
    %44 = arith.ori %38, %43 : vector<16x16xi1>
    %45 = arith.extui %44 : vector<16x16xi1> to vector<16x16xi32>
    %46 = arith.sitofp %45 : vector<16x16xi32> to vector<16x16xf32>
    %cst_23 = arith.constant dense<0.000000e+00> : vector<16xf32>
    %47 = vector.multi_reduction <add>, %46, %cst_23 [1] : vector<16x16xf32> to vector<16xf32>
    %48 = vector.shape_cast %47 : vector<16xf32> to vector<16x1xf32>
    %49 = tpu.transpose %48, [1, 0] : vector<16x1xf32> -> vector<1x16xf32>
    %50 = tpu.iota {dimensions = array<i32: 0>} : vector<16x16xi32>
    %51 = arith.fptosi %49 : vector<1x16xf32> to vector<1x16xi32>
    %52 = vector.broadcast %51 : vector<1x16xi32> to vector<16x16xi32>
    %53 = arith.cmpi eq, %50, %52 : vector<16x16xi32>
    %54 = arith.extui %53 : vector<16x16xi1> to vector<16x16xi32>
    %55 = arith.sitofp %54 : vector<16x16xi32> to vector<16x16xf32>
    %56 = tpu.iota {dimensions = array<i32: 1>} : vector<16x16xi32>
    %57 = arith.fptosi %48 : vector<16x1xf32> to vector<16x1xi32>
    %58 = vector.broadcast %57 : vector<16x1xi32> to vector<16x16xi32>
    %59 = arith.cmpi eq, %56, %58 : vector<16x16xi32>
    %60 = arith.extui %59 : vector<16x16xi1> to vector<16x16xi32>
    %61 = arith.sitofp %60 : vector<16x16xi32> to vector<16x16xf32>
    %62 = vector.broadcast %33 : vector<1x16xf32> to vector<16x16xf32>
    %63 = arith.mulf %55, %62 : vector<16x16xf32>
    %cst_24 = arith.constant dense<0.000000e+00> : vector<16xf32>
    %64 = vector.multi_reduction <add>, %63, %cst_24 [1] : vector<16x16xf32> to vector<16xf32>
    %65 = vector.shape_cast %64 : vector<16xf32> to vector<16x1xf32>
    %cst_25 = arith.constant dense<0.000000e+00> : vector<16x32xf32>
    %66 = tpu.matmul %55, %15, %cst_25 {dimension_numbers = #tpu.dot_dimension_numbers<[1], [0], [0], [1], [0, 0, 1, 1], [], []>} : vector<16x16xf32>, vector<16x32xf32>, vector<16x32xf32> -> vector<16x32xf32>
    %67 = vector.broadcast %65 : vector<16x1xf32> to vector<16x32xf32>
    %68 = arith.mulf %66, %67 : vector<16x32xf32>
    %cst_26 = arith.constant dense<0.000000e+00> : vector<16x16xf32>
    %69 = tpu.matmul %55, %1, %cst_26 {dimension_numbers = #tpu.dot_dimension_numbers<[1], [0], [0], [1], [0, 0, 1, 1], [], []>} : vector<16x16xf32>, vector<16x16xf32>, vector<16x16xf32> -> vector<16x16xf32>
    %cst_27 = arith.constant dense<0.000000e+00> : vector<16x16xf32>
    %70 = tpu.matmul %69, %61, %cst_27 {dimension_numbers = #tpu.dot_dimension_numbers<[1], [0], [0], [1], [0, 0, 1, 1], [], []>} : vector<16x16xf32>, vector<16x16xf32>, vector<16x16xf32> -> vector<16x16xf32>
    %c1_28 = arith.constant 1 : index
    %c0_29 = arith.constant 0 : index
    %c0_30 = arith.constant 0 : index
    %71 = vector.load %arg4[%c1_28, %c0_29, %c0_30] : memref<5x32x32xf32, #tpu.memory_space<vmem>>, vector<1x32x32xf32>
    %72 = vector.shape_cast %71 : vector<1x32x32xf32> to vector<32x32xf32>
    %c2 = arith.constant 2 : index
    %c0_31 = arith.constant 0 : index
    %c0_32 = arith.constant 0 : index
    %73 = vector.load %arg5[%c2, %c0_31, %c0_32] : memref<6x1x32xf32, #tpu.memory_space<vmem>>, vector<1x1x32xf32>
    %74 = vector.shape_cast %73 : vector<1x1x32xf32> to vector<1x32xf32>
    %cst_33 = arith.constant dense<0.000000e+00> : vector<16x32xf32>
    %75 = tpu.matmul %70, %68, %cst_33 {dimension_numbers = #tpu.dot_dimension_numbers<[1], [0], [0], [1], [0, 0, 1, 1], [], []>} : vector<16x16xf32>, vector<16x32xf32>, vector<16x32xf32> -> vector<16x32xf32>
    %cst_34 = arith.constant dense<0.000000e+00> : vector<16x32xf32>
    %76 = tpu.matmul %75, %72, %cst_34 {dimension_numbers = #tpu.dot_dimension_numbers<[1], [0], [0], [1], [0, 0, 1, 1], [], []>} : vector<16x32xf32>, vector<32x32xf32>, vector<16x32xf32> -> vector<16x32xf32>
    %77 = vector.broadcast %74 : vector<1x32xf32> to vector<16x32xf32>
    %78 = arith.addf %76, %77 : vector<16x32xf32>
    %c1_35 = arith.constant 1 : index
    %c0_36 = arith.constant 0 : index
    %c0_37 = arith.constant 0 : index
    %79 = vector.load %arg6[%c1_35, %c0_36, %c0_37] : memref<2x1x32xf32, #tpu.memory_space<vmem>>, vector<1x1x32xf32>
    %80 = vector.shape_cast %79 : vector<1x1x32xf32> to vector<1x32xf32>
    %81 = vector.broadcast %80 : vector<1x32xf32> to vector<16x32xf32>
    %82 = arith.mulf %78, %81 : vector<16x32xf32>
    %cst_38 = arith.constant dense<0.000000e+00> : vector<16xf32>
    %83 = vector.multi_reduction <add>, %82, %cst_38 [1] : vector<16x32xf32> to vector<16xf32>
    %84 = vector.shape_cast %83 : vector<16xf32> to vector<16x1xf32>
    %c1_39 = arith.constant 1 : index
    %c0_40 = arith.constant 0 : index
    %c0_41 = arith.constant 0 : index
    %85 = vector.load %arg7[%c1_39, %c0_40, %c0_41] : memref<2x1x1xf32, #tpu.memory_space<vmem>>, vector<1x1x1xf32>
    %86 = vector.shape_cast %85 : vector<1x1x1xf32> to vector<1x1xf32>
    %87 = vector.broadcast %86 : vector<1x1xf32> to vector<16x1xf32>
    %88 = arith.addf %84, %87 : vector<16x1xf32>
    %cst_42 = arith.constant 1.000000e+02 : f32
    %89 = vector.broadcast %cst_42 : f32 to vector<16x1xf32>
    %90 = arith.divf %88, %89 : vector<16x1xf32>
    %91 = arith.negf %90 : vector<16x1xf32>
    %92 = math.exp %91 : vector<16x1xf32>
    %cst_43 = arith.constant 1.000000e+00 : f32
    %93 = vector.broadcast %cst_43 : f32 to vector<16x1xf32>
    %94 = arith.addf %93, %92 : vector<16x1xf32>
    %95 = arith.divf %93, %94 : vector<16x1xf32>
    %96 = tpu.transpose %95, [1, 0] : vector<16x1xf32> -> vector<1x16xf32>
    %97 = tpu.iota {dimensions = array<i32: 0>} : vector<16x16xi32>
    %98 = tpu.iota {dimensions = array<i32: 1>} : vector<16x16xi32>
    %99 = vector.broadcast %96 : vector<1x16xf32> to vector<16x16xf32>
    %100 = vector.broadcast %95 : vector<16x1xf32> to vector<16x16xf32>
    %101 = arith.cmpf ogt, %99, %100 : vector<16x16xf32>
    %102 = vector.broadcast %96 : vector<1x16xf32> to vector<16x16xf32>
    %103 = vector.broadcast %95 : vector<16x1xf32> to vector<16x16xf32>
    %104 = arith.cmpf oeq, %102, %103 : vector<16x16xf32>
    %105 = arith.cmpi slt, %98, %97 : vector<16x16xi32>
    %106 = arith.andi %104, %105 : vector<16x16xi1>
    %107 = arith.ori %101, %106 : vector<16x16xi1>
    %108 = arith.extui %107 : vector<16x16xi1> to vector<16x16xi32>
    %109 = arith.sitofp %108 : vector<16x16xi32> to vector<16x16xf32>
    %cst_44 = arith.constant dense<0.000000e+00> : vector<16xf32>
    %110 = vector.multi_reduction <add>, %109, %cst_44 [1] : vector<16x16xf32> to vector<16xf32>
    %111 = vector.shape_cast %110 : vector<16xf32> to vector<16x1xf32>
    %112 = tpu.transpose %111, [1, 0] : vector<16x1xf32> -> vector<1x16xf32>
    %113 = tpu.iota {dimensions = array<i32: 0>} : vector<8x16xi32>
    %114 = arith.fptosi %112 : vector<1x16xf32> to vector<1x16xi32>
    %115 = vector.broadcast %114 : vector<1x16xi32> to vector<8x16xi32>
    %116 = arith.cmpi eq, %113, %115 : vector<8x16xi32>
    %117 = arith.extui %116 : vector<8x16xi1> to vector<8x16xi32>
    %118 = arith.sitofp %117 : vector<8x16xi32> to vector<8x16xf32>
    %119 = tpu.iota {dimensions = array<i32: 1>} : vector<16x8xi32>
    %120 = arith.fptosi %111 : vector<16x1xf32> to vector<16x1xi32>
    %121 = vector.broadcast %120 : vector<16x1xi32> to vector<16x8xi32>
    %122 = arith.cmpi eq, %119, %121 : vector<16x8xi32>
    %123 = arith.extui %122 : vector<16x8xi1> to vector<16x8xi32>
    %124 = arith.sitofp %123 : vector<16x8xi32> to vector<16x8xf32>
    %125 = vector.broadcast %96 : vector<1x16xf32> to vector<8x16xf32>
    %126 = arith.mulf %118, %125 : vector<8x16xf32>
    %cst_45 = arith.constant dense<0.000000e+00> : vector<8xf32>
    %127 = vector.multi_reduction <add>, %126, %cst_45 [1] : vector<8x16xf32> to vector<8xf32>
    %128 = vector.shape_cast %127 : vector<8xf32> to vector<8x1xf32>
    %cst_46 = arith.constant dense<0.000000e+00> : vector<8x32xf32>
    %129 = tpu.matmul %118, %78, %cst_46 {dimension_numbers = #tpu.dot_dimension_numbers<[1], [0], [0], [1], [0, 0, 1, 1], [], []>} : vector<8x16xf32>, vector<16x32xf32>, vector<8x32xf32> -> vector<8x32xf32>
    %130 = vector.broadcast %128 : vector<8x1xf32> to vector<8x32xf32>
    %131 = arith.mulf %129, %130 : vector<8x32xf32>
    %cst_47 = arith.constant dense<0.000000e+00> : vector<8x16xf32>
    %132 = tpu.matmul %118, %70, %cst_47 {dimension_numbers = #tpu.dot_dimension_numbers<[1], [0], [0], [1], [0, 0, 1, 1], [], []>} : vector<8x16xf32>, vector<16x16xf32>, vector<8x16xf32> -> vector<8x16xf32>
    %cst_48 = arith.constant dense<0.000000e+00> : vector<8x8xf32>
    %133 = tpu.matmul %132, %124, %cst_48 {dimension_numbers = #tpu.dot_dimension_numbers<[1], [0], [0], [1], [0, 0, 1, 1], [], []>} : vector<8x16xf32>, vector<16x8xf32>, vector<8x8xf32> -> vector<8x8xf32>
    %c2_49 = arith.constant 2 : index
    %c0_50 = arith.constant 0 : index
    %c0_51 = arith.constant 0 : index
    %134 = vector.load %arg4[%c2_49, %c0_50, %c0_51] : memref<5x32x32xf32, #tpu.memory_space<vmem>>, vector<1x32x32xf32>
    %135 = vector.shape_cast %134 : vector<1x32x32xf32> to vector<32x32xf32>
    %c3 = arith.constant 3 : index
    %c0_52 = arith.constant 0 : index
    %c0_53 = arith.constant 0 : index
    %136 = vector.load %arg5[%c3, %c0_52, %c0_53] : memref<6x1x32xf32, #tpu.memory_space<vmem>>, vector<1x1x32xf32>
    %137 = vector.shape_cast %136 : vector<1x1x32xf32> to vector<1x32xf32>
    %cst_54 = arith.constant dense<0.000000e+00> : vector<8x32xf32>
    %138 = tpu.matmul %133, %131, %cst_54 {dimension_numbers = #tpu.dot_dimension_numbers<[1], [0], [0], [1], [0, 0, 1, 1], [], []>} : vector<8x8xf32>, vector<8x32xf32>, vector<8x32xf32> -> vector<8x32xf32>
    %cst_55 = arith.constant dense<0.000000e+00> : vector<8x32xf32>
    %139 = tpu.matmul %138, %135, %cst_55 {dimension_numbers = #tpu.dot_dimension_numbers<[1], [0], [0], [1], [0, 0, 1, 1], [], []>} : vector<8x32xf32>, vector<32x32xf32>, vector<8x32xf32> -> vector<8x32xf32>
    %140 = vector.broadcast %137 : vector<1x32xf32> to vector<8x32xf32>
    %141 = arith.addf %139, %140 : vector<8x32xf32>
    %cst_56 = arith.constant dense<0.000000e+00> : vector<16x32xf32>
    %142 = tpu.matmul %124, %141, %cst_56 {dimension_numbers = #tpu.dot_dimension_numbers<[1], [0], [0], [1], [0, 0, 1, 1], [], []>} : vector<16x8xf32>, vector<8x32xf32>, vector<16x32xf32> -> vector<16x32xf32>
    %c3_57 = arith.constant 3 : index
    %c0_58 = arith.constant 0 : index
    %c0_59 = arith.constant 0 : index
    %143 = vector.load %arg4[%c3_57, %c0_58, %c0_59] : memref<5x32x32xf32, #tpu.memory_space<vmem>>, vector<1x32x32xf32>
    %144 = vector.shape_cast %143 : vector<1x32x32xf32> to vector<32x32xf32>
    %c4 = arith.constant 4 : index
    %c0_60 = arith.constant 0 : index
    %c0_61 = arith.constant 0 : index
    %145 = vector.load %arg5[%c4, %c0_60, %c0_61] : memref<6x1x32xf32, #tpu.memory_space<vmem>>, vector<1x1x32xf32>
    %146 = vector.shape_cast %145 : vector<1x1x32xf32> to vector<1x32xf32>
    %cst_62 = arith.constant dense<0.000000e+00> : vector<16x32xf32>
    %147 = tpu.matmul %70, %142, %cst_62 {dimension_numbers = #tpu.dot_dimension_numbers<[1], [0], [0], [1], [0, 0, 1, 1], [], []>} : vector<16x16xf32>, vector<16x32xf32>, vector<16x32xf32> -> vector<16x32xf32>
    %cst_63 = arith.constant dense<0.000000e+00> : vector<16x32xf32>
    %148 = tpu.matmul %147, %144, %cst_63 {dimension_numbers = #tpu.dot_dimension_numbers<[1], [0], [0], [1], [0, 0, 1, 1], [], []>} : vector<16x32xf32>, vector<32x32xf32>, vector<16x32xf32> -> vector<16x32xf32>
    %149 = vector.broadcast %146 : vector<1x32xf32> to vector<16x32xf32>
    %150 = arith.addf %148, %149 : vector<16x32xf32>
    %151 = arith.addf %150, %78 : vector<16x32xf32>
    %cst_64 = arith.constant dense<0.000000e+00> : vector<16x32xf32>
    %152 = tpu.matmul %61, %151, %cst_64 {dimension_numbers = #tpu.dot_dimension_numbers<[1], [0], [0], [1], [0, 0, 1, 1], [], []>} : vector<16x16xf32>, vector<16x32xf32>, vector<16x32xf32> -> vector<16x32xf32>
    %c4_65 = arith.constant 4 : index
    %c0_66 = arith.constant 0 : index
    %c0_67 = arith.constant 0 : index
    %153 = vector.load %arg4[%c4_65, %c0_66, %c0_67] : memref<5x32x32xf32, #tpu.memory_space<vmem>>, vector<1x32x32xf32>
    %154 = vector.shape_cast %153 : vector<1x32x32xf32> to vector<32x32xf32>
    %c5 = arith.constant 5 : index
    %c0_68 = arith.constant 0 : index
    %c0_69 = arith.constant 0 : index
    %155 = vector.load %arg5[%c5, %c0_68, %c0_69] : memref<6x1x32xf32, #tpu.memory_space<vmem>>, vector<1x1x32xf32>
    %156 = vector.shape_cast %155 : vector<1x1x32xf32> to vector<1x32xf32>
    %cst_70 = arith.constant dense<0.000000e+00> : vector<16x32xf32>
    %157 = tpu.matmul %1, %152, %cst_70 {dimension_numbers = #tpu.dot_dimension_numbers<[1], [0], [0], [1], [0, 0, 1, 1], [], []>} : vector<16x16xf32>, vector<16x32xf32>, vector<16x32xf32> -> vector<16x32xf32>
    %cst_71 = arith.constant dense<0.000000e+00> : vector<16x32xf32>
    %158 = tpu.matmul %157, %154, %cst_71 {dimension_numbers = #tpu.dot_dimension_numbers<[1], [0], [0], [1], [0, 0, 1, 1], [], []>} : vector<16x32xf32>, vector<32x32xf32>, vector<16x32xf32> -> vector<16x32xf32>
    %159 = vector.broadcast %156 : vector<1x32xf32> to vector<16x32xf32>
    %160 = arith.addf %158, %159 : vector<16x32xf32>
    %161 = arith.addf %160, %15 : vector<16x32xf32>
    %cst_72 = arith.constant dense<0.000000e+00> : vector<16x32xf32>
    %162 = tpu.matmul %1, %161, %cst_72 {dimension_numbers = #tpu.dot_dimension_numbers<[1], [0], [0], [1], [0, 0, 1, 1], [], []>} : vector<16x16xf32>, vector<16x32xf32>, vector<16x32xf32> -> vector<16x32xf32>
    %c0_73 = arith.constant 0 : index
    %c0_74 = arith.constant 0 : index
    %c0_75 = arith.constant 0 : index
    %163 = vector.load %arg8[%c0_73, %c0_74, %c0_75] : memref<2x32x32xf32, #tpu.memory_space<vmem>>, vector<1x32x32xf32>
    %164 = vector.shape_cast %163 : vector<1x32x32xf32> to vector<32x32xf32>
    %cst_76 = arith.constant dense<0.000000e+00> : vector<16x32xf32>
    %165 = tpu.matmul %162, %164, %cst_76 {dimension_numbers = #tpu.dot_dimension_numbers<[1], [0], [0], [1], [0, 0, 1, 1], [], []>} : vector<16x32xf32>, vector<32x32xf32>, vector<16x32xf32> -> vector<16x32xf32>
    %cst_77 = arith.constant dense<0.000000e+00> : vector<16x32xf32>
    %166 = tpu.matmul %1, %7, %cst_77 {dimension_numbers = #tpu.dot_dimension_numbers<[1], [0], [0], [1], [0, 0, 1, 1], [], []>} : vector<16x16xf32>, vector<16x32xf32>, vector<16x32xf32> -> vector<16x32xf32>
    %c1_78 = arith.constant 1 : index
    %c0_79 = arith.constant 0 : index
    %c0_80 = arith.constant 0 : index
    %167 = vector.load %arg8[%c1_78, %c0_79, %c0_80] : memref<2x32x32xf32, #tpu.memory_space<vmem>>, vector<1x32x32xf32>
    %168 = vector.shape_cast %167 : vector<1x32x32xf32> to vector<32x32xf32>
    %cst_81 = arith.constant dense<0.000000e+00> : vector<16x32xf32>
    %169 = tpu.matmul %166, %168, %cst_81 {dimension_numbers = #tpu.dot_dimension_numbers<[1], [0], [0], [1], [0, 0, 1, 1], [], []>} : vector<16x32xf32>, vector<32x32xf32>, vector<16x32xf32> -> vector<16x32xf32>
    %170 = arith.addf %165, %169 : vector<16x32xf32>
    %c0_82 = arith.constant 0 : index
    %c0_83 = arith.constant 0 : index
    %171 = vector.load %arg9[%c0_82, %c0_83] : memref<1x32xf32, #tpu.memory_space<vmem>>, vector<1x32xf32>
    %172 = vector.broadcast %171 : vector<1x32xf32> to vector<16x32xf32>
    %173 = arith.addf %170, %172 : vector<16x32xf32>
    %c0_84 = arith.constant 0 : index
    %c0_85 = arith.constant 0 : index
    %174 = vector.load %arg10[%c0_84, %c0_85] : memref<32x32xf32, #tpu.memory_space<vmem>>, vector<32x32xf32>
    %175 = vector.extract_strided_slice %174 {offsets = [0, 0], sizes = [32, 16], strides = [1, 1]} : vector<32x32xf32> to vector<32x16xf32>
    %176 = vector.extract_strided_slice %174 {offsets = [0, 16], sizes = [32, 16], strides = [1, 1]} : vector<32x32xf32> to vector<32x16xf32>
    %177 = arith.addf %175, %176 : vector<32x16xf32>
    %c0_86 = arith.constant 0 : index
    %c0_87 = arith.constant 0 : index
    %c0_88 = arith.constant 0 : index
    %178 = vector.load %arg2[%c0_86, %c0_87, %c0_88] : memref<1x16x16xf32, #tpu.memory_space<vmem>>, vector<1x16x16xf32>
    %179 = vector.shape_cast %178 : vector<1x16x16xf32> to vector<16x16xf32>
    %cst_89 = arith.constant dense<0.000000e+00> : vector<32x16xf32>
    %180 = tpu.matmul %177, %179, %cst_89 {dimension_numbers = #tpu.dot_dimension_numbers<[1], [0], [0], [1], [0, 0, 1, 1], [], []>} : vector<32x16xf32>, vector<16x16xf32>, vector<32x16xf32> -> vector<32x16xf32>
    %cst_90 = arith.constant dense<0.000000e+00> : vector<32x32xf32>
    %181 = tpu.matmul %180, %173, %cst_90 {dimension_numbers = #tpu.dot_dimension_numbers<[1], [0], [0], [1], [0, 0, 1, 1], [], []>} : vector<32x16xf32>, vector<16x32xf32>, vector<32x32xf32> -> vector<32x32xf32>
    %182 = math.absf %181 : vector<32x32xf32>
    %183 = tpu.iota {dimensions = array<i32: 0>} : vector<32x32xi32>
    %184 = tpu.iota {dimensions = array<i32: 1>} : vector<32x32xi32>
    %185 = arith.cmpi eq, %183, %184 : vector<32x32xi32>
    %cst_91 = arith.constant 1.000000e+00 : f32
    %186 = vector.broadcast %cst_91 : f32 to vector<32x32xf32>
    %187 = arith.select %185, %186, %182 : vector<32x32xi1>, vector<32x32xf32>
    %cst_92 = arith.constant dense<0.000000e+00> : vector<32x32xf32>
    %188 = tpu.matmul %187, %187, %cst_92 {dimension_numbers = #tpu.dot_dimension_numbers<[1], [1], [0], [0], [0, 0, 1, 0], [], []>} : vector<32x32xf32>, vector<32x32xf32>, vector<32x32xf32> -> vector<32x32xf32>
    %cst_93 = arith.constant 1.000000e+00 : f32
    %189 = vector.broadcast %cst_93 : f32 to vector<32x32xf32>
    %190 = arith.select %185, %189, %188 : vector<32x32xi1>, vector<32x32xf32>
    %191 = math.absf %190 : vector<32x32xf32>
    %c0_94 = arith.constant 0 : index
    %c0_95 = arith.constant 0 : index
    %c0_96 = arith.constant 0 : index
    %192 = vector.load %arg11[%c0_94, %c0_95, %c0_96] : memref<2x32x32xf32, #tpu.memory_space<vmem>>, vector<1x32x32xf32>
    %193 = vector.shape_cast %192 : vector<1x32x32xf32> to vector<32x32xf32>
    %cst_97 = arith.constant dense<0.000000e+00> : vector<32x32xf32>
    %194 = tpu.matmul %191, %193, %cst_97 {dimension_numbers = #tpu.dot_dimension_numbers<[1], [0], [0], [1], [0, 0, 1, 1], [], []>} : vector<32x32xf32>, vector<32x32xf32>, vector<32x32xf32> -> vector<32x32xf32>
    %cst_98 = arith.constant dense<0.000000e+00> : vector<32x32xf32>
    %195 = tpu.matmul %187, %194, %cst_98 {dimension_numbers = #tpu.dot_dimension_numbers<[1], [0], [0], [1], [0, 0, 1, 1], [], []>} : vector<32x32xf32>, vector<32x32xf32>, vector<32x32xf32> -> vector<32x32xf32>
    %cst_99 = arith.constant 0.000000e+00 : f32
    %196 = vector.broadcast %cst_99 : f32 to vector<32x32xf32>
    %197 = arith.maximumf %195, %196 : vector<32x32xf32>
    %c0_100 = arith.constant 0 : index
    %c0_101 = arith.constant 0 : index
    %c0_102 = arith.constant 0 : index
    %198 = vector.load %arg12[%c0_100, %c0_101, %c0_102] : memref<2x32x32xf32, #tpu.memory_space<vmem>>, vector<1x32x32xf32>
    %199 = vector.shape_cast %198 : vector<1x32x32xf32> to vector<32x32xf32>
    %cst_103 = arith.constant dense<0.000000e+00> : vector<32x32xf32>
    %200 = tpu.matmul %197, %199, %cst_103 {dimension_numbers = #tpu.dot_dimension_numbers<[1], [0], [0], [1], [0, 0, 1, 1], [], []>} : vector<32x32xf32>, vector<32x32xf32>, vector<32x32xf32> -> vector<32x32xf32>
    %cst_104 = arith.constant dense<0.000000e+00> : vector<32x32xf32>
    %201 = tpu.matmul %187, %200, %cst_104 {dimension_numbers = #tpu.dot_dimension_numbers<[1], [0], [0], [1], [0, 0, 1, 1], [], []>} : vector<32x32xf32>, vector<32x32xf32>, vector<32x32xf32> -> vector<32x32xf32>
    %cst_105 = arith.constant 0.000000e+00 : f32
    %202 = vector.broadcast %cst_105 : f32 to vector<32x32xf32>
    %203 = arith.maximumf %201, %202 : vector<32x32xf32>
    %204 = arith.addf %203, %191 : vector<32x32xf32>
    %c1_106 = arith.constant 1 : index
    %c0_107 = arith.constant 0 : index
    %c0_108 = arith.constant 0 : index
    %205 = vector.load %arg11[%c1_106, %c0_107, %c0_108] : memref<2x32x32xf32, #tpu.memory_space<vmem>>, vector<1x32x32xf32>
    %206 = vector.shape_cast %205 : vector<1x32x32xf32> to vector<32x32xf32>
    %cst_109 = arith.constant dense<0.000000e+00> : vector<32x32xf32>
    %207 = tpu.matmul %204, %206, %cst_109 {dimension_numbers = #tpu.dot_dimension_numbers<[1], [0], [0], [1], [0, 0, 1, 1], [], []>} : vector<32x32xf32>, vector<32x32xf32>, vector<32x32xf32> -> vector<32x32xf32>
    %cst_110 = arith.constant dense<0.000000e+00> : vector<32x32xf32>
    %208 = tpu.matmul %187, %207, %cst_110 {dimension_numbers = #tpu.dot_dimension_numbers<[1], [0], [0], [1], [0, 0, 1, 1], [], []>} : vector<32x32xf32>, vector<32x32xf32>, vector<32x32xf32> -> vector<32x32xf32>
    %cst_111 = arith.constant 0.000000e+00 : f32
    %209 = vector.broadcast %cst_111 : f32 to vector<32x32xf32>
    %210 = arith.maximumf %208, %209 : vector<32x32xf32>
    %c1_112 = arith.constant 1 : index
    %c0_113 = arith.constant 0 : index
    %c0_114 = arith.constant 0 : index
    %211 = vector.load %arg12[%c1_112, %c0_113, %c0_114] : memref<2x32x32xf32, #tpu.memory_space<vmem>>, vector<1x32x32xf32>
    %212 = vector.shape_cast %211 : vector<1x32x32xf32> to vector<32x32xf32>
    %cst_115 = arith.constant dense<0.000000e+00> : vector<32x32xf32>
    %213 = tpu.matmul %210, %212, %cst_115 {dimension_numbers = #tpu.dot_dimension_numbers<[1], [0], [0], [1], [0, 0, 1, 1], [], []>} : vector<32x32xf32>, vector<32x32xf32>, vector<32x32xf32> -> vector<32x32xf32>
    %cst_116 = arith.constant dense<0.000000e+00> : vector<32x32xf32>
    %214 = tpu.matmul %187, %213, %cst_116 {dimension_numbers = #tpu.dot_dimension_numbers<[1], [0], [0], [1], [0, 0, 1, 1], [], []>} : vector<32x32xf32>, vector<32x32xf32>, vector<32x32xf32> -> vector<32x32xf32>
    %cst_117 = arith.constant 0.000000e+00 : f32
    %215 = vector.broadcast %cst_117 : f32 to vector<32x32xf32>
    %216 = arith.maximumf %214, %215 : vector<32x32xf32>
    %217 = arith.addf %216, %204 : vector<32x32xf32>
    %218 = tpu.transpose %217, [1, 0] : vector<32x32xf32> -> vector<32x32xf32>
    %219 = arith.addf %217, %218 : vector<32x32xf32>
    %cst_118 = arith.constant 5.000000e-01 : f32
    %220 = vector.broadcast %cst_118 : f32 to vector<32x32xf32>
    %221 = arith.mulf %219, %220 : vector<32x32xf32>
    %cst_119 = arith.constant 1.000000e+00 : f32
    %222 = vector.broadcast %cst_119 : f32 to vector<32x32xf32>
    %223 = arith.select %185, %222, %221 : vector<32x32xi1>, vector<32x32xf32>
    %224 = math.absf %223 : vector<32x32xf32>
    %cst_120 = arith.constant 0.000000e+00 : f32
    %225 = vector.broadcast %cst_120 : f32 to vector<16x32xf32>
    %226 = tpu.concatenate %173, %225 in 0 : vector<16x32xf32>, vector<16x32xf32> -> vector<32x32xf32>
    %cst_121 = arith.constant 0.000000e+00 : f32
    %227 = vector.broadcast %cst_121 : f32 to vector<16x32xf32>
    %228 = tpu.concatenate %7, %227 in 0 : vector<16x32xf32>, vector<16x32xf32> -> vector<32x32xf32>
    %229 = tpu.concatenate %224, %187, %226, %228 in 1 : vector<32x32xf32>, vector<32x32xf32>, vector<32x32xf32>, vector<32x32xf32> -> vector<32x128xf32>
    %c0_122 = arith.constant 0 : index
    %c0_123 = arith.constant 0 : index
    %c0_124 = arith.constant 0 : index
    %230 = vector.load %arg13[%c0_122, %c0_123, %c0_124] : memref<1x32x128xf32, #tpu.memory_space<vmem>>, vector<1x32x128xf32>
    %231 = vector.shape_cast %230 : vector<1x32x128xf32> to vector<32x128xf32>
    %232 = vector.shape_cast %229 : vector<32x128xf32> to vector<1x32x128xf32>
    tpu.vector_store %arg13[%c0_122, %c0_123, %c0_124], %232 {strides = array<i32>} : memref<1x32x128xf32, #tpu.memory_space<vmem>>, vector<1x32x128xf32>,
    return
  }
  func.func @transform_0(%arg0: i32) -> (i32, i32, i32) {
    %c0_i32 = arith.constant 0 : i32
    %c0_i32_0 = arith.constant 0 : i32
    %c0_i32_1 = arith.constant 0 : i32
    return %arg0, %c0_i32, %c0_i32_0 : i32, i32, i32
  }
  func.func @transform_1(%arg0: i32) -> (i32, i32, i32) {
    %c0_i32 = arith.constant 0 : i32
    %c0_i32_0 = arith.constant 0 : i32
    %c0_i32_1 = arith.constant 0 : i32
    return %arg0, %c0_i32, %c0_i32_0 : i32, i32, i32
  }
  func.func @transform_2(%arg0: i32) -> (i32, i32) {
    %c0_i32 = arith.constant 0 : i32
    %c0_i32_0 = arith.constant 0 : i32
    %c0_i32_1 = arith.constant 0 : i32
    return %c0_i32, %c0_i32_0 : i32, i32
  }
  func.func @transform_3(%arg0: i32) -> (i32, i32, i32) {
    %c0_i32 = arith.constant 0 : i32
    %c0_i32_0 = arith.constant 0 : i32
    %c0_i32_1 = arith.constant 0 : i32
    %c0_i32_2 = arith.constant 0 : i32
    return %c0_i32, %c0_i32_0, %c0_i32_1 : i32, i32, i32
  }
  func.func @transform_4(%arg0: i32) -> (i32, i32, i32) {
    %c0_i32 = arith.constant 0 : i32
    %c0_i32_0 = arith.constant 0 : i32
    %c0_i32_1 = arith.constant 0 : i32
    %c0_i32_2 = arith.constant 0 : i32
    return %c0_i32, %c0_i32_0, %c0_i32_1 : i32, i32, i32
  }
  func.func @transform_5(%arg0: i32) -> (i32, i32, i32) {
    %c0_i32 = arith.constant 0 : i32
    %c0_i32_0 = arith.constant 0 : i32
    %c0_i32_1 = arith.constant 0 : i32
    %c0_i32_2 = arith.constant 0 : i32
    return %c0_i32, %c0_i32_0, %c0_i32_1 : i32, i32, i32
  }
  func.func @transform_6(%arg0: i32) -> (i32, i32, i32) {
    %c0_i32 = arith.constant 0 : i32
    %c0_i32_0 = arith.constant 0 : i32
    %c0_i32_1 = arith.constant 0 : i32
    %c0_i32_2 = arith.constant 0 : i32
    return %c0_i32, %c0_i32_0, %c0_i32_1 : i32, i32, i32
  }
  func.func @transform_7(%arg0: i32) -> (i32, i32, i32) {
    %c0_i32 = arith.constant 0 : i32
    %c0_i32_0 = arith.constant 0 : i32
    %c0_i32_1 = arith.constant 0 : i32
    %c0_i32_2 = arith.constant 0 : i32
    return %c0_i32, %c0_i32_0, %c0_i32_1 : i32, i32, i32
  }
  func.func @transform_8(%arg0: i32) -> (i32, i32) {
    %c0_i32 = arith.constant 0 : i32
    %c0_i32_0 = arith.constant 0 : i32
    %c0_i32_1 = arith.constant 0 : i32
    return %c0_i32, %c0_i32_0 : i32, i32
  }
  func.func @transform_9(%arg0: i32) -> (i32, i32) {
    %c0_i32 = arith.constant 0 : i32
    %c0_i32_0 = arith.constant 0 : i32
    %c0_i32_1 = arith.constant 0 : i32
    return %c0_i32, %c0_i32_0 : i32, i32
  }
  func.func @transform_10(%arg0: i32) -> (i32, i32, i32) {
    %c0_i32 = arith.constant 0 : i32
    %c0_i32_0 = arith.constant 0 : i32
    %c0_i32_1 = arith.constant 0 : i32
    %c0_i32_2 = arith.constant 0 : i32
    return %c0_i32, %c0_i32_0, %c0_i32_1 : i32, i32, i32
  }
  func.func @transform_11(%arg0: i32) -> (i32, i32, i32) {
    %c0_i32 = arith.constant 0 : i32
    %c0_i32_0 = arith.constant 0 : i32
    %c0_i32_1 = arith.constant 0 : i32
    %c0_i32_2 = arith.constant 0 : i32
    return %c0_i32, %c0_i32_0, %c0_i32_1 : i32, i32, i32
  }
  func.func @transform_12(%arg0: i32) -> (i32, i32, i32) {
    %c0_i32 = arith.constant 0 : i32
    %c0_i32_0 = arith.constant 0 : i32
    %c0_i32_1 = arith.constant 0 : i32
    return %arg0, %c0_i32, %c0_i32_0 : i32, i32, i32
  }
}

</mosaic_0001>

<llo_original>
// kernel: custom-call.2
$region0: #{custom-call.2}
  %s0 = inlined_call_operand.vmem [shape: f32[2,8,8], index: 0, kind: input, shape index: {}]
  %s1 = inlined_call_operand.vmem [shape: f32[2,8,8], index: 1, kind: input, shape index: {}]
  %s2 = inlined_call_operand.vmem [shape: f32[2,8,8], index: 2, kind: input, shape index: {}]
  %s3 = inlined_call_operand.vmem [shape: f32[2,8,8], index: 3, kind: input, shape index: {}]
  %s4 = inlined_call_operand.vmem [shape: f32[2,8], index: 4, kind: output, shape index: {0}]
  %s5 = inlined_call_operand.vmem [shape: f32[2,8], index: 5, kind: output, shape index: {1}]
  %s6 = inlined_call_operand.vmem [shape: f32[2,8,8], index: 6, kind: output, shape index: {2}]
  %s7 = inlined_call_operand.vmem [shape: f32[2,8,8], index: 7, kind: output, shape index: {3}]
  %s8 = inlined_call_operand.vmem [shape: f32[2,8,8], index: 8, kind: output, shape index: {4}]
  %s9 = inlined_call_operand.vmem [shape: f32[2,8,8], index: 9, kind: output, shape index: {5}]
  %10 = xla_tuple %s4, %s5, %s6, %s7, %s8, %s9
  $region1: #{custom-call.2} parent=0
    #allocation0 [shape = 'u8[8192]{0}', space=vmem, size = 0x2000, scoped, tag = 'operand span for operand 0']
    #allocation1 [shape = 'u8[8192]{0}', space=vmem, size = 0x2000, scoped, tag = 'operand span for operand 1']
    #allocation2 [shape = 'u8[8192]{0}', space=vmem, size = 0x2000, scoped, tag = 'operand span for operand 2']
    #allocation3 [shape = 'u8[8192]{0}', space=vmem, size = 0x2000, scoped, tag = 'operand span for operand 3']
    #allocation4 [shape = 'u8[4096]{0}', space=vmem, size = 0x1000, scoped, tag = 'operand span for operand 4']
    #allocation5 [shape = 'u8[2048]{0}', space=vmem, size = 0x800, scoped, tag = 'packed  for operand 4']
    #allocation6 [shape = 'u8[4096]{0}', space=vmem, size = 0x1000, scoped, tag = 'operand span for operand 5']
    #allocation7 [shape = 'u8[2048]{0}', space=vmem, size = 0x800, scoped, tag = 'packed  for operand 5']
    #allocation8 [shape = 'u8[8192]{0}', space=vmem, size = 0x2000, scoped, tag = 'operand span for operand 6']
    #allocation9 [shape = 'u8[8192]{0}', space=vmem, size = 0x2000, scoped, tag = 'operand span for operand 7']
    #allocation10 [shape = 'u8[8192]{0}', space=vmem, size = 0x2000, scoped, tag = 'operand span for operand 8']
    #allocation11 [shape = 'u8[8192]{0}', space=vmem, size = 0x2000, scoped, tag = 'operand span for operand 9']
    loop: start=0, step=1, limit=4
    $region2: #{custom-call.2} parent=1 // loop_pre_header
      _
    $region3: #{custom-call.2} parent=1 // loop_header
      %s12 = sphi 0, %s16
      %p13 = scmp.ge.s32.totalorder %s12, 4
      %s24 = sphi 0, %s26
      %s27 = sphi 0, %s24
      %s28 = sphi 0, %s27
      %s44 = sphi 0, %s28
      %s52 = sphi 0, %s54
      %s55 = sphi 0, %s52
      %s56 = sphi 0, %s55
      %s72 = sphi 0, %s56
    $region4: #{custom-call.2} parent=1 // loop_header_branch
      %15 = sbr.rel (%p13) target = $region8
    $region5: #{custom-call.2} parent=1 // loop_body
      %s17 = ssub.s32 %s12, 1
      %s18 = ssub.s32 %s12, 2
      %s19 = sadd.s32 %s12, 1
      %s20 = sshrl.u32 %s12, 3
      %s21 = sshrl.u32 %s19, 3
      %s22 = ssub.s32 %s20, %s21
      %p23 = scmp.eq.s32.totalorder %s22, 0
      %s25 = sadd.s32 %s24, 1
      %s26 = scalar_select %p23, %s24, %s25
      %p29 = pneg %p23
      %p30 = scmp.eq.s32.totalorder %s12, 1
      %p31 = por %p29, %p30
      %p32 = scmp.ne.s32.totalorder %s24, %s27
      %p33 = scmp.eq.s32.totalorder %s12, 0
      %p34 = por %p32, %p33
      %p35 = scmp.ne.s32.totalorder %s24, %s27
      %p36 = scmp.eq.s32.totalorder %s17, 1
      %p37 = por %p35, %p36
      %p38 = scmp.ne.s32.totalorder %s27, %s28
      %p39 = scmp.eq.s32.totalorder %s17, 0
      %p40 = por %p38, %p39
      %p41 = scmp.ne.s32.totalorder %s27, %s28
      %p42 = scmp.eq.s32.totalorder %s18, 1
      %p43 = por %p41, %p42
      %p45 = scmp.ne.s32.totalorder %s28, %s44
      %p46 = scmp.eq.s32.totalorder %s18, 0
      %p47 = por %p45, %p46
      %s48 = sshrl.u32 %s12, 3
      %s49 = sshrl.u32 %s19, 3
      %s50 = ssub.s32 %s48, %s49
      %p51 = scmp.eq.s32.totalorder %s50, 0
      %s53 = sadd.s32 %s52, 1
      %s54 = scalar_select %p51, %s52, %s53
      %p57 = pneg %p51
      %p58 = scmp.eq.s32.totalorder %s12, 1
      %p59 = por %p57, %p58
      %p60 = scmp.ne.s32.totalorder %s52, %s55
      %p61 = scmp.eq.s32.totalorder %s12, 0
      %p62 = por %p60, %p61
      %p63 = scmp.ne.s32.totalorder %s52, %s55
      %p64 = scmp.eq.s32.totalorder %s17, 1
      %p65 = por %p63, %p64
      %p66 = scmp.ne.s32.totalorder %s55, %s56
      %p67 = scmp.eq.s32.totalorder %s17, 0
      %p68 = por %p66, %p67
      %p69 = scmp.ne.s32.totalorder %s55, %s56
      %p70 = scmp.eq.s32.totalorder %s18, 1
      %p71 = por %p69, %p70
      %p73 = scmp.ne.s32.totalorder %s56, %s72
      %p74 = scmp.eq.s32.totalorder %s18, 0
      %p75 = por %p73, %p74
      %p76 = scmp.le.s32.totalorder 1, %s12
      %p77 = scmp.lt.s32.totalorder %s12, 3
      %p78 = pnand %p76, %p77
      %p79 = pneg %p78
      // Predicated region
      $region9: #{custom-call.2} parent=5 // pred_check
        _
      $region10: #{custom-call.2} parent=5 // pred_check_branch
        %81 = sbr.rel (%p78) target = $region12
      $region11: #{custom-call.2} parent=5 // pred_region
        %s82 = ssub.s32 %s12, 1
      $region12: #{custom-call.2} parent=5 // pred_fallthru
        _
      %p83 = scmp.lt.s32.totalorder %s12, 2
      // Predicated region
      $region13: #{custom-call.2} parent=5 // pred_check
        %p84 = pneg %p83
      $region14: #{custom-call.2} parent=5 // pred_check_branch
        %86 = sbr.rel (%p84) target = $region16
      $region15: #{custom-call.2} parent=5 // pred_region
        %s87 = sand.u32 %s12, 1
        %s88 = sand.u32 %s12, 1
        %s89 = smul.addr %s88, 8
        %s90 = scalar_lea.vmem [#allocation0], %s89
        %s91 = smul.addr %s12, 8
        %s92 = scalar_lea.vmem %s0, %s91
        // Predicated region
        $region17: #{custom-call.2} parent=15 // pred_check
          _
        $region18: #{custom-call.2} parent=15 // pred_check_branch
          %94 = sbr.rel (0) target = $region20
        $region19: #{custom-call.2} parent=15 // pred_region
          // Predicated region
          $region21: #{custom-call.2} parent=19 // pred_check
            _
          $region22: #{custom-call.2} parent=19 // pred_check_branch
            %96 = sbr.rel (0) target = $region24
          $region23: #{custom-call.2} parent=19 // pred_region
            // Predicated region
            $region36: #{custom-call.2} parent=23 // pred_check
              _
            $region37: #{custom-call.2} parent=23 // pred_check_branch
              %111 = sbr.rel (0) target = $region39
            $region38: #{custom-call.2} parent=23 // pred_region
              loop: start=0, step=1, limit=1
              $region40: #{custom-call.2} parent=38 // loop_pre_header
                _
              $region41: #{custom-call.2} parent=38 // loop_header
                %s113 = sphi 0, %s117
                %p114 = scmp.ge.s32.totalorder %s113, 1
                %s118 = sphi %s92, %s92
                %s119 = sphi %s90, %s90
              $region42: #{custom-call.2} parent=38 // loop_header_branch
                %116 = sbr.rel (%p114) target = $region46
              $region43: #{custom-call.2} parent=38 // loop_body
                %v120 = vld [vmem:[%s118] sm:$0xff]
                %121 = vst [vmem:[%s119] sm:$0xff] %v120
              $region44: #{custom-call.2} parent=38 // loop_footer
                %s117 = sadd.s32 1, %s113
              $region45: #{custom-call.2} parent=38 // loop_footer_branch
                %112 = sbr.rel target = $region41
              $region46: #{custom-call.2} parent=38 // loop_exit
                _
            $region39: #{custom-call.2} parent=23 // pred_fallthru
              _
            // Predicated region
            $region47: #{custom-call.2} parent=23 // pred_check
              _
            $region48: #{custom-call.2} parent=23 // pred_check_branch
              %123 = sbr.rel target = $region50
            $region49: #{custom-call.2} parent=23 // pred_region
              _
            $region50: #{custom-call.2} parent=23 // pred_fallthru
              _
          $region24: #{custom-call.2} parent=19 // pred_fallthru
            _
          // Predicated region
          $region25: #{custom-call.2} parent=19 // pred_check
            _
          $region26: #{custom-call.2} parent=19 // pred_check_branch
            %98 = sbr.rel target = $region28
          $region27: #{custom-call.2} parent=19 // pred_region
            loop: start=0, step=1, limit=1
            $region29: #{custom-call.2} parent=27 // loop_pre_header
              _
            $region30: #{custom-call.2} parent=27 // loop_header
              %s101 = sphi 0, %s105
              %p102 = scmp.ge.s32.totalorder %s101, 1
              %s106 = sphi %s92, %s92
              %s107 = sphi %s90, %s90
            $region31: #{custom-call.2} parent=27 // loop_header_branch
              %104 = sbr.rel (%p102) target = $region35
            $region32: #{custom-call.2} parent=27 // loop_body
              %v108 = vld [vmem:[%s106] sm:$0xff]
              %109 = vst [vmem:[%s107] sm:$0xff] %v108
            $region33: #{custom-call.2} parent=27 // loop_footer
              %s105 = sadd.s32 1, %s101
            $region34: #{custom-call.2} parent=27 // loop_footer_branch
              %100 = sbr.rel target = $region30
            $region35: #{custom-call.2} parent=27 // loop_exit
              _
          $region28: #{custom-call.2} parent=19 // pred_fallthru
            _
        $region20: #{custom-call.2} parent=15 // pred_fallthru
          _
        %124 = vnop
        %s125 = sand.u32 %s12, 1
        %s126 = sand.u32 %s12, 1
        %s127 = smul.addr %s126, 8
        %s128 = scalar_lea.vmem [#allocation1], %s127
        %s129 = smul.addr %s12, 8
        %s130 = scalar_lea.vmem %s1, %s129
        // Predicated region
        $region51: #{custom-call.2} parent=15 // pred_check
          _
        $region52: #{custom-call.2} parent=15 // pred_check_branch
          %132 = sbr.rel (0) target = $region54
        $region53: #{custom-call.2} parent=15 // pred_region
          // Predicated region
          $region55: #{custom-call.2} parent=53 // pred_check
            _
          $region56: #{custom-call.2} parent=53 // pred_check_branch
            %134 = sbr.rel (0) target = $region58
          $region57: #{custom-call.2} parent=53 // pred_region
            // Predicated region
            $region70: #{custom-call.2} parent=57 // pred_check
              _
            $region71: #{custom-call.2} parent=57 // pred_check_branch
              %149 = sbr.rel (0) target = $region73
            $region72: #{custom-call.2} parent=57 // pred_region
              loop: start=0, step=1, limit=1
              $region74: #{custom-call.2} parent=72 // loop_pre_header
                _
              $region75: #{custom-call.2} parent=72 // loop_header
                %s151 = sphi 0, %s155
                %p152 = scmp.ge.s32.totalorder %s151, 1
                %s156 = sphi %s130, %s130
                %s157 = sphi %s128, %s128
              $region76: #{custom-call.2} parent=72 // loop_header_branch
                %154 = sbr.rel (%p152) target = $region80
              $region77: #{custom-call.2} parent=72 // loop_body
                %v158 = vld [vmem:[%s156] sm:$0xff]
                %159 = vst [vmem:[%s157] sm:$0xff] %v158
              $region78: #{custom-call.2} parent=72 // loop_footer
                %s155 = sadd.s32 1, %s151
              $region79: #{custom-call.2} parent=72 // loop_footer_branch
                %150 = sbr.rel target = $region75
              $region80: #{custom-call.2} parent=72 // loop_exit
                _
            $region73: #{custom-call.2} parent=57 // pred_fallthru
              _
            // Predicated region
            $region81: #{custom-call.2} parent=57 // pred_check
              _
            $region82: #{custom-call.2} parent=57 // pred_check_branch
              %161 = sbr.rel target = $region84
            $region83: #{custom-call.2} parent=57 // pred_region
              _
            $region84: #{custom-call.2} parent=57 // pred_fallthru
              _
          $region58: #{custom-call.2} parent=53 // pred_fallthru
            _
          // Predicated region
          $region59: #{custom-call.2} parent=53 // pred_check
            _
          $region60: #{custom-call.2} parent=53 // pred_check_branch
            %136 = sbr.rel target = $region62
          $region61: #{custom-call.2} parent=53 // pred_region
            loop: start=0, step=1, limit=1
            $region63: #{custom-call.2} parent=61 // loop_pre_header
              _
            $region64: #{custom-call.2} parent=61 // loop_header
              %s139 = sphi 0, %s143
              %p140 = scmp.ge.s32.totalorder %s139, 1
              %s144 = sphi %s130, %s130
              %s145 = sphi %s128, %s128
            $region65: #{custom-call.2} parent=61 // loop_header_branch
              %142 = sbr.rel (%p140) target = $region69
            $region66: #{custom-call.2} parent=61 // loop_body
              %v146 = vld [vmem:[%s144] sm:$0xff]
              %147 = vst [vmem:[%s145] sm:$0xff] %v146
            $region67: #{custom-call.2} parent=61 // loop_footer
              %s143 = sadd.s32 1, %s139
            $region68: #{custom-call.2} parent=61 // loop_footer_branch
              %138 = sbr.rel target = $region64
            $region69: #{custom-call.2} parent=61 // loop_exit
              _
          $region62: #{custom-call.2} parent=53 // pred_fallthru
            _
        $region54: #{custom-call.2} parent=15 // pred_fallthru
          _
        %162 = vnop
        %s163 = sand.u32 %s12, 1
        %s164 = sand.u32 %s12, 1
        %s165 = smul.addr %s164, 8
        %s166 = scalar_lea.vmem [#allocation2], %s165
        %s167 = smul.addr %s12, 8
        %s168 = scalar_lea.vmem %s2, %s167
        // Predicated region
        $region85: #{custom-call.2} parent=15 // pred_check
          _
        $region86: #{custom-call.2} parent=15 // pred_check_branch
          %170 = sbr.rel (0) target = $region88
        $region87: #{custom-call.2} parent=15 // pred_region
          // Predicated region
          $region89: #{custom-call.2} parent=87 // pred_check
            _
          $region90: #{custom-call.2} parent=87 // pred_check_branch
            %172 = sbr.rel (0) target = $region92
          $region91: #{custom-call.2} parent=87 // pred_region
            // Predicated region
            $region104: #{custom-call.2} parent=91 // pred_check
              _
            $region105: #{custom-call.2} parent=91 // pred_check_branch
              %187 = sbr.rel (0) target = $region107
            $region106: #{custom-call.2} parent=91 // pred_region
              loop: start=0, step=1, limit=1
              $region108: #{custom-call.2} parent=106 // loop_pre_header
                _
              $region109: #{custom-call.2} parent=106 // loop_header
                %s189 = sphi 0, %s193
                %p190 = scmp.ge.s32.totalorder %s189, 1
                %s194 = sphi %s168, %s168
                %s195 = sphi %s166, %s166
              $region110: #{custom-call.2} parent=106 // loop_header_branch
                %192 = sbr.rel (%p190) target = $region114
              $region111: #{custom-call.2} parent=106 // loop_body
                %v196 = vld [vmem:[%s194] sm:$0xff]
                %197 = vst [vmem:[%s195] sm:$0xff] %v196
              $region112: #{custom-call.2} parent=106 // loop_footer
                %s193 = sadd.s32 1, %s189
              $region113: #{custom-call.2} parent=106 // loop_footer_branch
                %188 = sbr.rel target = $region109
              $region114: #{custom-call.2} parent=106 // loop_exit
                _
            $region107: #{custom-call.2} parent=91 // pred_fallthru
              _
            // Predicated region
            $region115: #{custom-call.2} parent=91 // pred_check
              _
            $region116: #{custom-call.2} parent=91 // pred_check_branch
              %199 = sbr.rel target = $region118
            $region117: #{custom-call.2} parent=91 // pred_region
              _
            $region118: #{custom-call.2} parent=91 // pred_fallthru
              _
          $region92: #{custom-call.2} parent=87 // pred_fallthru
            _
          // Predicated region
          $region93: #{custom-call.2} parent=87 // pred_check
            _
          $region94: #{custom-call.2} parent=87 // pred_check_branch
            %174 = sbr.rel target = $region96
          $region95: #{custom-call.2} parent=87 // pred_region
            loop: start=0, step=1, limit=1
            $region97: #{custom-call.2} parent=95 // loop_pre_header
              _
            $region98: #{custom-call.2} parent=95 // loop_header
              %s177 = sphi 0, %s181
              %p178 = scmp.ge.s32.totalorder %s177, 1
              %s182 = sphi %s168, %s168
              %s183 = sphi %s166, %s166
            $region99: #{custom-call.2} parent=95 // loop_header_branch
              %180 = sbr.rel (%p178) target = $region103
            $region100: #{custom-call.2} parent=95 // loop_body
              %v184 = vld [vmem:[%s182] sm:$0xff]
              %185 = vst [vmem:[%s183] sm:$0xff] %v184
            $region101: #{custom-call.2} parent=95 // loop_footer
              %s181 = sadd.s32 1, %s177
            $region102: #{custom-call.2} parent=95 // loop_footer_branch
              %176 = sbr.rel target = $region98
            $region103: #{custom-call.2} parent=95 // loop_exit
              _
          $region96: #{custom-call.2} parent=87 // pred_fallthru
            _
        $region88: #{custom-call.2} parent=15 // pred_fallthru
          _
        %200 = vnop
        %s201 = sand.u32 %s12, 1
        %s202 = sand.u32 %s12, 1
        %s203 = smul.addr %s202, 8
        %s204 = scalar_lea.vmem [#allocation3], %s203
        %s205 = smul.addr %s12, 8
        %s206 = scalar_lea.vmem %s3, %s205
        // Predicated region
        $region119: #{custom-call.2} parent=15 // pred_check
          _
        $region120: #{custom-call.2} parent=15 // pred_check_branch
          %208 = sbr.rel (0) target = $region122
        $region121: #{custom-call.2} parent=15 // pred_region
          // Predicated region
          $region123: #{custom-call.2} parent=121 // pred_check
            _
          $region124: #{custom-call.2} parent=121 // pred_check_branch
            %210 = sbr.rel (0) target = $region126
          $region125: #{custom-call.2} parent=121 // pred_region
            // Predicated region
            $region138: #{custom-call.2} parent=125 // pred_check
              _
            $region139: #{custom-call.2} parent=125 // pred_check_branch
              %225 = sbr.rel (0) target = $region141
            $region140: #{custom-call.2} parent=125 // pred_region
              loop: start=0, step=1, limit=1
              $region142: #{custom-call.2} parent=140 // loop_pre_header
                _
              $region143: #{custom-call.2} parent=140 // loop_header
                %s227 = sphi 0, %s231
                %p228 = scmp.ge.s32.totalorder %s227, 1
                %s232 = sphi %s206, %s206
                %s233 = sphi %s204, %s204
              $region144: #{custom-call.2} parent=140 // loop_header_branch
                %230 = sbr.rel (%p228) target = $region148
              $region145: #{custom-call.2} parent=140 // loop_body
                %v234 = vld [vmem:[%s232] sm:$0xff]
                %235 = vst [vmem:[%s233] sm:$0xff] %v234
              $region146: #{custom-call.2} parent=140 // loop_footer
                %s231 = sadd.s32 1, %s227
              $region147: #{custom-call.2} parent=140 // loop_footer_branch
                %226 = sbr.rel target = $region143
              $region148: #{custom-call.2} parent=140 // loop_exit
                _
            $region141: #{custom-call.2} parent=125 // pred_fallthru
              _
            // Predicated region
            $region149: #{custom-call.2} parent=125 // pred_check
              _
            $region150: #{custom-call.2} parent=125 // pred_check_branch
              %237 = sbr.rel target = $region152
            $region151: #{custom-call.2} parent=125 // pred_region
              _
            $region152: #{custom-call.2} parent=125 // pred_fallthru
              _
          $region126: #{custom-call.2} parent=121 // pred_fallthru
            _
          // Predicated region
          $region127: #{custom-call.2} parent=121 // pred_check
            _
          $region128: #{custom-call.2} parent=121 // pred_check_branch
            %212 = sbr.rel target = $region130
          $region129: #{custom-call.2} parent=121 // pred_region
            loop: start=0, step=1, limit=1
            $region131: #{custom-call.2} parent=129 // loop_pre_header
              _
            $region132: #{custom-call.2} parent=129 // loop_header
              %s215 = sphi 0, %s219
              %p216 = scmp.ge.s32.totalorder %s215, 1
              %s220 = sphi %s206, %s206
              %s221 = sphi %s204, %s204
            $region133: #{custom-call.2} parent=129 // loop_header_branch
              %218 = sbr.rel (%p216) target = $region137
            $region134: #{custom-call.2} parent=129 // loop_body
              %v222 = vld [vmem:[%s220] sm:$0xff]
              %223 = vst [vmem:[%s221] sm:$0xff] %v222
            $region135: #{custom-call.2} parent=129 // loop_footer
              %s219 = sadd.s32 1, %s215
            $region136: #{custom-call.2} parent=129 // loop_footer_branch
              %214 = sbr.rel target = $region132
            $region137: #{custom-call.2} parent=129 // loop_exit
              _
          $region130: #{custom-call.2} parent=121 // pred_fallthru
            _
        $region122: #{custom-call.2} parent=15 // pred_fallthru
          _
        %238 = vnop
      $region16: #{custom-call.2} parent=5 // pred_fallthru
        _
      %p239 = scmp.le.s32.totalorder 1, %s12
      %p240 = scmp.lt.s32.totalorder %s12, 3
      %p241 = pnand %p239, %p240
      %p242 = pneg %p241
      // Predicated region
      $region153: #{custom-call.2} parent=5 // pred_check
        _
      $region154: #{custom-call.2} parent=5 // pred_check_branch
        %244 = sbr.rel (%p241) target = $region156
      $region155: #{custom-call.2} parent=5 // pred_region
        #allocation12 [shape = 'f32[8,8]{1,0}', space=vmem, size = 0x1000, scoped, tag = 'a top-left matrix']
        #allocation13 [shape = 'f32[8,8]{1,0}', space=vmem, size = 0x1000, scoped, tag = 'a top-right matrix']
        #allocation14 [shape = 'f32[8,8]{1,0}', space=vmem, size = 0x1000, scoped, tag = 'a bottom-left matrix']
        #allocation15 [shape = 'f32[8,8]{1,0}', space=vmem, size = 0x1000, scoped, tag = 'a bottom-right matrix']
        %s245 = ssub.s32 %s12, 1
        %s246 = sand.u32 %s17, 1
        %s247 = sand.u32 %s17, 1
        %s248 = smul.addr %s247, 8
        %s249 = scalar_lea.vmem [#allocation0], %s248
        %s250 = sand.u32 %s17, 1
        %s251 = sand.u32 %s17, 1
        %s252 = smul.addr %s251, 8
        %s253 = scalar_lea.vmem [#allocation1], %s252
        %s254 = sand.u32 %s17, 1
        %s255 = sand.u32 %s17, 1
        %s256 = smul.addr %s255, 8
        %s257 = scalar_lea.vmem [#allocation2], %s256
        %s258 = sand.u32 %s17, 1
        %s259 = sand.u32 %s17, 1
        %s260 = smul.addr %s259, 8
        %s261 = scalar_lea.vmem [#allocation3], %s260
        %s262 = sand.u32 %s17, 1
        %s263 = sand.u32 %s17, 1
        %s264 = smul.addr %s263, 8
        %s265 = scalar_lea.vmem [#allocation0], %s264
        %s266 = sand.u32 %s17, 1
        %s267 = sand.u32 %s17, 1
        %s268 = smul.addr %s267, 8
        %s269 = scalar_lea.vmem [#allocation1], %s268
        %s270 = sand.u32 %s17, 1
        %s271 = sand.u32 %s17, 1
        %s272 = smul.addr %s271, 8
        %s273 = scalar_lea.vmem [#allocation2], %s272
        %s274 = sand.u32 %s17, 1
        %s275 = sand.u32 %s17, 1
        %s276 = smul.addr %s275, 8
        %s277 = scalar_lea.vmem [#allocation3], %s276
        %p278 = pneg %p40
        %p279 = pneg %p37
        %s280 = sand.u32 %s27, 1
        %s281 = sand.u32 %s27, 1
        %s282 = smul.addr %s281, 2
        %s283 = scalar_lea.vmem [#allocation5], %s282
        %p284 = pneg %p68
        %p285 = pneg %p65
        %s286 = sand.u32 %s55, 1
        %s287 = sand.u32 %s55, 1
        %s288 = smul.addr %s287, 2
        %s289 = scalar_lea.vmem [#allocation7], %s288
        %s290 = sand.u32 %s17, 1
        %s291 = sand.u32 %s17, 1
        %s292 = smul.addr %s291, 8
        %s293 = scalar_lea.vmem [#allocation8], %s292
        %s294 = sand.u32 %s17, 1
        %s295 = sand.u32 %s17, 1
        %s296 = smul.addr %s295, 8
        %s297 = scalar_lea.vmem [#allocation9], %s296
        %s298 = sand.u32 %s17, 1
        %s299 = sand.u32 %s17, 1
        %s300 = smul.addr %s299, 8
        %s301 = scalar_lea.vmem [#allocation10], %s300
        %s302 = sand.u32 %s17, 1
        %s303 = sand.u32 %s17, 1
        %s304 = smul.addr %s303, 8
        %s305 = scalar_lea.vmem [#allocation11], %s304
        %s306 = sshrl.u32 %s17, 3
        %s307 = sshrl.u32 %s17, 3
        %s308 = smov [#allocation12]
        %v309 = vld [vmem:[%s249] sm:$0xff]
        %310 = vst [vmem:[%s308] sm:$0xff] %v309
        %s311 = smov [#allocation13]
        %v312 = vld [vmem:[%s253] sm:$0xff]
        %313 = vst [vmem:[%s311] sm:$0xff] %v312
        %s314 = smov [#allocation14]
        %v315 = vld [vmem:[%s257] sm:$0xff]
        %316 = vst [vmem:[%s314] sm:$0xff] %v315
        %s317 = smov [#allocation15]
        %v318 = vld [vmem:[%s261] sm:$0xff]
        %319 = vst [vmem:[%s317] sm:$0xff] %v318
        %320 = vst [vmem:[%s293] sm:$0xff] 0.0
        %321 = vst [vmem:[%s297] sm:$0xff] 0.0
        %322 = vst [vmem:[%s301] sm:$0xff] 0.0
        %323 = vst [vmem:[%s305] sm:$0xff] 0.0
        %s324 = smov %s293
        %v325 = vlaneseq
        %v326 = vand.u32 %v325, 127
        %v327 = vmov %v326
        %v328 = vlaneseq
        %v329 = vshrl.u32 %v328, 7
        %v330 = vmov %v329
        %v331 = vld [vmem:[%s324] sm:$0xff]
        %vm334 = vcmp.eq.s32.totalorder %v330, %v327
        %v335 = vsel %vm334, 1.0, %v331
        %336 = vst [vmem:[%s324] sm:$0xff] %v335
        %s337 = smov %s305
        %v338 = vlaneseq
        %v339 = vand.u32 %v338, 127
        %v340 = vmov %v339
        %v341 = vlaneseq
        %v342 = vshrl.u32 %v341, 7
        %v343 = vmov %v342
        %v344 = vld [vmem:[%s337] sm:$0xff]
        %vm347 = vcmp.eq.s32.totalorder %v343, %v340
        %v348 = vsel %vm347, 1.0, %v344
        %349 = vst [vmem:[%s337] sm:$0xff] %v348
        // While loop
        $region157: #{custom-call.2} parent=155 // loop_pre_header
          _
        $region158: #{custom-call.2} parent=155 // loop_header
          %s351 = sphi 0, %s893
          %v352 = vlaneseq
          %v353 = vand.u32 %v352, 127
          %v354 = vmov %v353
          %v355 = vlaneseq
          %v356 = vshrl.u32 %v355, 7
          %v357 = vmov %v356
          %s358 = smov [#allocation12]
          %v359 = vlaneseq
          %v360 = vand.u32 %v359, 127
          %vm361 = vcmp.ge.s32.totalorder %v360, 0
          %vm362 = vcmp.lt.s32.totalorder %v360, 8
          %vm363 = vmand %vm361, %vm362
          %v364 = vld [vmem:[%s358] sm:$0xff]
          %v365 = vsel %vm363, %v364, 0.0
          %v366 = vmul.f32 %v365, %v365
          %vm369 = vcmp.eq.s32.totalorder %v357, %v354
          %v370 = vsel %vm369, 0.0, %v366
          %v371 = vlaneseq
          %v372 = vand.u32 %v371, 127
          %v373 = vmov %v372
          %v374 = vlaneseq
          %v375 = vshrl.u32 %v374, 7
          %v376 = vmov %v375
          %s377 = smov [#allocation13]
          %v378 = vlaneseq
          %v379 = vand.u32 %v378, 127
          %vm380 = vcmp.ge.s32.totalorder %v379, 0
          %vm381 = vcmp.lt.s32.totalorder %v379, 8
          %vm382 = vmand %vm380, %vm381
          %v383 = vld [vmem:[%s377] sm:$0xff]
          %v384 = vsel %vm382, %v383, 0.0
          %v385 = vmul.f32 %v384, %v384
          %v386 = vadd.f32 %v370, %v385
          %v387 = vadd.f32 %v366, %v385
          %v388 = vlaneseq
          %v389 = vand.u32 %v388, 127
          %v390 = vmov %v389
          %v391 = vlaneseq
          %v392 = vshrl.u32 %v391, 7
          %v393 = vmov %v392
          %s394 = smov [#allocation14]
          %v395 = vlaneseq
          %v396 = vand.u32 %v395, 127
          %vm397 = vcmp.ge.s32.totalorder %v396, 0
          %vm398 = vcmp.lt.s32.totalorder %v396, 8
          %vm399 = vmand %vm397, %vm398
          %v400 = vld [vmem:[%s394] sm:$0xff]
          %v401 = vsel %vm399, %v400, 0.0
          %v402 = vmul.f32 %v401, %v401
          %v403 = vadd.f32 %v386, %v402
          %v404 = vadd.f32 %v387, %v402
          %v405 = vlaneseq
          %v406 = vand.u32 %v405, 127
          %v407 = vmov %v406
          %v408 = vlaneseq
          %v409 = vshrl.u32 %v408, 7
          %v410 = vmov %v409
          %s411 = smov [#allocation15]
          %v412 = vlaneseq
          %v413 = vand.u32 %v412, 127
          %vm414 = vcmp.ge.s32.totalorder %v413, 0
          %vm415 = vcmp.lt.s32.totalorder %v413, 8
          %vm416 = vmand %vm414, %vm415
          %v417 = vld [vmem:[%s411] sm:$0xff]
          %v418 = vsel %vm416, %v417, 0.0
          %v419 = vmul.f32 %v418, %v418
          %vm422 = vcmp.eq.s32.totalorder %v410, %v407
          %v423 = vsel %vm422, 0.0, %v419
          %v424 = vadd.f32 %v403, %v423
          %v425 = vadd.f32 %v404, %v419
          %426 = vadd.xlane.f32.xlu0 %v425
          %v427 = vpop.xlane.xlu0 %426
          %v428 = vrot.slane %v427, 4
          %v429 = vadd.f32 %v427, %v428
          %v430 = vrot.slane %v429, 2
          %v431 = vadd.f32 %v429, %v430
          %v432 = vrot.slane %v431, 1
          %v433 = vadd.f32 %v431, %v432
          %434 = vadd.xlane.f32.xlu0 %v424
          %v435 = vpop.xlane.xlu0 %434
          %v436 = vrot.slane %v435, 4
          %v437 = vadd.f32 %v435, %v436
          %v438 = vrot.slane %v437, 2
          %v439 = vadd.f32 %v437, %v438
          %v440 = vrot.slane %v439, 1
          %v441 = vadd.f32 %v439, %v440
          %s442 = vtos %v441
          %s443 = vtos %v433
          %s444 = smul.f32 1e-10, %s443
          %p445 = scmp.le.f32.partialorder %s442, %s444
          %p446 = scmp.ge.s32.totalorder %s351, 15
          %p447 = por %p445, %p446
        $region159: #{custom-call.2} parent=155 // loop_header_branch
          %895 = sbr.rel (%p447) target = $region163
        $region160: #{custom-call.2} parent=155 // loop_body
          loop: start=0, step=1, limit=15
          $region164: #{custom-call.2} parent=160 // loop_pre_header
            _
          $region165: #{custom-call.2} parent=160 // loop_header
            %s449 = sphi 0, %s453
            %p450 = scmp.ge.s32.totalorder %s449, 15
          $region166: #{custom-call.2} parent=160 // loop_header_branch
            %452 = sbr.rel (%p450) target = $region170
          $region167: #{custom-call.2} parent=160 // loop_body
            #allocation16 [shape = 'f32[1024]{0}', space=vmem, size = 0x1000, scoped, tag = 'a_tl_diag vmem']
            #allocation17 [shape = 'f32[1024]{0}', space=vmem, size = 0x1000, scoped, tag = 'a_tr_diag vmem']
            #allocation18 [shape = 'f32[1024]{0}', space=vmem, size = 0x1000, scoped, tag = 'a_br_diag vmem']
            #allocation19 [shape = 'f32[1024]{0}', space=vmem, size = 0x1000, scoped, tag = 'rt1 vmem']
            #allocation20 [shape = 'f32[1024]{0}', space=vmem, size = 0x1000, scoped, tag = 'rt2 vmem']
            #allocation21 [shape = 'f32[1024]{0}', space=vmem, size = 0x1000, scoped, tag = 'c vmem']
            #allocation22 [shape = 'f32[1024]{0}', space=vmem, size = 0x1000, scoped, tag = 's vmem']
            #allocation23 [shape = 'f32[4096]{0}', space=vmem, size = 0x4000, scoped, tag = 'c broadcast']
            #allocation24 [shape = 'f32[4096]{0}', space=vmem, size = 0x4000, scoped, tag = 's broadcast']
            %s454 = smov [#allocation12]
            %s455 = smov [#allocation16]
            %v456 = vlaneseq
            %v457 = vand.u32 %v456, 127
            %v458 = vmov %v457
            %v459 = vlaneseq
            %v460 = vshrl.u32 %v459, 7
            %v461 = vmov %v460
            %v462 = vld [vmem:[%s454] sm:$0xff]
            %vm465 = vcmp.eq.s32.totalorder %v461, %v458
            %v466 = vsel %vm465, %v462, 0.0
            %v467 = vrot.slane %v466, 4
            %v468 = vadd.f32 %v466, %v467
            %v469 = vrot.slane %v468, 2
            %v470 = vadd.f32 %v468, %v469
            %v471 = vrot.slane %v470, 1
            %v472 = vadd.f32 %v470, %v471
            %473 = vst [vmem:[%s455] sm:$0x1] %v472
            %s474 = smov [#allocation13]
            %s475 = smov [#allocation17]
            %v476 = vlaneseq
            %v477 = vand.u32 %v476, 127
            %v478 = vmov %v477
            %v479 = vlaneseq
            %v480 = vshrl.u32 %v479, 7
            %v481 = vmov %v480
            %v482 = vld [vmem:[%s474] sm:$0xff]
            %vm485 = vcmp.eq.s32.totalorder %v481, %v478
            %v486 = vsel %vm485, %v482, 0.0
            %v487 = vrot.slane %v486, 4
            %v488 = vadd.f32 %v486, %v487
            %v489 = vrot.slane %v488, 2
            %v490 = vadd.f32 %v488, %v489
            %v491 = vrot.slane %v490, 1
            %v492 = vadd.f32 %v490, %v491
            %493 = vst [vmem:[%s475] sm:$0x1] %v492
            %s494 = smov [#allocation15]
            %s495 = smov [#allocation18]
            %v496 = vlaneseq
            %v497 = vand.u32 %v496, 127
            %v498 = vmov %v497
            %v499 = vlaneseq
            %v500 = vshrl.u32 %v499, 7
            %v501 = vmov %v500
            %v502 = vld [vmem:[%s494] sm:$0xff]
            %vm505 = vcmp.eq.s32.totalorder %v501, %v498
            %v506 = vsel %vm505, %v502, 0.0
            %v507 = vrot.slane %v506, 4
            %v508 = vadd.f32 %v506, %v507
            %v509 = vrot.slane %v508, 2
            %v510 = vadd.f32 %v508, %v509
            %v511 = vrot.slane %v510, 1
            %v512 = vadd.f32 %v510, %v511
            %513 = vst [vmem:[%s495] sm:$0x1] %v512
            %s514 = smov [#allocation21]
            %s515 = smov [#allocation22]
            %s516 = smov [#allocation16]
            %v517 = vld [vmem:[%s516] sm:$0xff]
            %s518 = smov [#allocation17]
            %v519 = vld [vmem:[%s518] sm:$0xff]
            %s520 = smov [#allocation18]
            %v521 = vld [vmem:[%s520] sm:$0xff]
            %v522 = vsub.f32 %v521, %v517
            %v523 = vmul.f32 2.0, %v519
            %v524 = vrcp.pop %v523
            %v525 = vmul.f32 %v522, %v524
            %vm526 = vcmp.ge.f32.partialorder %v525, 0.0
            %v527 = vmul.f32 %v525, %v525
            %v528 = vadd.f32 1.0, %v527
            %v529 = vrsqrt.pop %v528
            %v530 = vmul.f32 %v528, %v529
            %vm531 = vcmp.eq.f32.partialorder %v528, inf
            %v532 = vsel %vm531, %v528, %v530
            %vm533 = vcmp.eq.f32.partialorder %v528, 0.0
            %v534 = vand.u32 %v528, 2147483648
            %v535 = vsel %vm533, %v534, %v532
            %v536 = vxor.u32 %v535, 2147483648
            %v537 = vsel %vm526, %v535, %v536
            %v538 = vadd.f32 %v525, %v537
            %v539 = vrcp.pop %v538
            %v540 = vand.u32 2147483647, %v517
            %v541 = vand.u32 2147483647, %v519
            %v542 = vand.u32 2147483647, %v521
            %v543 = vmin.f32 %v540, %v542
            %v544 = vmul.f32 1.1920929e-08, %v543
            %vm545 = vcmp.le.f32.partialorder %v541, %v544
            %v546 = vsel %vm545, 0.0, %v539
            %v547 = vmul.f32 %v546, %v546
            %v548 = vadd.f32 1.0, %v547
            %v549 = vrsqrt.pop %v548
            %v550 = vmul.f32 %v546, %v549
            %v551 = vmul.f32 %v546, %v519
            %v552 = vsub.f32 %v517, %v551
            %v553 = vmul.f32 %v546, %v519
            %v554 = vadd.f32 %v521, %v553
            %s555 = smov [#allocation19]
            %556 = vst [vmem:[%s555] sm:$0xff] %v552
            %s557 = smov [#allocation20]
            %558 = vst [vmem:[%s557] sm:$0xff] %v554
            %s559 = smov %s514
            %560 = vst [vmem:[%s559] sm:$0xff] %v549
            %s561 = smov %s515
            %562 = vst [vmem:[%s561] sm:$0xff] %v550
            %s563 = smov [#allocation21]
            %v564 = vld [vmem:[%s563] ss:$0 sm:$0xff]
            %v565 = vlaneseq
            %v566 = vand.u32 %v565, 127
            %v567 = vmov %v566
            %v568 = vlaneseq
            %v569 = vshrl.u32 %v568, 7
            %v570 = vmov %v569
            %vm572 = vcmp.eq.s32.totalorder %v570, %v567
            %v573 = vsel %vm572, %v564, 0.0
            %574 = vadd.xlane.f32.xlu0 %v573
            %v575 = vpop.xlane.xlu0 %574
            %s576 = smov [#allocation23]
            %577 = vst [vmem:[%s576] sm:$0xff] %v575
            %s578 = smov [#allocation22]
            %v579 = vld [vmem:[%s578] ss:$0 sm:$0xff]
            %v580 = vlaneseq
            %v581 = vand.u32 %v580, 127
            %v582 = vmov %v581
            %v583 = vlaneseq
            %v584 = vshrl.u32 %v583, 7
            %v585 = vmov %v584
            %vm587 = vcmp.eq.s32.totalorder %v585, %v582
            %v588 = vsel %vm587, %v579, 0.0
            %589 = vadd.xlane.f32.xlu0 %v588
            %v590 = vpop.xlane.xlu0 %589
            %s591 = smov [#allocation24]
            %592 = vst [vmem:[%s591] sm:$0xff] %v590
            %s593 = smov [#allocation23]
            %v594 = vld [vmem:[%s593] sm:$0xff]
            %s595 = smov [#allocation24]
            %v596 = vld [vmem:[%s595] sm:$0xff]
            %s597 = smov [#allocation12]
            %s598 = smov [#allocation13]
            %s599 = smov [#allocation14]
            %s600 = smov [#allocation15]
            %v601 = vld [vmem:[%s597] sm:$0xff]
            %v602 = vld [vmem:[%s598] sm:$0xff]
            %v603 = vld [vmem:[%s599] sm:$0xff]
            %v604 = vld [vmem:[%s600] sm:$0xff]
            %v605 = vmul.f32 %v594, %v601
            %v606 = vmul.f32 %v596, %v603
            %v607 = vsub.f32 %v605, %v606
            %v608 = vmul.f32 %v594, %v602
            %v609 = vmul.f32 %v596, %v604
            %v610 = vsub.f32 %v608, %v609
            %v611 = vmul.f32 %v596, %v601
            %v612 = vmul.f32 %v594, %v603
            %v613 = vadd.f32 %v611, %v612
            %v614 = vmul.f32 %v596, %v602
            %v615 = vmul.f32 %v594, %v604
            %v616 = vadd.f32 %v614, %v615
            %617 = vst [vmem:[%s597] sm:$0xff] %v607
            %618 = vst [vmem:[%s598] sm:$0xff] %v610
            %619 = vst [vmem:[%s599] sm:$0xff] %v613
            %620 = vst [vmem:[%s600] sm:$0xff] %v616
            %s621 = smov [#allocation21]
            %v622 = vld [vmem:[%s621] ss:$0 sm:$0xff]
            %s623 = smov [#allocation22]
            %v624 = vld [vmem:[%s623] ss:$0 sm:$0xff]
            %s625 = smov [#allocation12]
            %s626 = smov [#allocation13]
            %s627 = smov [#allocation14]
            %s628 = smov [#allocation15]
            %v629 = vld [vmem:[%s625] sm:$0xff]
            %v630 = vld [vmem:[%s626] sm:$0xff]
            %v631 = vld [vmem:[%s627] sm:$0xff]
            %v632 = vld [vmem:[%s628] sm:$0xff]
            %v633 = vmul.f32 %v622, %v629
            %v634 = vmul.f32 %v624, %v630
            %v635 = vsub.f32 %v633, %v634
            %v636 = vmul.f32 %v624, %v629
            %v637 = vmul.f32 %v622, %v630
            %v638 = vadd.f32 %v636, %v637
            %v639 = vmul.f32 %v622, %v631
            %v640 = vmul.f32 %v624, %v632
            %v641 = vsub.f32 %v639, %v640
            %v642 = vmul.f32 %v624, %v631
            %v643 = vmul.f32 %v622, %v632
            %v644 = vadd.f32 %v642, %v643
            %645 = vst [vmem:[%s625] sm:$0xff] %v635
            %646 = vst [vmem:[%s626] sm:$0xff] %v638
            %647 = vst [vmem:[%s627] sm:$0xff] %v641
            %648 = vst [vmem:[%s628] sm:$0xff] %v644
            %s649 = smov [#allocation12]
            %s650 = smov [#allocation19]
            %v651 = vlaneseq
            %v652 = vand.u32 %v651, 127
            %v653 = vmov %v652
            %v654 = vlaneseq
            %v655 = vshrl.u32 %v654, 7
            %v656 = vmov %v655
            %v657 = vld [vmem:[%s650] ss:$0 sm:$0xff]
            %v658 = vld [vmem:[%s649] sm:$0xff]
            %vm661 = vcmp.eq.s32.totalorder %v656, %v653
            %v662 = vsel %vm661, %v657, %v658
            %663 = vst [vmem:[%s649] sm:$0xff] %v662
            %s664 = smov [#allocation13]
            %v665 = vlaneseq
            %v666 = vand.u32 %v665, 127
            %v667 = vmov %v666
            %v668 = vlaneseq
            %v669 = vshrl.u32 %v668, 7
            %v670 = vmov %v669
            %v671 = vld [vmem:[%s664] sm:$0xff]
            %vm674 = vcmp.eq.s32.totalorder %v670, %v667
            %v675 = vsel %vm674, 0.0, %v671
            %676 = vst [vmem:[%s664] sm:$0xff] %v675
            %s677 = smov [#allocation14]
            %v678 = vlaneseq
            %v679 = vand.u32 %v678, 127
            %v680 = vmov %v679
            %v681 = vlaneseq
            %v682 = vshrl.u32 %v681, 7
            %v683 = vmov %v682
            %v684 = vld [vmem:[%s677] sm:$0xff]
            %vm687 = vcmp.eq.s32.totalorder %v683, %v680
            %v688 = vsel %vm687, 0.0, %v684
            %689 = vst [vmem:[%s677] sm:$0xff] %v688
            %s690 = smov [#allocation15]
            %s691 = smov [#allocation20]
            %v692 = vlaneseq
            %v693 = vand.u32 %v692, 127
            %v694 = vmov %v693
            %v695 = vlaneseq
            %v696 = vshrl.u32 %v695, 7
            %v697 = vmov %v696
            %v698 = vld [vmem:[%s691] ss:$0 sm:$0xff]
            %v699 = vld [vmem:[%s690] sm:$0xff]
            %vm702 = vcmp.eq.s32.totalorder %v697, %v694
            %v703 = vsel %vm702, %v698, %v699
            %704 = vst [vmem:[%s690] sm:$0xff] %v703
            %s705 = smov [#allocation12]
            %s706 = smov [#allocation13]
            %v707 = vld [vmem:[%s706] sm:$0xff]
            %708 = vrot.lane.b32.xlu0 %v707, 1
            %v709 = vpop.permute.xlu0 %708
            %v710 = vld [vmem:[%s705] sm:$0xff]
            %v711 = vld [vmem:[%s705] sm:$0xff]
            %712 = vrot.lane.b32.xlu0 %v711, 1
            %v713 = vpop.permute.xlu0 %712
            %v714 = vlaneseq
            %v715 = vand.u32 %v714, 127
            %vm716 = vcmp.eq.s32.totalorder %v715, 0
            %v717 = vsel %vm716, %v711, %v713
            %v718 = vlaneseq
            %v719 = vand.u32 %v718, 127
            %vm720 = vcmp.eq.s32.totalorder %v719, 1
            %v721 = vsel %vm720, %v709, %v717
            %v722 = vlaneseq
            %v723 = vand.u32 %v722, 127
            %vm724 = vcmp.ge.s32.totalorder %v723, 0
            %vm725 = vcmp.lt.s32.totalorder %v723, 8
            %vm726 = vmand %vm724, %vm725
            %v727 = vsel %vm726, %v721, 0.0
            %v728 = vld [vmem:[%s706] sm:$0xff]
            %729 = vrot.lane.b32.xlu0 %v728, 127
            %v730 = vpop.permute.xlu0 %729
            %v731 = vlaneseq
            %v732 = vand.u32 %v731, 127
            %vm733 = vcmp.eq.s32.totalorder %v732, 7
            %v734 = vsel %vm733, %v710, %v730
            %735 = vst [vmem:[%s705] sm:$0xff] %v727
            %736 = vst [vmem:[%s706] sm:$0xff] %v734
            %s737 = smov [#allocation14]
            %s738 = smov [#allocation15]
            %v739 = vld [vmem:[%s738] sm:$0xff]
            %740 = vrot.lane.b32.xlu0 %v739, 1
            %v741 = vpop.permute.xlu0 %740
            %v742 = vld [vmem:[%s737] sm:$0xff]
            %v743 = vld [vmem:[%s737] sm:$0xff]
            %744 = vrot.lane.b32.xlu0 %v743, 1
            %v745 = vpop.permute.xlu0 %744
            %v746 = vlaneseq
            %v747 = vand.u32 %v746, 127
            %vm748 = vcmp.eq.s32.totalorder %v747, 0
            %v749 = vsel %vm748, %v743, %v745
            %v750 = vlaneseq
            %v751 = vand.u32 %v750, 127
            %vm752 = vcmp.eq.s32.totalorder %v751, 1
            %v753 = vsel %vm752, %v741, %v749
            %v754 = vlaneseq
            %v755 = vand.u32 %v754, 127
            %vm756 = vcmp.ge.s32.totalorder %v755, 0
            %vm757 = vcmp.lt.s32.totalorder %v755, 8
            %vm758 = vmand %vm756, %vm757
            %v759 = vsel %vm758, %v753, 0.0
            %v760 = vld [vmem:[%s738] sm:$0xff]
            %761 = vrot.lane.b32.xlu0 %v760, 127
            %v762 = vpop.permute.xlu0 %761
            %v763 = vlaneseq
            %v764 = vand.u32 %v763, 127
            %vm765 = vcmp.eq.s32.totalorder %v764, 7
            %v766 = vsel %vm765, %v742, %v762
            %767 = vst [vmem:[%s737] sm:$0xff] %v759
            %768 = vst [vmem:[%s738] sm:$0xff] %v766
            %s769 = smov [#allocation12]
            %s770 = smov [#allocation14]
            %v771 = vld [vmem:[%s769] ss:$0 sm:$0xff]
            %s773 = scalar_lea.vmem %s769, 4294967295
            %v774 = vld [vmem:[%s773] sm:$0xfe]
            %v775 = vlaneseq
            %v776 = vshrl.u32 %v775, 7
            %vm777 = vcmp.eq.s32.totalorder %v776, 0
            %v778 = vsel %vm777, %v771, %v774
            %s779 = scalar_lea.vmem %s769, 7
            %v780 = vld [vmem:[%s779] ss:$0 sm:$0xff]
            %781 = vst [vmem:[%s769] sm:$0xff] %v778
            %v782 = vld [vmem:[%s770] ss:$0 sm:$0xff]
            %s783 = scalar_lea.vmem %s769, 1
            %784 = vst [vmem:[%s783] sm:$0x1] %v782
            %s785 = scalar_lea.vmem %s770, 1
            %v786 = vld [vmem:[%s785] sm:$0x7f]
            %v787 = vlaneseq
            %v788 = vshrl.u32 %v787, 7
            %vm789 = vcmp.eq.s32.totalorder %v788, 7
            %v790 = vsel %vm789, %v780, %v786
            %v791 = vld [vmem:[%s770] ss:$0 sm:$0xff]
            %792 = vst [vmem:[%s770] sm:$0xff] %v790
            %s793 = smov [#allocation13]
            %s794 = smov [#allocation15]
            %v795 = vld [vmem:[%s793] ss:$0 sm:$0xff]
            %s797 = scalar_lea.vmem %s793, 4294967295
            %v798 = vld [vmem:[%s797] sm:$0xfe]
            %v799 = vlaneseq
            %v800 = vshrl.u32 %v799, 7
            %vm801 = vcmp.eq.s32.totalorder %v800, 0
            %v802 = vsel %vm801, %v795, %v798
            %s803 = scalar_lea.vmem %s793, 7
            %v804 = vld [vmem:[%s803] ss:$0 sm:$0xff]
            %805 = vst [vmem:[%s793] sm:$0xff] %v802
            %v806 = vld [vmem:[%s794] ss:$0 sm:$0xff]
            %s807 = scalar_lea.vmem %s793, 1
            %808 = vst [vmem:[%s807] sm:$0x1] %v806
            %s809 = scalar_lea.vmem %s794, 1
            %v810 = vld [vmem:[%s809] sm:$0x7f]
            %v811 = vlaneseq
            %v812 = vshrl.u32 %v811, 7
            %vm813 = vcmp.eq.s32.totalorder %v812, 7
            %v814 = vsel %vm813, %v804, %v810
            %v815 = vld [vmem:[%s794] ss:$0 sm:$0xff]
            %816 = vst [vmem:[%s794] sm:$0xff] %v814
            %s817 = smov [#allocation23]
            %v818 = vld [vmem:[%s817] sm:$0xff]
            %s819 = smov [#allocation24]
            %v820 = vld [vmem:[%s819] sm:$0xff]
            %s821 = smov %s293
            %s822 = smov %s297
            %s823 = smov %s301
            %s824 = smov %s305
            %v825 = vld [vmem:[%s821] sm:$0xff]
            %v826 = vld [vmem:[%s822] sm:$0xff]
            %v827 = vld [vmem:[%s823] sm:$0xff]
            %v828 = vld [vmem:[%s824] sm:$0xff]
            %v829 = vmul.f32 %v818, %v825
            %v830 = vmul.f32 %v820, %v827
            %v831 = vsub.f32 %v829, %v830
            %v832 = vmul.f32 %v818, %v826
            %v833 = vmul.f32 %v820, %v828
            %v834 = vsub.f32 %v832, %v833
            %v835 = vmul.f32 %v820, %v825
            %v836 = vmul.f32 %v818, %v827
            %v837 = vadd.f32 %v835, %v836
            %v838 = vmul.f32 %v820, %v826
            %v839 = vmul.f32 %v818, %v828
            %v840 = vadd.f32 %v838, %v839
            %841 = vst [vmem:[%s821] sm:$0xff] %v831
            %842 = vst [vmem:[%s822] sm:$0xff] %v834
            %843 = vst [vmem:[%s823] sm:$0xff] %v837
            %844 = vst [vmem:[%s824] sm:$0xff] %v840
            %s845 = smov %s293
            %s846 = smov %s301
            %v847 = vld [vmem:[%s845] ss:$0 sm:$0xff]
            %s849 = scalar_lea.vmem %s845, 4294967295
            %v850 = vld [vmem:[%s849] sm:$0xfe]
            %v851 = vlaneseq
            %v852 = vshrl.u32 %v851, 7
            %vm853 = vcmp.eq.s32.totalorder %v852, 0
            %v854 = vsel %vm853, %v847, %v850
            %s855 = scalar_lea.vmem %s845, 7
            %v856 = vld [vmem:[%s855] ss:$0 sm:$0xff]
            %857 = vst [vmem:[%s845] sm:$0xff] %v854
            %v858 = vld [vmem:[%s846] ss:$0 sm:$0xff]
            %s859 = scalar_lea.vmem %s845, 1
            %860 = vst [vmem:[%s859] sm:$0x1] %v858
            %s861 = scalar_lea.vmem %s846, 1
            %v862 = vld [vmem:[%s861] sm:$0x7f]
            %v863 = vlaneseq
            %v864 = vshrl.u32 %v863, 7
            %vm865 = vcmp.eq.s32.totalorder %v864, 7
            %v866 = vsel %vm865, %v856, %v862
            %v867 = vld [vmem:[%s846] ss:$0 sm:$0xff]
            %868 = vst [vmem:[%s846] sm:$0xff] %v866
            %s869 = smov %s297
            %s870 = smov %s305
            %v871 = vld [vmem:[%s869] ss:$0 sm:$0xff]
            %s873 = scalar_lea.vmem %s869, 4294967295
            %v874 = vld [vmem:[%s873] sm:$0xfe]
            %v875 = vlaneseq
            %v876 = vshrl.u32 %v875, 7
            %vm877 = vcmp.eq.s32.totalorder %v876, 0
            %v878 = vsel %vm877, %v871, %v874
            %s879 = scalar_lea.vmem %s869, 7
            %v880 = vld [vmem:[%s879] ss:$0 sm:$0xff]
            %881 = vst [vmem:[%s869] sm:$0xff] %v878
            %v882 = vld [vmem:[%s870] ss:$0 sm:$0xff]
            %s883 = scalar_lea.vmem %s869, 1
            %884 = vst [vmem:[%s883] sm:$0x1] %v882
            %s885 = scalar_lea.vmem %s870, 1
            %v886 = vld [vmem:[%s885] sm:$0x7f]
            %v887 = vlaneseq
            %v888 = vshrl.u32 %v887, 7
            %vm889 = vcmp.eq.s32.totalorder %v888, 7
            %v890 = vsel %vm889, %v880, %v886
            %v891 = vld [vmem:[%s870] ss:$0 sm:$0xff]
            %892 = vst [vmem:[%s870] sm:$0xff] %v890
          $region168: #{custom-call.2} parent=160 // loop_footer
            %s453 = sadd.s32 1, %s449
          $region169: #{custom-call.2} parent=160 // loop_footer_branch
            %448 = sbr.rel target = $region165
          $region170: #{custom-call.2} parent=160 // loop_exit
            _
          %s893 = sadd.s32 %s351, 1
        $region161: #{custom-call.2} parent=155 // loop_footer
          _
        $region162: #{custom-call.2} parent=155 // loop_footer_branch
          %350 = sbr.rel target = $region158
        $region163: #{custom-call.2} parent=155 // loop_exit
          _
        %s896 = sand.u32 %s17, 7
        %s897 = scalar_lea.vmem [#allocation4], %s896
        %s898 = sand.u32 %s17, 7
        %s899 = scalar_lea.vmem [#allocation6], %s898
        %s900 = smov [#allocation12]
        %s901 = smov %s897
        %v902 = vlaneseq
        %v903 = vand.u32 %v902, 127
        %v904 = vmov %v903
        %v905 = vlaneseq
        %v906 = vshrl.u32 %v905, 7
        %v907 = vmov %v906
        %v908 = vld [vmem:[%s900] sm:$0xff]
        %vm911 = vcmp.eq.s32.totalorder %v907, %v904
        %v912 = vsel %vm911, %v908, 0.0
        %v913 = vrot.slane %v912, 4
        %v914 = vadd.f32 %v912, %v913
        %v915 = vrot.slane %v914, 2
        %v916 = vadd.f32 %v914, %v915
        %v917 = vrot.slane %v916, 1
        %v918 = vadd.f32 %v916, %v917
        %919 = vst [vmem:[%s901] sm:$0x1] %v918
        %s920 = smov [#allocation15]
        %s921 = smov %s899
        %v922 = vlaneseq
        %v923 = vand.u32 %v922, 127
        %v924 = vmov %v923
        %v925 = vlaneseq
        %v926 = vshrl.u32 %v925, 7
        %v927 = vmov %v926
        %v928 = vld [vmem:[%s920] sm:$0xff]
        %vm931 = vcmp.eq.s32.totalorder %v927, %v924
        %v932 = vsel %vm931, %v928, 0.0
        %v933 = vrot.slane %v932, 4
        %v934 = vadd.f32 %v932, %v933
        %v935 = vrot.slane %v934, 2
        %v936 = vadd.f32 %v934, %v935
        %v937 = vrot.slane %v936, 1
        %v938 = vadd.f32 %v936, %v937
        %939 = vst [vmem:[%s921] sm:$0x1] %v938
        %s941 = sshllo.u32 0, 2
        %v943 = vld [vmem:[#allocation4] sm:%s941]
        %s944 = sshllo.u32 0, 2
        %945 = vst [vmem:[%s283] sm:%s944] %v943
        %s947 = sshllo.u32 0, 2
        %v949 = vld [vmem:[#allocation6] sm:%s947]
        %s950 = sshllo.u32 0, 2
        %951 = vst [vmem:[%s289] sm:%s950] %v949
        %s952 = sand.u32 %s27, 1
        %s953 = sand.u32 %s27, 1
        %s954 = smul.addr %s953, 2
        %s955 = scalar_lea.vmem [#allocation5], %s954
        %s956 = sand.u32 %s55, 1
        %s957 = sand.u32 %s55, 1
        %s958 = smul.addr %s957, 2
        %s959 = scalar_lea.vmem [#allocation7], %s958
        %s960 = sand.u32 %s17, 1
        %s961 = sand.u32 %s17, 1
        %s962 = smul.addr %s961, 8
        %s963 = scalar_lea.vmem [#allocation8], %s962
        %s964 = sand.u32 %s17, 1
        %s965 = sand.u32 %s17, 1
        %s966 = smul.addr %s965, 8
        %s967 = scalar_lea.vmem [#allocation9], %s966
        %s968 = sand.u32 %s17, 1
        %s969 = sand.u32 %s17, 1
        %s970 = smul.addr %s969, 8
        %s971 = scalar_lea.vmem [#allocation10], %s970
        %s972 = sand.u32 %s17, 1
        %s973 = sand.u32 %s17, 1
        %s974 = smul.addr %s973, 8
        %s975 = scalar_lea.vmem [#allocation11], %s974
        // Predicated region
        $region171: #{custom-call.2} parent=155 // pred_check
          %p976 = pneg %p37
        $region172: #{custom-call.2} parent=155 // pred_check_branch
          %978 = sbr.rel (%p976) target = $region174
        $region173: #{custom-call.2} parent=155 // pred_region
          %s979 = sshrl.u32 %s17, 3
          %s980 = smul.addr %s979, 2
          %s981 = scalar_lea.vmem %s4, %s980
          // Predicated region
          $region175: #{custom-call.2} parent=173 // pred_check
            _
          $region176: #{custom-call.2} parent=173 // pred_check_branch
            %983 = sbr.rel (0) target = $region178
          $region177: #{custom-call.2} parent=173 // pred_region
            // Predicated region
            $region179: #{custom-call.2} parent=177 // pred_check
              _
            $region180: #{custom-call.2} parent=177 // pred_check_branch
              %985 = sbr.rel target = $region182
            $region181: #{custom-call.2} parent=177 // pred_region
              // Predicated region
              $region194: #{custom-call.2} parent=181 // pred_check
                _
              $region195: #{custom-call.2} parent=181 // pred_check_branch
                %1000 = sbr.rel (0) target = $region197
              $region196: #{custom-call.2} parent=181 // pred_region
                loop: start=0, step=1, limit=1
                $region198: #{custom-call.2} parent=196 // loop_pre_header
                  _
                $region199: #{custom-call.2} parent=196 // loop_header
                  %s1003 = sphi 0, %s1007
                  %p1004 = scmp.ge.s32.totalorder %s1003, 1
                  %s1008 = sphi %s955, %s955
                  %s1009 = sphi %s981, %s981
                $region200: #{custom-call.2} parent=196 // loop_header_branch
                  %1006 = sbr.rel (%p1004) target = $region204
                $region201: #{custom-call.2} parent=196 // loop_body
                  %v1010 = vld [vmem:[%s1008] sm:$0x3]
                  %1011 = vst [vmem:[%s1009] sm:$0x3] %v1010
                $region202: #{custom-call.2} parent=196 // loop_footer
                  %s1007 = sadd.s32 1, %s1003
                $region203: #{custom-call.2} parent=196 // loop_footer_branch
                  %1002 = sbr.rel target = $region199
                $region204: #{custom-call.2} parent=196 // loop_exit
                  _
              $region197: #{custom-call.2} parent=181 // pred_fallthru
                _
            $region182: #{custom-call.2} parent=177 // pred_fallthru
              _
            // Predicated region
            $region183: #{custom-call.2} parent=177 // pred_check
              _
            $region184: #{custom-call.2} parent=177 // pred_check_branch
              %987 = sbr.rel (0) target = $region186
            $region185: #{custom-call.2} parent=177 // pred_region
              loop: start=0, step=1, limit=1
              $region187: #{custom-call.2} parent=185 // loop_pre_header
                _
              $region188: #{custom-call.2} parent=185 // loop_header
                %s990 = sphi 0, %s994
                %p991 = scmp.ge.s32.totalorder %s990, 1
                %s995 = sphi %s955, %s955
                %s996 = sphi %s981, %s981
              $region189: #{custom-call.2} parent=185 // loop_header_branch
                %993 = sbr.rel (%p991) target = $region193
              $region190: #{custom-call.2} parent=185 // loop_body
                %v997 = vld [vmem:[%s995] sm:$0x3]
                %998 = vst [vmem:[%s996] sm:$0x3] %v997
              $region191: #{custom-call.2} parent=185 // loop_footer
                %s994 = sadd.s32 1, %s990
              $region192: #{custom-call.2} parent=185 // loop_footer_branch
                %989 = sbr.rel target = $region188
              $region193: #{custom-call.2} parent=185 // loop_exit
                _
            $region186: #{custom-call.2} parent=177 // pred_fallthru
              _
          $region178: #{custom-call.2} parent=173 // pred_fallthru
            _
          %1012 = vnop
        $region174: #{custom-call.2} parent=155 // pred_fallthru
          _
        // Predicated region
        $region205: #{custom-call.2} parent=155 // pred_check
          %p1013 = pneg %p65
        $region206: #{custom-call.2} parent=155 // pred_check_branch
          %1015 = sbr.rel (%p1013) target = $region208
        $region207: #{custom-call.2} parent=155 // pred_region
          %s1016 = sshrl.u32 %s17, 3
          %s1017 = smul.addr %s1016, 2
          %s1018 = scalar_lea.vmem %s5, %s1017
          // Predicated region
          $region209: #{custom-call.2} parent=207 // pred_check
            _
          $region210: #{custom-call.2} parent=207 // pred_check_branch
            %1020 = sbr.rel (0) target = $region212
          $region211: #{custom-call.2} parent=207 // pred_region
            // Predicated region
            $region213: #{custom-call.2} parent=211 // pred_check
              _
            $region214: #{custom-call.2} parent=211 // pred_check_branch
              %1022 = sbr.rel target = $region216
            $region215: #{custom-call.2} parent=211 // pred_region
              // Predicated region
              $region228: #{custom-call.2} parent=215 // pred_check
                _
              $region229: #{custom-call.2} parent=215 // pred_check_branch
                %1037 = sbr.rel (0) target = $region231
              $region230: #{custom-call.2} parent=215 // pred_region
                loop: start=0, step=1, limit=1
                $region232: #{custom-call.2} parent=230 // loop_pre_header
                  _
                $region233: #{custom-call.2} parent=230 // loop_header
                  %s1040 = sphi 0, %s1044
                  %p1041 = scmp.ge.s32.totalorder %s1040, 1
                  %s1045 = sphi %s959, %s959
                  %s1046 = sphi %s1018, %s1018
                $region234: #{custom-call.2} parent=230 // loop_header_branch
                  %1043 = sbr.rel (%p1041) target = $region238
                $region235: #{custom-call.2} parent=230 // loop_body
                  %v1047 = vld [vmem:[%s1045] sm:$0x3]
                  %1048 = vst [vmem:[%s1046] sm:$0x3] %v1047
                $region236: #{custom-call.2} parent=230 // loop_footer
                  %s1044 = sadd.s32 1, %s1040
                $region237: #{custom-call.2} parent=230 // loop_footer_branch
                  %1039 = sbr.rel target = $region233
                $region238: #{custom-call.2} parent=230 // loop_exit
                  _
              $region231: #{custom-call.2} parent=215 // pred_fallthru
                _
            $region216: #{custom-call.2} parent=211 // pred_fallthru
              _
            // Predicated region
            $region217: #{custom-call.2} parent=211 // pred_check
              _
            $region218: #{custom-call.2} parent=211 // pred_check_branch
              %1024 = sbr.rel (0) target = $region220
            $region219: #{custom-call.2} parent=211 // pred_region
              loop: start=0, step=1, limit=1
              $region221: #{custom-call.2} parent=219 // loop_pre_header
                _
              $region222: #{custom-call.2} parent=219 // loop_header
                %s1027 = sphi 0, %s1031
                %p1028 = scmp.ge.s32.totalorder %s1027, 1
                %s1032 = sphi %s959, %s959
                %s1033 = sphi %s1018, %s1018
              $region223: #{custom-call.2} parent=219 // loop_header_branch
                %1030 = sbr.rel (%p1028) target = $region227
              $region224: #{custom-call.2} parent=219 // loop_body
                %v1034 = vld [vmem:[%s1032] sm:$0x3]
                %1035 = vst [vmem:[%s1033] sm:$0x3] %v1034
              $region225: #{custom-call.2} parent=219 // loop_footer
                %s1031 = sadd.s32 1, %s1027
              $region226: #{custom-call.2} parent=219 // loop_footer_branch
                %1026 = sbr.rel target = $region222
              $region227: #{custom-call.2} parent=219 // loop_exit
                _
            $region220: #{custom-call.2} parent=211 // pred_fallthru
              _
          $region212: #{custom-call.2} parent=207 // pred_fallthru
            _
          %1049 = vnop
        $region208: #{custom-call.2} parent=155 // pred_fallthru
          _
        %s1050 = smul.addr %s17, 8
        %s1051 = scalar_lea.vmem %s6, %s1050
        // Predicated region
        $region239: #{custom-call.2} parent=155 // pred_check
          _
        $region240: #{custom-call.2} parent=155 // pred_check_branch
          %1053 = sbr.rel (0) target = $region242
        $region241: #{custom-call.2} parent=155 // pred_region
          // Predicated region
          $region243: #{custom-call.2} parent=241 // pred_check
            _
          $region244: #{custom-call.2} parent=241 // pred_check_branch
            %1055 = sbr.rel (0) target = $region246
          $region245: #{custom-call.2} parent=241 // pred_region
            // Predicated region
            $region258: #{custom-call.2} parent=245 // pred_check
              _
            $region259: #{custom-call.2} parent=245 // pred_check_branch
              %1070 = sbr.rel (0) target = $region261
            $region260: #{custom-call.2} parent=245 // pred_region
              loop: start=0, step=1, limit=1
              $region262: #{custom-call.2} parent=260 // loop_pre_header
                _
              $region263: #{custom-call.2} parent=260 // loop_header
                %s1072 = sphi 0, %s1076
                %p1073 = scmp.ge.s32.totalorder %s1072, 1
                %s1077 = sphi %s963, %s963
                %s1078 = sphi %s1051, %s1051
              $region264: #{custom-call.2} parent=260 // loop_header_branch
                %1075 = sbr.rel (%p1073) target = $region268
              $region265: #{custom-call.2} parent=260 // loop_body
                %v1079 = vld [vmem:[%s1077] sm:$0xff]
                %1080 = vst [vmem:[%s1078] sm:$0xff] %v1079
              $region266: #{custom-call.2} parent=260 // loop_footer
                %s1076 = sadd.s32 1, %s1072
              $region267: #{custom-call.2} parent=260 // loop_footer_branch
                %1071 = sbr.rel target = $region263
              $region268: #{custom-call.2} parent=260 // loop_exit
                _
            $region261: #{custom-call.2} parent=245 // pred_fallthru
              _
            // Predicated region
            $region269: #{custom-call.2} parent=245 // pred_check
              _
            $region270: #{custom-call.2} parent=245 // pred_check_branch
              %1082 = sbr.rel target = $region272
            $region271: #{custom-call.2} parent=245 // pred_region
              _
            $region272: #{custom-call.2} parent=245 // pred_fallthru
              _
          $region246: #{custom-call.2} parent=241 // pred_fallthru
            _
          // Predicated region
          $region247: #{custom-call.2} parent=241 // pred_check
            _
          $region248: #{custom-call.2} parent=241 // pred_check_branch
            %1057 = sbr.rel target = $region250
          $region249: #{custom-call.2} parent=241 // pred_region
            loop: start=0, step=1, limit=1
            $region251: #{custom-call.2} parent=249 // loop_pre_header
              _
            $region252: #{custom-call.2} parent=249 // loop_header
              %s1060 = sphi 0, %s1064
              %p1061 = scmp.ge.s32.totalorder %s1060, 1
              %s1065 = sphi %s963, %s963
              %s1066 = sphi %s1051, %s1051
            $region253: #{custom-call.2} parent=249 // loop_header_branch
              %1063 = sbr.rel (%p1061) target = $region257
            $region254: #{custom-call.2} parent=249 // loop_body
              %v1067 = vld [vmem:[%s1065] sm:$0xff]
              %1068 = vst [vmem:[%s1066] sm:$0xff] %v1067
            $region255: #{custom-call.2} parent=249 // loop_footer
              %s1064 = sadd.s32 1, %s1060
            $region256: #{custom-call.2} parent=249 // loop_footer_branch
              %1059 = sbr.rel target = $region252
            $region257: #{custom-call.2} parent=249 // loop_exit
              _
          $region250: #{custom-call.2} parent=241 // pred_fallthru
            _
        $region242: #{custom-call.2} parent=155 // pred_fallthru
          _
        %1083 = vnop
        %s1084 = smul.addr %s17, 8
        %s1085 = scalar_lea.vmem %s7, %s1084
        // Predicated region
        $region273: #{custom-call.2} parent=155 // pred_check
          _
        $region274: #{custom-call.2} parent=155 // pred_check_branch
          %1087 = sbr.rel (0) target = $region276
        $region275: #{custom-call.2} parent=155 // pred_region
          // Predicated region
          $region277: #{custom-call.2} parent=275 // pred_check
            _
          $region278: #{custom-call.2} parent=275 // pred_check_branch
            %1089 = sbr.rel (0) target = $region280
          $region279: #{custom-call.2} parent=275 // pred_region
            // Predicated region
            $region292: #{custom-call.2} parent=279 // pred_check
              _
            $region293: #{custom-call.2} parent=279 // pred_check_branch
              %1104 = sbr.rel (0) target = $region295
            $region294: #{custom-call.2} parent=279 // pred_region
              loop: start=0, step=1, limit=1
              $region296: #{custom-call.2} parent=294 // loop_pre_header
                _
              $region297: #{custom-call.2} parent=294 // loop_header
                %s1106 = sphi 0, %s1110
                %p1107 = scmp.ge.s32.totalorder %s1106, 1
                %s1111 = sphi %s967, %s967
                %s1112 = sphi %s1085, %s1085
              $region298: #{custom-call.2} parent=294 // loop_header_branch
                %1109 = sbr.rel (%p1107) target = $region302
              $region299: #{custom-call.2} parent=294 // loop_body
                %v1113 = vld [vmem:[%s1111] sm:$0xff]
                %1114 = vst [vmem:[%s1112] sm:$0xff] %v1113
              $region300: #{custom-call.2} parent=294 // loop_footer
                %s1110 = sadd.s32 1, %s1106
              $region301: #{custom-call.2} parent=294 // loop_footer_branch
                %1105 = sbr.rel target = $region297
              $region302: #{custom-call.2} parent=294 // loop_exit
                _
            $region295: #{custom-call.2} parent=279 // pred_fallthru
              _
            // Predicated region
            $region303: #{custom-call.2} parent=279 // pred_check
              _
            $region304: #{custom-call.2} parent=279 // pred_check_branch
              %1116 = sbr.rel target = $region306
            $region305: #{custom-call.2} parent=279 // pred_region
              _
            $region306: #{custom-call.2} parent=279 // pred_fallthru
              _
          $region280: #{custom-call.2} parent=275 // pred_fallthru
            _
          // Predicated region
          $region281: #{custom-call.2} parent=275 // pred_check
            _
          $region282: #{custom-call.2} parent=275 // pred_check_branch
            %1091 = sbr.rel target = $region284
          $region283: #{custom-call.2} parent=275 // pred_region
            loop: start=0, step=1, limit=1
            $region285: #{custom-call.2} parent=283 // loop_pre_header
              _
            $region286: #{custom-call.2} parent=283 // loop_header
              %s1094 = sphi 0, %s1098
              %p1095 = scmp.ge.s32.totalorder %s1094, 1
              %s1099 = sphi %s967, %s967
              %s1100 = sphi %s1085, %s1085
            $region287: #{custom-call.2} parent=283 // loop_header_branch
              %1097 = sbr.rel (%p1095) target = $region291
            $region288: #{custom-call.2} parent=283 // loop_body
              %v1101 = vld [vmem:[%s1099] sm:$0xff]
              %1102 = vst [vmem:[%s1100] sm:$0xff] %v1101
            $region289: #{custom-call.2} parent=283 // loop_footer
              %s1098 = sadd.s32 1, %s1094
            $region290: #{custom-call.2} parent=283 // loop_footer_branch
              %1093 = sbr.rel target = $region286
            $region291: #{custom-call.2} parent=283 // loop_exit
              _
          $region284: #{custom-call.2} parent=275 // pred_fallthru
            _
        $region276: #{custom-call.2} parent=155 // pred_fallthru
          _
        %1117 = vnop
        %s1118 = smul.addr %s17, 8
        %s1119 = scalar_lea.vmem %s8, %s1118
        // Predicated region
        $region307: #{custom-call.2} parent=155 // pred_check
          _
        $region308: #{custom-call.2} parent=155 // pred_check_branch
          %1121 = sbr.rel (0) target = $region310
        $region309: #{custom-call.2} parent=155 // pred_region
          // Predicated region
          $region311: #{custom-call.2} parent=309 // pred_check
            _
          $region312: #{custom-call.2} parent=309 // pred_check_branch
            %1123 = sbr.rel (0) target = $region314
          $region313: #{custom-call.2} parent=309 // pred_region
            // Predicated region
            $region326: #{custom-call.2} parent=313 // pred_check
              _
            $region327: #{custom-call.2} parent=313 // pred_check_branch
              %1138 = sbr.rel (0) target = $region329
            $region328: #{custom-call.2} parent=313 // pred_region
              loop: start=0, step=1, limit=1
              $region330: #{custom-call.2} parent=328 // loop_pre_header
                _
              $region331: #{custom-call.2} parent=328 // loop_header
                %s1140 = sphi 0, %s1144
                %p1141 = scmp.ge.s32.totalorder %s1140, 1
                %s1145 = sphi %s971, %s971
                %s1146 = sphi %s1119, %s1119
              $region332: #{custom-call.2} parent=328 // loop_header_branch
                %1143 = sbr.rel (%p1141) target = $region336
              $region333: #{custom-call.2} parent=328 // loop_body
                %v1147 = vld [vmem:[%s1145] sm:$0xff]
                %1148 = vst [vmem:[%s1146] sm:$0xff] %v1147
              $region334: #{custom-call.2} parent=328 // loop_footer
                %s1144 = sadd.s32 1, %s1140
              $region335: #{custom-call.2} parent=328 // loop_footer_branch
                %1139 = sbr.rel target = $region331
              $region336: #{custom-call.2} parent=328 // loop_exit
                _
            $region329: #{custom-call.2} parent=313 // pred_fallthru
              _
            // Predicated region
            $region337: #{custom-call.2} parent=313 // pred_check
              _
            $region338: #{custom-call.2} parent=313 // pred_check_branch
              %1150 = sbr.rel target = $region340
            $region339: #{custom-call.2} parent=313 // pred_region
              _
            $region340: #{custom-call.2} parent=313 // pred_fallthru
              _
          $region314: #{custom-call.2} parent=309 // pred_fallthru
            _
          // Predicated region
          $region315: #{custom-call.2} parent=309 // pred_check
            _
          $region316: #{custom-call.2} parent=309 // pred_check_branch
            %1125 = sbr.rel target = $region318
          $region317: #{custom-call.2} parent=309 // pred_region
            loop: start=0, step=1, limit=1
            $region319: #{custom-call.2} parent=317 // loop_pre_header
              _
            $region320: #{custom-call.2} parent=317 // loop_header
              %s1128 = sphi 0, %s1132
              %p1129 = scmp.ge.s32.totalorder %s1128, 1
              %s1133 = sphi %s971, %s971
              %s1134 = sphi %s1119, %s1119
            $region321: #{custom-call.2} parent=317 // loop_header_branch
              %1131 = sbr.rel (%p1129) target = $region325
            $region322: #{custom-call.2} parent=317 // loop_body
              %v1135 = vld [vmem:[%s1133] sm:$0xff]
              %1136 = vst [vmem:[%s1134] sm:$0xff] %v1135
            $region323: #{custom-call.2} parent=317 // loop_footer
              %s1132 = sadd.s32 1, %s1128
            $region324: #{custom-call.2} parent=317 // loop_footer_branch
              %1127 = sbr.rel target = $region320
            $region325: #{custom-call.2} parent=317 // loop_exit
              _
          $region318: #{custom-call.2} parent=309 // pred_fallthru
            _
        $region310: #{custom-call.2} parent=155 // pred_fallthru
          _
        %1151 = vnop
        %s1152 = smul.addr %s17, 8
        %s1153 = scalar_lea.vmem %s9, %s1152
        // Predicated region
        $region341: #{custom-call.2} parent=155 // pred_check
          _
        $region342: #{custom-call.2} parent=155 // pred_check_branch
          %1155 = sbr.rel (0) target = $region344
        $region343: #{custom-call.2} parent=155 // pred_region
          // Predicated region
          $region345: #{custom-call.2} parent=343 // pred_check
            _
          $region346: #{custom-call.2} parent=343 // pred_check_branch
            %1157 = sbr.rel (0) target = $region348
          $region347: #{custom-call.2} parent=343 // pred_region
            // Predicated region
            $region360: #{custom-call.2} parent=347 // pred_check
              _
            $region361: #{custom-call.2} parent=347 // pred_check_branch
              %1172 = sbr.rel (0) target = $region363
            $region362: #{custom-call.2} parent=347 // pred_region
              loop: start=0, step=1, limit=1
              $region364: #{custom-call.2} parent=362 // loop_pre_header
                _
              $region365: #{custom-call.2} parent=362 // loop_header
                %s1174 = sphi 0, %s1178
                %p1175 = scmp.ge.s32.totalorder %s1174, 1
                %s1179 = sphi %s975, %s975
                %s1180 = sphi %s1153, %s1153
              $region366: #{custom-call.2} parent=362 // loop_header_branch
                %1177 = sbr.rel (%p1175) target = $region370
              $region367: #{custom-call.2} parent=362 // loop_body
                %v1181 = vld [vmem:[%s1179] sm:$0xff]
                %1182 = vst [vmem:[%s1180] sm:$0xff] %v1181
              $region368: #{custom-call.2} parent=362 // loop_footer
                %s1178 = sadd.s32 1, %s1174
              $region369: #{custom-call.2} parent=362 // loop_footer_branch
                %1173 = sbr.rel target = $region365
              $region370: #{custom-call.2} parent=362 // loop_exit
                _
            $region363: #{custom-call.2} parent=347 // pred_fallthru
              _
            // Predicated region
            $region371: #{custom-call.2} parent=347 // pred_check
              _
            $region372: #{custom-call.2} parent=347 // pred_check_branch
              %1184 = sbr.rel target = $region374
            $region373: #{custom-call.2} parent=347 // pred_region
              _
            $region374: #{custom-call.2} parent=347 // pred_fallthru
              _
          $region348: #{custom-call.2} parent=343 // pred_fallthru
            _
          // Predicated region
          $region349: #{custom-call.2} parent=343 // pred_check
            _
          $region350: #{custom-call.2} parent=343 // pred_check_branch
            %1159 = sbr.rel target = $region352
          $region351: #{custom-call.2} parent=343 // pred_region
            loop: start=0, step=1, limit=1
            $region353: #{custom-call.2} parent=351 // loop_pre_header
              _
            $region354: #{custom-call.2} parent=351 // loop_header
              %s1162 = sphi 0, %s1166
              %p1163 = scmp.ge.s32.totalorder %s1162, 1
              %s1167 = sphi %s975, %s975
              %s1168 = sphi %s1153, %s1153
            $region355: #{custom-call.2} parent=351 // loop_header_branch
              %1165 = sbr.rel (%p1163) target = $region359
            $region356: #{custom-call.2} parent=351 // loop_body
              %v1169 = vld [vmem:[%s1167] sm:$0xff]
              %1170 = vst [vmem:[%s1168] sm:$0xff] %v1169
            $region357: #{custom-call.2} parent=351 // loop_footer
              %s1166 = sadd.s32 1, %s1162
            $region358: #{custom-call.2} parent=351 // loop_footer_branch
              %1161 = sbr.rel target = $region354
            $region359: #{custom-call.2} parent=351 // loop_exit
              _
          $region352: #{custom-call.2} parent=343 // pred_fallthru
            _
        $region344: #{custom-call.2} parent=155 // pred_fallthru
          _
        %1185 = vnop
      $region156: #{custom-call.2} parent=5 // pred_fallthru
        _
      %p1186 = scmp.le.s32.totalorder 2, %s12
      // Predicated region
      $region375: #{custom-call.2} parent=5 // pred_check
        %p1187 = pneg %p1186
      $region376: #{custom-call.2} parent=5 // pred_check_branch
        %1189 = sbr.rel (%p1187) target = $region378
      $region377: #{custom-call.2} parent=5 // pred_region
        %s1190 = ssub.s32 %s12, 2
        // Predicated region
        $region379: #{custom-call.2} parent=377 // pred_check
          %p1191 = pneg %p43
        $region380: #{custom-call.2} parent=377 // pred_check_branch
          %1193 = sbr.rel (%p1191) target = $region382
        $region381: #{custom-call.2} parent=377 // pred_region
          %s1194 = sand.u32 %s28, 1
          %s1195 = sand.u32 %s28, 1
          %s1196 = smul.addr %s1195, 2
          %s1197 = scalar_lea.vmem [#allocation5], %s1196
        $region382: #{custom-call.2} parent=377 // pred_fallthru
          _
        // Predicated region
        $region383: #{custom-call.2} parent=377 // pred_check
          %p1198 = pneg %p71
        $region384: #{custom-call.2} parent=377 // pred_check_branch
          %1200 = sbr.rel (%p1198) target = $region386
        $region385: #{custom-call.2} parent=377 // pred_region
          %s1201 = sand.u32 %s56, 1
          %s1202 = sand.u32 %s56, 1
          %s1203 = smul.addr %s1202, 2
          %s1204 = scalar_lea.vmem [#allocation7], %s1203
        $region386: #{custom-call.2} parent=377 // pred_fallthru
          _
        %s1205 = sand.u32 %s18, 1
        %s1206 = sand.u32 %s18, 1
        %s1207 = smul.addr %s1206, 8
        %s1208 = scalar_lea.vmem [#allocation8], %s1207
        %s1209 = sand.u32 %s18, 1
        %s1210 = sand.u32 %s18, 1
        %s1211 = smul.addr %s1210, 8
        %s1212 = scalar_lea.vmem [#allocation9], %s1211
        %s1213 = sand.u32 %s18, 1
        %s1214 = sand.u32 %s18, 1
        %s1215 = smul.addr %s1214, 8
        %s1216 = scalar_lea.vmem [#allocation10], %s1215
        %s1217 = sand.u32 %s18, 1
        %s1218 = sand.u32 %s18, 1
        %s1219 = smul.addr %s1218, 8
        %s1220 = scalar_lea.vmem [#allocation11], %s1219
      $region378: #{custom-call.2} parent=5 // pred_fallthru
        _
    $region6: #{custom-call.2} parent=1 // loop_footer
      %s16 = sadd.s32 1, %s12
    $region7: #{custom-call.2} parent=1 // loop_footer_branch
      %11 = sbr.rel target = $region3
    $region8: #{custom-call.2} parent=1 // loop_exit
      _

// kernel: _lambda_.1
$region0: #{_lambda_.1}
  #allocation0 [shape = 'u32[]', space=smem, size = 0x4, offset = 0x4, fixed_abs, tag = 'smem constant byte address 0x4 - core index']
  #allocation1 [shape = 'u32[144,128]{1,0:T(1,128)}', space=vmem, size = 0x12000, scoped, tag = 'internal scratch']
  %s0 = inlined_call_operand.vmem [shape: f32[2,16,16], index: 0, kind: input, shape index: {}]
  %s1 = inlined_call_operand.vmem [shape: f32[2,16,16], index: 1, kind: input, shape index: {}]
  %s2 = inlined_call_operand.vmem [shape: f32[16,32], index: 2, kind: input, shape index: {}]
  %s3 = inlined_call_operand.vmem [shape: f32[5,32,32], index: 3, kind: input, shape index: {}]
  %s4 = inlined_call_operand.vmem [shape: f32[6,1,32], index: 4, kind: input, shape index: {}]
  %s5 = inlined_call_operand.vmem [shape: f32[2,1,32], index: 5, kind: input, shape index: {}]
  %s6 = inlined_call_operand.vmem [shape: f32[2,1,1], index: 6, kind: input, shape index: {}]
  %s7 = inlined_call_operand.vmem [shape: f32[2,32,32], index: 7, kind: input, shape index: {}]
  %s8 = inlined_call_operand.vmem [shape: f32[1,32], index: 8, kind: input, shape index: {}]
  %s9 = inlined_call_operand.vmem [shape: f32[32,32], index: 9, kind: input, shape index: {}]
  %s10 = inlined_call_operand.vmem [shape: f32[2,32,32], index: 10, kind: input, shape index: {}]
  %s11 = inlined_call_operand.vmem [shape: f32[2,32,32], index: 11, kind: input, shape index: {}]
  %s12 = inlined_call_operand.vmem [shape: f32[2,32,128], index: 12, kind: output, shape index: {}]
  %s13 = sld [smem:[#allocation0]]
  $region81: #{_lambda_.1} parent=0
    _
  %s15 = ssub.s32 1, %s13
  %s16 = scalar_select 0, %s15, %s13
  loop: start=0, step=1, limit=4
  $region2: #{_lambda_.1} parent=0 // loop_pre_header
    _
  $region3: #{_lambda_.1} parent=0 // loop_header
    %s18 = sphi 0, %s22
    %p19 = scmp.ge.s32.totalorder %s18, 4
    %s28 = sphi 0, %s30
    %s31 = sphi 0, %s28
    %s32 = sphi 0, %s31
    %s48 = sphi 0, %s32
    %s54 = sphi 0, %s56
    %s57 = sphi 0, %s54
    %s58 = sphi 0, %s57
    %s74 = sphi 0, %s58
    %s78 = sphi 0, %s78
    %s80 = sphi 0, %s78
    %s81 = sphi 0, %s80
    %s95 = sphi 0, %s81
    %s99 = sphi 0, %s99
    %s101 = sphi 0, %s99
    %s102 = sphi 0, %s101
    %s116 = sphi 0, %s102
    %s120 = sphi 0, %s120
    %s122 = sphi 0, %s120
    %s123 = sphi 0, %s122
    %s137 = sphi 0, %s123
    %s141 = sphi 0, %s141
    %s143 = sphi 0, %s141
    %s144 = sphi 0, %s143
    %s158 = sphi 0, %s144
    %s162 = sphi 0, %s162
    %s164 = sphi 0, %s162
    %s165 = sphi 0, %s164
    %s179 = sphi 0, %s165
    %s183 = sphi 0, %s183
    %s185 = sphi 0, %s183
    %s186 = sphi 0, %s185
    %s200 = sphi 0, %s186
    %s204 = sphi 0, %s204
    %s206 = sphi 0, %s204
    %s207 = sphi 0, %s206
    %s221 = sphi 0, %s207
    %s225 = sphi 0, %s225
    %s227 = sphi 0, %s225
    %s228 = sphi 0, %s227
    %s242 = sphi 0, %s228
    %s246 = sphi 0, %s246
    %s248 = sphi 0, %s246
    %s249 = sphi 0, %s248
    %s263 = sphi 0, %s249
    %s267 = sphi 0, %s267
    %s269 = sphi 0, %s267
    %s270 = sphi 0, %s269
    %s284 = sphi 0, %s270
    %s290 = sphi 0, %s292
    %s293 = sphi 0, %s290
    %s294 = sphi 0, %s293
    %s310 = sphi 0, %s294
  $region4: #{_lambda_.1} parent=0 // loop_header_branch
    %21 = sbr.rel (%p19) target = $region8
  $region5: #{_lambda_.1} parent=0 // loop_body
    %s23 = ssub.s32 %s18, 1
    %s24 = ssub.s32 %s18, 2
    %s25 = sadd.s32 %s18, 1
    %s26 = ssub.s32 %s18, %s25
    %p27 = scmp.eq.s32.totalorder %s26, 0
    %s29 = sadd.s32 %s28, 1
    %s30 = scalar_select %p27, %s28, %s29
    %p33 = pneg %p27
    %p34 = scmp.eq.s32.totalorder %s18, 1
    %p35 = por %p33, %p34
    %p36 = scmp.ne.s32.totalorder %s28, %s31
    %p37 = scmp.eq.s32.totalorder %s18, 0
    %p38 = por %p36, %p37
    %p39 = scmp.ne.s32.totalorder %s28, %s31
    %p40 = scmp.eq.s32.totalorder %s23, 1
    %p41 = por %p39, %p40
    %p42 = scmp.ne.s32.totalorder %s31, %s32
    %p43 = scmp.eq.s32.totalorder %s23, 0
    %p44 = por %p42, %p43
    %p45 = scmp.ne.s32.totalorder %s31, %s32
    %p46 = scmp.eq.s32.totalorder %s24, 1
    %p47 = por %p45, %p46
    %p49 = scmp.ne.s32.totalorder %s32, %s48
    %p50 = scmp.eq.s32.totalorder %s24, 0
    %p51 = por %p49, %p50
    %s52 = ssub.s32 %s18, %s25
    %p53 = scmp.eq.s32.totalorder %s52, 0
    %s55 = sadd.s32 %s54, 1
    %s56 = scalar_select %p53, %s54, %s55
    %p59 = pneg %p53
    %p60 = scmp.eq.s32.totalorder %s18, 1
    %p61 = por %p59, %p60
    %p62 = scmp.ne.s32.totalorder %s54, %s57
    %p63 = scmp.eq.s32.totalorder %s18, 0
    %p64 = por %p62, %p63
    %p65 = scmp.ne.s32.totalorder %s54, %s57
    %p66 = scmp.eq.s32.totalorder %s23, 1
    %p67 = por %p65, %p66
    %p68 = scmp.ne.s32.totalorder %s57, %s58
    %p69 = scmp.eq.s32.totalorder %s23, 0
    %p70 = por %p68, %p69
    %p71 = scmp.ne.s32.totalorder %s57, %s58
    %p72 = scmp.eq.s32.totalorder %s24, 1
    %p73 = por %p71, %p72
    %p75 = scmp.ne.s32.totalorder %s58, %s74
    %p76 = scmp.eq.s32.totalorder %s24, 0
    %p77 = por %p75, %p76
    %s79 = sadd.s32 %s78, 1
    %p82 = scmp.eq.s32.totalorder %s18, 1
    %p83 = scmp.ne.s32.totalorder %s78, %s80
    %p84 = scmp.eq.s32.totalorder %s18, 0
    %p85 = por %p83, %p84
    %p86 = scmp.ne.s32.totalorder %s78, %s80
    %p87 = scmp.eq.s32.totalorder %s23, 1
    %p88 = por %p86, %p87
    %p89 = scmp.ne.s32.totalorder %s80, %s81
    %p90 = scmp.eq.s32.totalorder %s23, 0
    %p91 = por %p89, %p90
    %p92 = scmp.ne.s32.totalorder %s80, %s81
    %p93 = scmp.eq.s32.totalorder %s24, 1
    %p94 = por %p92, %p93
    %p96 = scmp.ne.s32.totalorder %s81, %s95
    %p97 = scmp.eq.s32.totalorder %s24, 0
    %p98 = por %p96, %p97
    %s100 = sadd.s32 %s99, 1
    %p103 = scmp.eq.s32.totalorder %s18, 1
    %p104 = scmp.ne.s32.totalorder %s99, %s101
    %p105 = scmp.eq.s32.totalorder %s18, 0
    %p106 = por %p104, %p105
    %p107 = scmp.ne.s32.totalorder %s99, %s101
    %p108 = scmp.eq.s32.totalorder %s23, 1
    %p109 = por %p107, %p108
    %p110 = scmp.ne.s32.totalorder %s101, %s102
    %p111 = scmp.eq.s32.totalorder %s23, 0
    %p112 = por %p110, %p111
    %p113 = scmp.ne.s32.totalorder %s101, %s102
    %p114 = scmp.eq.s32.totalorder %s24, 1
    %p115 = por %p113, %p114
    %p117 = scmp.ne.s32.totalorder %s102, %s116
    %p118 = scmp.eq.s32.totalorder %s24, 0
    %p119 = por %p117, %p118
    %s121 = sadd.s32 %s120, 1
    %p124 = scmp.eq.s32.totalorder %s18, 1
    %p125 = scmp.ne.s32.totalorder %s120, %s122
    %p126 = scmp.eq.s32.totalorder %s18, 0
    %p127 = por %p125, %p126
    %p128 = scmp.ne.s32.totalorder %s120, %s122
    %p129 = scmp.eq.s32.totalorder %s23, 1
    %p130 = por %p128, %p129
    %p131 = scmp.ne.s32.totalorder %s122, %s123
    %p132 = scmp.eq.s32.totalorder %s23, 0
    %p133 = por %p131, %p132
    %p134 = scmp.ne.s32.totalorder %s122, %s123
    %p135 = scmp.eq.s32.totalorder %s24, 1
    %p136 = por %p134, %p135
    %p138 = scmp.ne.s32.totalorder %s123, %s137
    %p139 = scmp.eq.s32.totalorder %s24, 0
    %p140 = por %p138, %p139
    %s142 = sadd.s32 %s141, 1
    %p145 = scmp.eq.s32.totalorder %s18, 1
    %p146 = scmp.ne.s32.totalorder %s141, %s143
    %p147 = scmp.eq.s32.totalorder %s18, 0
    %p148 = por %p146, %p147
    %p149 = scmp.ne.s32.totalorder %s141, %s143
    %p150 = scmp.eq.s32.totalorder %s23, 1
    %p151 = por %p149, %p150
    %p152 = scmp.ne.s32.totalorder %s143, %s144
    %p153 = scmp.eq.s32.totalorder %s23, 0
    %p154 = por %p152, %p153
    %p155 = scmp.ne.s32.totalorder %s143, %s144
    %p156 = scmp.eq.s32.totalorder %s24, 1
    %p157 = por %p155, %p156
    %p159 = scmp.ne.s32.totalorder %s144, %s158
    %p160 = scmp.eq.s32.totalorder %s24, 0
    %p161 = por %p159, %p160
    %s163 = sadd.s32 %s162, 1
    %p166 = scmp.eq.s32.totalorder %s18, 1
    %p167 = scmp.ne.s32.totalorder %s162, %s164
    %p168 = scmp.eq.s32.totalorder %s18, 0
    %p169 = por %p167, %p168
    %p170 = scmp.ne.s32.totalorder %s162, %s164
    %p171 = scmp.eq.s32.totalorder %s23, 1
    %p172 = por %p170, %p171
    %p173 = scmp.ne.s32.totalorder %s164, %s165
    %p174 = scmp.eq.s32.totalorder %s23, 0
    %p175 = por %p173, %p174
    %p176 = scmp.ne.s32.totalorder %s164, %s165
    %p177 = scmp.eq.s32.totalorder %s24, 1
    %p178 = por %p176, %p177
    %p180 = scmp.ne.s32.totalorder %s165, %s179
    %p181 = scmp.eq.s32.totalorder %s24, 0
    %p182 = por %p180, %p181
    %s184 = sadd.s32 %s183, 1
    %p187 = scmp.eq.s32.totalorder %s18, 1
    %p188 = scmp.ne.s32.totalorder %s183, %s185
    %p189 = scmp.eq.s32.totalorder %s18, 0
    %p190 = por %p188, %p189
    %p191 = scmp.ne.s32.totalorder %s183, %s185
    %p192 = scmp.eq.s32.totalorder %s23, 1
    %p193 = por %p191, %p192
    %p194 = scmp.ne.s32.totalorder %s185, %s186
    %p195 = scmp.eq.s32.totalorder %s23, 0
    %p196 = por %p194, %p195
    %p197 = scmp.ne.s32.totalorder %s185, %s186
    %p198 = scmp.eq.s32.totalorder %s24, 1
    %p199 = por %p197, %p198
    %p201 = scmp.ne.s32.totalorder %s186, %s200
    %p202 = scmp.eq.s32.totalorder %s24, 0
    %p203 = por %p201, %p202
    %s205 = sadd.s32 %s204, 1
    %p208 = scmp.eq.s32.totalorder %s18, 1
    %p209 = scmp.ne.s32.totalorder %s204, %s206
    %p210 = scmp.eq.s32.totalorder %s18, 0
    %p211 = por %p209, %p210
    %p212 = scmp.ne.s32.totalorder %s204, %s206
    %p213 = scmp.eq.s32.totalorder %s23, 1
    %p214 = por %p212, %p213
    %p215 = scmp.ne.s32.totalorder %s206, %s207
    %p216 = scmp.eq.s32.totalorder %s23, 0
    %p217 = por %p215, %p216
    %p218 = scmp.ne.s32.totalorder %s206, %s207
    %p219 = scmp.eq.s32.totalorder %s24, 1
    %p220 = por %p218, %p219
    %p222 = scmp.ne.s32.totalorder %s207, %s221
    %p223 = scmp.eq.s32.totalorder %s24, 0
    %p224 = por %p222, %p223
    %s226 = sadd.s32 %s225, 1
    %p229 = scmp.eq.s32.totalorder %s18, 1
    %p230 = scmp.ne.s32.totalorder %s225, %s227
    %p231 = scmp.eq.s32.totalorder %s18, 0
    %p232 = por %p230, %p231
    %p233 = scmp.ne.s32.totalorder %s225, %s227
    %p234 = scmp.eq.s32.totalorder %s23, 1
    %p235 = por %p233, %p234
    %p236 = scmp.ne.s32.totalorder %s227, %s228
    %p237 = scmp.eq.s32.totalorder %s23, 0
    %p238 = por %p236, %p237
    %p239 = scmp.ne.s32.totalorder %s227, %s228
    %p240 = scmp.eq.s32.totalorder %s24, 1
    %p241 = por %p239, %p240
    %p243 = scmp.ne.s32.totalorder %s228, %s242
    %p244 = scmp.eq.s32.totalorder %s24, 0
    %p245 = por %p243, %p244
    %s247 = sadd.s32 %s246, 1
    %p250 = scmp.eq.s32.totalorder %s18, 1
    %p251 = scmp.ne.s32.totalorder %s246, %s248
    %p252 = scmp.eq.s32.totalorder %s18, 0
    %p253 = por %p251, %p252
    %p254 = scmp.ne.s32.totalorder %s246, %s248
    %p255 = scmp.eq.s32.totalorder %s23, 1
    %p256 = por %p254, %p255
    %p257 = scmp.ne.s32.totalorder %s248, %s249
    %p258 = scmp.eq.s32.totalorder %s23, 0
    %p259 = por %p257, %p258
    %p260 = scmp.ne.s32.totalorder %s248, %s249
    %p261 = scmp.eq.s32.totalorder %s24, 1
    %p262 = por %p260, %p261
    %p264 = scmp.ne.s32.totalorder %s249, %s263
    %p265 = scmp.eq.s32.totalorder %s24, 0
    %p266 = por %p264, %p265
    %s268 = sadd.s32 %s267, 1
    %p271 = scmp.eq.s32.totalorder %s18, 1
    %p272 = scmp.ne.s32.totalorder %s267, %s269
    %p273 = scmp.eq.s32.totalorder %s18, 0
    %p274 = por %p272, %p273
    %p275 = scmp.ne.s32.totalorder %s267, %s269
    %p276 = scmp.eq.s32.totalorder %s23, 1
    %p277 = por %p275, %p276
    %p278 = scmp.ne.s32.totalorder %s269, %s270
    %p279 = scmp.eq.s32.totalorder %s23, 0
    %p280 = por %p278, %p279
    %p281 = scmp.ne.s32.totalorder %s269, %s270
    %p282 = scmp.eq.s32.totalorder %s24, 1
    %p283 = por %p281, %p282
    %p285 = scmp.ne.s32.totalorder %s270, %s284
    %p286 = scmp.eq.s32.totalorder %s24, 0
    %p287 = por %p285, %p286
    %s288 = ssub.s32 %s18, %s25
    %p289 = scmp.eq.s32.totalorder %s288, 0
    %s291 = sadd.s32 %s290, 1
    %s292 = scalar_select %p289, %s290, %s291
    %p295 = pneg %p289
    %p296 = scmp.eq.s32.totalorder %s18, 1
    %p297 = por %p295, %p296
    %p298 = scmp.ne.s32.totalorder %s290, %s293
    %p299 = scmp.eq.s32.totalorder %s18, 0
    %p300 = por %p298, %p299
    %p301 = scmp.ne.s32.totalorder %s290, %s293
    %p302 = scmp.eq.s32.totalorder %s23, 1
    %p303 = por %p301, %p302
    %p304 = scmp.ne.s32.totalorder %s293, %s294
    %p305 = scmp.eq.s32.totalorder %s23, 0
    %p306 = por %p304, %p305
    %p307 = scmp.ne.s32.totalorder %s293, %s294
    %p308 = scmp.eq.s32.totalorder %s24, 1
    %p309 = por %p307, %p308
    %p311 = scmp.ne.s32.totalorder %s294, %s310
    %p312 = scmp.eq.s32.totalorder %s24, 0
    %p313 = por %p311, %p312
    %p314 = scmp.le.s32.totalorder 1, %s18
    %p315 = scmp.lt.s32.totalorder %s18, 3
    %p316 = pnand %p314, %p315
    %p317 = pneg %p316
    // Predicated region
    $region9: #{_lambda_.1} parent=5 // pred_check
      _
    $region10: #{_lambda_.1} parent=5 // pred_check_branch
      %319 = sbr.rel (%p316) target = $region12
    $region11: #{_lambda_.1} parent=5 // pred_region
      %s320 = ssub.s32 %s18, 1
      // Predicated region
      $region13: #{_lambda_.1} parent=11 // pred_check
        %p321 = pneg %p91
      $region14: #{_lambda_.1} parent=11 // pred_check_branch
        %323 = sbr.rel (%p321) target = $region16
      $region15: #{_lambda_.1} parent=11 // pred_region
        _
      $region16: #{_lambda_.1} parent=11 // pred_fallthru
        _
      // Predicated region
      $region17: #{_lambda_.1} parent=11 // pred_check
        %p324 = pneg %p112
      $region18: #{_lambda_.1} parent=11 // pred_check_branch
        %326 = sbr.rel (%p324) target = $region20
      $region19: #{_lambda_.1} parent=11 // pred_region
        _
      $region20: #{_lambda_.1} parent=11 // pred_fallthru
        _
      // Predicated region
      $region21: #{_lambda_.1} parent=11 // pred_check
        %p327 = pneg %p133
      $region22: #{_lambda_.1} parent=11 // pred_check_branch
        %329 = sbr.rel (%p327) target = $region24
      $region23: #{_lambda_.1} parent=11 // pred_region
        _
      $region24: #{_lambda_.1} parent=11 // pred_fallthru
        _
      // Predicated region
      $region25: #{_lambda_.1} parent=11 // pred_check
        %p330 = pneg %p154
      $region26: #{_lambda_.1} parent=11 // pred_check_branch
        %332 = sbr.rel (%p330) target = $region28
      $region27: #{_lambda_.1} parent=11 // pred_region
        _
      $region28: #{_lambda_.1} parent=11 // pred_fallthru
        _
      // Predicated region
      $region29: #{_lambda_.1} parent=11 // pred_check
        %p333 = pneg %p175
      $region30: #{_lambda_.1} parent=11 // pred_check_branch
        %335 = sbr.rel (%p333) target = $region32
      $region31: #{_lambda_.1} parent=11 // pred_region
        _
      $region32: #{_lambda_.1} parent=11 // pred_fallthru
        _
      // Predicated region
      $region33: #{_lambda_.1} parent=11 // pred_check
        %p336 = pneg %p196
      $region34: #{_lambda_.1} parent=11 // pred_check_branch
        %338 = sbr.rel (%p336) target = $region36
      $region35: #{_lambda_.1} parent=11 // pred_region
        _
      $region36: #{_lambda_.1} parent=11 // pred_fallthru
        _
      // Predicated region
      $region37: #{_lambda_.1} parent=11 // pred_check
        %p339 = pneg %p217
      $region38: #{_lambda_.1} parent=11 // pred_check_branch
        %341 = sbr.rel (%p339) target = $region40
      $region39: #{_lambda_.1} parent=11 // pred_region
        _
      $region40: #{_lambda_.1} parent=11 // pred_fallthru
        _
      // Predicated region
      $region41: #{_lambda_.1} parent=11 // pred_check
        %p342 = pneg %p238
      $region42: #{_lambda_.1} parent=11 // pred_check_branch
        %344 = sbr.rel (%p342) target = $region44
      $region43: #{_lambda_.1} parent=11 // pred_region
        _
      $region44: #{_lambda_.1} parent=11 // pred_fallthru
        _
      // Predicated region
      $region45: #{_lambda_.1} parent=11 // pred_check
        %p345 = pneg %p259
      $region46: #{_lambda_.1} parent=11 // pred_check_branch
        %347 = sbr.rel (%p345) target = $region48
      $region47: #{_lambda_.1} parent=11 // pred_region
        _
      $region48: #{_lambda_.1} parent=11 // pred_fallthru
        _
      // Predicated region
      $region49: #{_lambda_.1} parent=11 // pred_check
        %p348 = pneg %p280
      $region50: #{_lambda_.1} parent=11 // pred_check_branch
        %350 = sbr.rel (%p348) target = $region52
      $region51: #{_lambda_.1} parent=11 // pred_region
        _
      $region52: #{_lambda_.1} parent=11 // pred_fallthru
        _
    $region12: #{_lambda_.1} parent=5 // pred_fallthru
      _
    %p351 = scmp.lt.s32.totalorder %s18, 2
    // Predicated region
    $region53: #{_lambda_.1} parent=5 // pred_check
      %p352 = pneg %p351
    $region54: #{_lambda_.1} parent=5 // pred_check_branch
      %354 = sbr.rel (%p352) target = $region56
    $region55: #{_lambda_.1} parent=5 // pred_region
      // Predicated region
      $region57: #{_lambda_.1} parent=55 // pred_check
        %p355 = pneg %p38
      $region58: #{_lambda_.1} parent=55 // pred_check_branch
        %357 = sbr.rel (%p355) target = $region60
      $region59: #{_lambda_.1} parent=55 // pred_region
        %p358 = scmp.lt.s32.totalorder %s18, 1
        %s359 = scalar_select %p358, %s18, 1
        %s360 = smul.addr %s359, 2
        %s361 = smul.addr %s360, 8
        %s362 = scalar_lea.vmem %s0, %s361
      $region60: #{_lambda_.1} parent=55 // pred_fallthru
        _
      // Predicated region
      $region61: #{_lambda_.1} parent=55 // pred_check
        %p363 = pneg %p64
      $region62: #{_lambda_.1} parent=55 // pred_check_branch
        %365 = sbr.rel (%p363) target = $region64
      $region63: #{_lambda_.1} parent=55 // pred_region
        %p366 = scmp.lt.s32.totalorder %s18, 1
        %s367 = scalar_select %p366, %s18, 1
        %s368 = smul.addr %s367, 2
        %s369 = smul.addr %s368, 8
        %s370 = scalar_lea.vmem %s1, %s369
      $region64: #{_lambda_.1} parent=55 // pred_fallthru
        _
    $region56: #{_lambda_.1} parent=5 // pred_fallthru
      _
    %p371 = scmp.le.s32.totalorder 1, %s18
    %p372 = scmp.lt.s32.totalorder %s18, 3
    %p373 = pnand %p371, %p372
    %p374 = pneg %p373
    // Predicated region
    $region65: #{_lambda_.1} parent=5 // pred_check
      _
    $region66: #{_lambda_.1} parent=5 // pred_check_branch
      %376 = sbr.rel (%p373) target = $region68
    $region67: #{_lambda_.1} parent=5 // pred_region
      %s377 = ssub.s32 %s18, 1
      %p378 = scmp.lt.s32.totalorder %s23, 1
      %s379 = scalar_select %p378, %s23, 1
      %s380 = smul.addr %s379, 2
      %s381 = smul.addr %s380, 8
      %s382 = scalar_lea.vmem %s0, %s381
      %p383 = pneg %p44
      %p384 = pneg %p41
      %p385 = scmp.lt.s32.totalorder %s23, 1
      %s386 = scalar_select %p385, %s23, 1
      %s387 = smul.addr %s386, 2
      %s388 = smul.addr %s387, 8
      %s389 = scalar_lea.vmem %s1, %s388
      %p390 = pneg %p70
      %p391 = pneg %p67
      %p392 = pneg %p91
      %p393 = pneg %p88
      %p394 = pneg %p112
      %p395 = pneg %p109
      %p396 = pneg %p133
      %p397 = pneg %p130
      %p398 = pneg %p154
      %p399 = pneg %p151
      %p400 = pneg %p175
      %p401 = pneg %p172
      %p402 = pneg %p196
      %p403 = pneg %p193
      %p404 = pneg %p217
      %p405 = pneg %p214
      %p406 = pneg %p238
      %p407 = pneg %p235
      %p408 = pneg %p259
      %p409 = pneg %p256
      %p410 = pneg %p280
      %p411 = pneg %p277
      %p412 = pneg %p306
      %p413 = pneg %p303
      %p414 = scmp.lt.s32.totalorder %s23, 1
      %s415 = scalar_select %p414, %s23, 1
      %s416 = smul.addr %s415, 4
      %s417 = smul.addr %s416, 8
      %s418 = scalar_lea.vmem %s12, %s417
      %p419 = scmp.lt.s32.totalorder %s23, 1
      %s420 = scalar_select %p419, %s23, 1
      %s421 = smul.addr %s420, 2
      %s422 = smul.addr %s421, 8
      %s423 = scalar_lea.vmem %s0, %s422
      %p424 = scmp.lt.s32.totalorder %s23, 1
      %s425 = scalar_select %p424, %s23, 1
      %s426 = smul.addr %s425, 2
      %s427 = smul.addr %s426, 8
      %s428 = scalar_lea.vmem %s1, %s427
      %p429 = scmp.lt.s32.totalorder %s23, 1
      %s430 = scalar_select %p429, %s23, 1
      %s431 = smul.addr %s430, 4
      %s432 = smul.addr %s431, 8
      %s433 = scalar_lea.vmem %s12, %s432
      %v434 = vld [vmem:[%s423] sm:$0xff]
      %v435 = vld [vmem:[%s423 + $0x8] sm:$0xff]
      %v436 = vld [vmem:[%s2] sm:$0xff]
      %v437 = vld [vmem:[%s2 + $0x8] sm:$0xff]
      %v438 = vld [vmem:[%s4] sm:$0x1]
      %v440 = vlaneseq
      %v441 = vshrl.u32 %v440, 7
      %v442 = vsub.s32 0, %v441
      %v443 = vrot.slane %v438, %v442
      %vm445 = vcmask 130048
      %v447 = vsel %vm445, %v434, 0
      %v450 = vsel %vm445, %v435, 0
      %452 = vmatprep.subr.mxu0 0.0
      %453 = vmatpush1.msra.mxu0 %v436
      %454 = vmatprep.subr.mxu0 0.0
      %455 = vmatpush1.msra.mxu0 %v437
      %456 = vmatprep.subr.mxu0 0.0
      %457 = vmatpush1.msra.mxu0 0.0
      %458 = vmatprep.subr.mxu0 0.0
      %459 = vmatpush1.msra.mxu0 0.0
      %460 = vmatprep.subr.mxu0 0.0
      %461 = vmatpush1.msra.mxu0 0.0
      %462 = vmatprep.subr.mxu0 0.0
      %463 = vmatpush1.msra.mxu0 0.0
      %464 = vmatprep.subr.mxu0 0.0
      %465 = vmatpush1.msra.mxu0 0.0
      %466 = vmatprep.subr.mxu0 0.0
      %467 = vmatpush1.msra.mxu0 0.0
      %468 = vmatprep.subr.mxu0 0.0
      %469 = vmatpush1.msra.mxu0 0.0
      %470 = vmatprep.subr.mxu0 0.0
      %471 = vmatpush1.msra.mxu0 0.0
      %472 = vmatprep.subr.mxu0 0.0
      %473 = vmatpush1.msra.mxu0 0.0
      %474 = vmatprep.subr.mxu0 0.0
      %475 = vmatpush1.msra.mxu0 0.0
      %476 = vmatprep.subr.mxu0 0.0
      %477 = vmatpush1.msra.mxu0 0.0
      %478 = vmatprep.subr.mxu0 0.0
      %479 = vmatpush1.msra.mxu0 0.0
      %480 = vmatprep.subr.mxu0 0.0
      %481 = vmatpush1.msra.mxu0 0.0
      %482 = vmatprep.subr.mxu0 0.0
      %483 = vmatpush1.msra.mxu0 0.0
      %484 = vmatprep.subr.mxu0 0.0
      %485 = vmatpush1.msra.mxu0 0.0
      %486 = vmatprep.subr.mxu0 0.0
      %487 = vmatpush1.msra.mxu0 0.0
      %488 = vmatprep.subr.mxu0 0.0
      %489 = vmatpush1.msra.mxu0 0.0
      %490 = vmatprep.subr.mxu0 0.0
      %491 = vmatpush1.msra.mxu0 0.0
      %492 = vmatprep.subr.mxu0 0.0
      %493 = vmatpush1.msra.mxu0 0.0
      %494 = vmatprep.subr.mxu0 0.0
      %495 = vmatpush1.msra.mxu0 0.0
      %496 = vmatprep.subr.mxu0 0.0
      %497 = vmatpush1.msra.mxu0 0.0
      %498 = vmatprep.subr.mxu0 0.0
      %499 = vmatpush1.msra.mxu0 0.0
      %500 = vmatprep.subr.mxu0 0.0
      %501 = vmatpush1.msra.mxu0 0.0
      %502 = vmatprep.subr.mxu0 0.0
      %503 = vmatpush1.msra.mxu0 0.0
      %504 = vmatprep.subr.mxu0 0.0
      %505 = vmatpush1.msra.mxu0 0.0
      %506 = vmatprep.subr.mxu0 0.0
      %507 = vmatpush1.msra.mxu0 0.0
      %508 = vmatprep.subr.mxu0 0.0
      %509 = vmatpush1.msra.mxu0 0.0
      %510 = vmatprep.subr.mxu0 0.0
      %511 = vmatpush1.msra.mxu0 0.0
      %512 = vmatprep.subr.mxu0 0.0
      %513 = vmatpush1.msra.mxu0 0.0
      %514 = vmatprep.subr.mxu0 0.0
      %515 = vmatpush1.msra.mxu0 0.0
      %516 = vmatprep.mubr.f32.mxu0 0.0
      %517 = vmatmul.mubr.f32.gmra.mrb[0].mxu0 %v447
      %v518 = vpop.f32.mrb[0].mxu0
      %v519 = vadd.f32 %v443, %v518
      %v520 = vpop.f32.mrb[0].mxu0
      %521 = vmatprep.mubr.f32.mxu0 0.0
      %522 = vmatmul.mubr.f32.gmra.mrb[0].mxu0 %v450
      %v523 = vpop.f32.mrb[0].mxu0
      %v524 = vadd.f32 %v443, %v523
      %v525 = vpop.f32.mrb[0].mxu0
      %526 = vdwg.mxu0
      %v527 = vld [vmem:[%s3] sm:$0xff]
      %v528 = vld [vmem:[%s3 + $0x8] sm:$0xff]
      %v529 = vld [vmem:[%s3 + $0x10] sm:$0xff]
      %v530 = vld [vmem:[%s3 + $0x18] sm:$0xff]
      %s531 = scalar_lea.vmem %s4, 1
      %v532 = vld [vmem:[%s531] sm:$0x1]
      %533 = vmatprep.subr.mxu0 0.0
      %534 = vmatpush1.msra.mxu0 %v519
      %535 = vmatprep.subr.mxu0 0.0
      %536 = vmatpush1.msra.mxu0 %v524
      %537 = vmatprep.subr.mxu0 0.0
      %538 = vmatpush1.msra.mxu0 0.0
      %539 = vmatprep.subr.mxu0 0.0
      %540 = vmatpush1.msra.mxu0 0.0
      %541 = vmatprep.subr.mxu0 0.0
      %542 = vmatpush1.msra.mxu0 0.0
      %543 = vmatprep.subr.mxu0 0.0
      %544 = vmatpush1.msra.mxu0 0.0
      %545 = vmatprep.subr.mxu0 0.0
      %546 = vmatpush1.msra.mxu0 0.0
      %547 = vmatprep.subr.mxu0 0.0
      %548 = vmatpush1.msra.mxu0 0.0
      %549 = vmatprep.subr.mxu0 0.0
      %550 = vmatpush1.msra.mxu0 0.0
      %551 = vmatprep.subr.mxu0 0.0
      %552 = vmatpush1.msra.mxu0 0.0
      %553 = vmatprep.subr.mxu0 0.0
      %554 = vmatpush1.msra.mxu0 0.0
      %555 = vmatprep.subr.mxu0 0.0
      %556 = vmatpush1.msra.mxu0 0.0
      %557 = vmatprep.subr.mxu0 0.0
      %558 = vmatpush1.msra.mxu0 0.0
      %559 = vmatprep.subr.mxu0 0.0
      %560 = vmatpush1.msra.mxu0 0.0
      %561 = vmatprep.subr.mxu0 0.0
      %562 = vmatpush1.msra.mxu0 0.0
      %563 = vmatprep.subr.mxu0 0.0
      %564 = vmatpush1.msra.mxu0 0.0
      %565 = vmatprep.subr.mxu0 0.0
      %566 = vmatpush1.msra.mxu0 0.0
      %567 = vmatprep.subr.mxu0 0.0
      %568 = vmatpush1.msra.mxu0 0.0
      %569 = vmatprep.subr.mxu0 0.0
      %570 = vmatpush1.msra.mxu0 0.0
      %571 = vmatprep.subr.mxu0 0.0
      %572 = vmatpush1.msra.mxu0 0.0
      %573 = vmatprep.subr.mxu0 0.0
      %574 = vmatpush1.msra.mxu0 0.0
      %575 = vmatprep.subr.mxu0 0.0
      %576 = vmatpush1.msra.mxu0 0.0
      %577 = vmatprep.subr.mxu0 0.0
      %578 = vmatpush1.msra.mxu0 0.0
      %579 = vmatprep.subr.mxu0 0.0
      %580 = vmatpush1.msra.mxu0 0.0
      %581 = vmatprep.subr.mxu0 0.0
      %582 = vmatpush1.msra.mxu0 0.0
      %583 = vmatprep.subr.mxu0 0.0
      %584 = vmatpush1.msra.mxu0 0.0
      %585 = vmatprep.subr.mxu0 0.0
      %586 = vmatpush1.msra.mxu0 0.0
      %587 = vmatprep.subr.mxu0 0.0
      %588 = vmatpush1.msra.mxu0 0.0
      %589 = vmatprep.subr.mxu0 0.0
      %590 = vmatpush1.msra.mxu0 0.0
      %591 = vmatprep.subr.mxu0 0.0
      %592 = vmatpush1.msra.mxu0 0.0
      %593 = vmatprep.subr.mxu0 0.0
      %594 = vmatpush1.msra.mxu0 0.0
      %595 = vmatprep.subr.mxu0 0.0
      %596 = vmatpush1.msra.mxu0 0.0
      %597 = vmatprep.mubr.f32.mxu0 0.0
      %598 = vmatmul.mubr.f32.gmra.mrb[0].mxu0 %v447
      %v599 = vpop.f32.mrb[0].mxu0
      %v600 = vadd.f32 0.0, %v599
      %v601 = vpop.f32.mrb[0].mxu0
      %602 = vmatprep.mubr.f32.mxu0 0.0
      %603 = vmatmul.mubr.f32.gmra.mrb[0].mxu0 %v450
      %v604 = vpop.f32.mrb[0].mxu0
      %v605 = vadd.f32 0.0, %v604
      %v606 = vpop.f32.mrb[0].mxu0
      %607 = vdwg.mxu0
      %v609 = vlaneseq
      %v610 = vshrl.u32 %v609, 7
      %v611 = vsub.s32 0, %v610
      %v612 = vrot.slane %v532, %v611
      %vm614 = vcmask 261120
      %v616 = vsel %vm614, %v600, 0
      %v619 = vsel %vm614, %v605, 0
      %621 = vmatprep.subr.mxu0 0.0
      %622 = vmatpush1.msra.mxu0 %v527
      %623 = vmatprep.subr.mxu0 0.0
      %624 = vmatpush1.msra.mxu0 %v528
      %625 = vmatprep.subr.mxu0 0.0
      %626 = vmatpush1.msra.mxu0 %v529
      %627 = vmatprep.subr.mxu0 0.0
      %628 = vmatpush1.msra.mxu0 %v530
      %629 = vmatprep.subr.mxu0 0.0
      %630 = vmatpush1.msra.mxu0 0.0
      %631 = vmatprep.subr.mxu0 0.0
      %632 = vmatpush1.msra.mxu0 0.0
      %633 = vmatprep.subr.mxu0 0.0
      %634 = vmatpush1.msra.mxu0 0.0
      %635 = vmatprep.subr.mxu0 0.0
      %636 = vmatpush1.msra.mxu0 0.0
      %637 = vmatprep.subr.mxu0 0.0
      %638 = vmatpush1.msra.mxu0 0.0
      %639 = vmatprep.subr.mxu0 0.0
      %640 = vmatpush1.msra.mxu0 0.0
      %641 = vmatprep.subr.mxu0 0.0
      %642 = vmatpush1.msra.mxu0 0.0
      %643 = vmatprep.subr.mxu0 0.0
      %644 = vmatpush1.msra.mxu0 0.0
      %645 = vmatprep.subr.mxu0 0.0
      %646 = vmatpush1.msra.mxu0 0.0
      %647 = vmatprep.subr.mxu0 0.0
      %648 = vmatpush1.msra.mxu0 0.0
      %649 = vmatprep.subr.mxu0 0.0
      %650 = vmatpush1.msra.mxu0 0.0
      %651 = vmatprep.subr.mxu0 0.0
      %652 = vmatpush1.msra.mxu0 0.0
      %653 = vmatprep.subr.mxu0 0.0
      %654 = vmatpush1.msra.mxu0 0.0
      %655 = vmatprep.subr.mxu0 0.0
      %656 = vmatpush1.msra.mxu0 0.0
      %657 = vmatprep.subr.mxu0 0.0
      %658 = vmatpush1.msra.mxu0 0.0
      %659 = vmatprep.subr.mxu0 0.0
      %660 = vmatpush1.msra.mxu0 0.0
      %661 = vmatprep.subr.mxu0 0.0
      %662 = vmatpush1.msra.mxu0 0.0
      %663 = vmatprep.subr.mxu0 0.0
      %664 = vmatpush1.msra.mxu0 0.0
      %665 = vmatprep.subr.mxu0 0.0
      %666 = vmatpush1.msra.mxu0 0.0
      %667 = vmatprep.subr.mxu0 0.0
      %668 = vmatpush1.msra.mxu0 0.0
      %669 = vmatprep.subr.mxu0 0.0
      %670 = vmatpush1.msra.mxu0 0.0
      %671 = vmatprep.subr.mxu0 0.0
      %672 = vmatpush1.msra.mxu0 0.0
      %673 = vmatprep.subr.mxu0 0.0
      %674 = vmatpush1.msra.mxu0 0.0
      %675 = vmatprep.subr.mxu0 0.0
      %676 = vmatpush1.msra.mxu0 0.0
      %677 = vmatprep.subr.mxu0 0.0
      %678 = vmatpush1.msra.mxu0 0.0
      %679 = vmatprep.subr.mxu0 0.0
      %680 = vmatpush1.msra.mxu0 0.0
      %681 = vmatprep.subr.mxu0 0.0
      %682 = vmatpush1.msra.mxu0 0.0
      %683 = vmatprep.subr.mxu0 0.0
      %684 = vmatpush1.msra.mxu0 0.0
      %685 = vmatprep.mubr.f32.mxu0 0.0
      %686 = vmatmul.mubr.f32.gmra.mrb[0].mxu0 %v616
      %v687 = vpop.f32.mrb[0].mxu0
      %v688 = vadd.f32 %v612, %v687
      %v689 = vpop.f32.mrb[0].mxu0
      %690 = vmatprep.mubr.f32.mxu0 0.0
      %691 = vmatmul.mubr.f32.gmra.mrb[0].mxu0 %v619
      %v692 = vpop.f32.mrb[0].mxu0
      %v693 = vadd.f32 %v612, %v692
      %v694 = vpop.f32.mrb[0].mxu0
      %695 = vdwg.mxu0
      %v696 = vld [vmem:[%s5] sm:$0x1]
      %v698 = vlaneseq
      %v699 = vshrl.u32 %v698, 7
      %v700 = vsub.s32 0, %v699
      %v701 = vrot.slane %v696, %v700
      %v703 = vmul.f32 %v688, %v701
      %v704 = vmul.f32 %v693, %v701
      %v705 = vsel %vm614, %v703, 0.0
      %706 = vadd.xlane.f32.xlu0 %v705
      %v707 = vpop.xlane.xlu0 %706
      %v708 = vsel %vm614, %v704, 0.0
      %709 = vadd.xlane.f32.xlu0 %v708
      %v710 = vpop.xlane.xlu0 %709
      %v711 = vld [vmem:[%s6] sm:$0x1]
      %v713 = vlaneseq
      %v714 = vshrl.u32 %v713, 7
      %v715 = vsub.s32 0, %v714
      %v716 = vrot.slane %v711, %v715
      %v718 = vadd.f32 %v707, %v716
      %v719 = vadd.f32 %v710, %v716
      %v720 = vrcp.pop 100.0
      %v721 = vmul.f32 %v718, %v720
      %v722 = vmul.f32 %v719, %v720
      %v723 = vxor.u32 %v721, 2147483648
      %v724 = vxor.u32 %v722, 2147483648
      %v725 = vmul.f32 %v723, 1.442695
      %v726 = vpow.pop %v725
      %v727 = vmul.f32 %v724, 1.442695
      %v728 = vpow.pop %v727
      %v729 = vadd.f32 %v726, 1.0
      %v730 = vadd.f32 %v728, 1.0
      %v731 = vrcp.pop %v729
      %v732 = vmul.f32 1.0, %v731
      %v733 = vrcp.pop %v730
      %v734 = vmul.f32 1.0, %v733
      %735 = vxpose.xlu0.b32.start [1/16] %v732, 128
      %736 = vxpose.xlu0.b32.cont [2/16] %v734, 128
      %737 = vxpose.xlu0.b32.cont [3/16] 0.0, 128
      %738 = vxpose.xlu0.b32.cont [4/16] 0.0, 128
      %739 = vxpose.xlu0.b32.cont [5/16] 0.0, 128
      %740 = vxpose.xlu0.b32.cont [6/16] 0.0, 128
      %741 = vxpose.xlu0.b32.cont [7/16] 0.0, 128
      %742 = vxpose.xlu0.b32.cont [8/16] 0.0, 128
      %743 = vxpose.xlu0.b32.cont [9/16] 0.0, 128
      %744 = vxpose.xlu0.b32.cont [10/16] 0.0, 128
      %745 = vxpose.xlu0.b32.cont [11/16] 0.0, 128
      %746 = vxpose.xlu0.b32.cont [12/16] 0.0, 128
      %747 = vxpose.xlu0.b32.cont [13/16] 0.0, 128
      %748 = vxpose.xlu0.b32.cont [14/16] 0.0, 128
      %749 = vxpose.xlu0.b32.cont [15/16] 0.0, 128
      %750 = vxpose.xlu0.b32.end [16/16] 0.0, 128
      %v751 = vpop.trf.xlu0
      %v752 = vpop.trf.xlu0
      %v753 = vpop.trf.xlu0
      %v754 = vpop.trf.xlu0
      %v755 = vpop.trf.xlu0
      %v756 = vpop.trf.xlu0
      %v757 = vpop.trf.xlu0
      %v758 = vpop.trf.xlu0
      %v759 = vpop.trf.xlu0
      %v760 = vpop.trf.xlu0
      %v761 = vpop.trf.xlu0
      %v762 = vpop.trf.xlu0
      %v763 = vpop.trf.xlu0
      %v764 = vpop.trf.xlu0
      %v765 = vpop.trf.xlu0
      %v766 = vpop.trf.xlu0
      %v767 = vlaneseq
      %v768 = vshrl.u32 %v767, 7
      %v769 = vadd.s32 %v768, 8
      %v770 = vlaneseq
      %v771 = vand.u32 %v770, 127
      %v772 = vlaneseq
      %v773 = vshrl.u32 %v772, 7
      %v774 = vsub.s32 0, %v773
      %v775 = vrot.slane %v751, %v774
      %777 = vset.pattern.permute.xlu0 0
      %778 = vperm.xlu0 %777, %v732
      %v779 = vpop.permute.xlu0 %778
      %782 = vset.pattern.permute.xlu0 0
      %783 = vperm.xlu0 %782, %v734
      %v784 = vpop.permute.xlu0 %783
      %vm786 = vcmp.gt.f32.partialorder %v775, %v779
      %vm787 = vcmp.gt.f32.partialorder %v775, %v784
      %vm788 = vcmp.eq.f32.partialorder %v775, %v779
      %vm789 = vcmp.eq.f32.partialorder %v775, %v784
      %vm790 = vcmp.lt.s32.totalorder %v771, %v768
      %vm791 = vcmp.lt.s32.totalorder %v771, %v769
      %vm792 = vmand %vm788, %vm790
      %vm793 = vmand %vm789, %vm791
      %vm794 = vmor %vm786, %vm792
      %vm795 = vmor %vm787, %vm793
      %v796 = vsel %vm794, 1, 0
      %v797 = vsel %vm795, 1, 0
      %v798 = vcvt.s32.f32 %v796
      %v799 = vcvt.s32.f32 %v797
      %v800 = vsel %vm445, %v798, 0.0
      %801 = vadd.xlane.f32.xlu0 %v800
      %v802 = vpop.xlane.xlu0 %801
      %v803 = vsel %vm445, %v799, 0.0
      %804 = vadd.xlane.f32.xlu0 %v803
      %v805 = vpop.xlane.xlu0 %804
      %806 = vxpose.xlu0.b32.start [1/16] %v802, 128
      %807 = vxpose.xlu0.b32.cont [2/16] %v805, 128
      %808 = vxpose.xlu0.b32.cont [3/16] 0.0, 128
      %809 = vxpose.xlu0.b32.cont [4/16] 0.0, 128
      %810 = vxpose.xlu0.b32.cont [5/16] 0.0, 128
      %811 = vxpose.xlu0.b32.cont [6/16] 0.0, 128
      %812 = vxpose.xlu0.b32.cont [7/16] 0.0, 128
      %813 = vxpose.xlu0.b32.cont [8/16] 0.0, 128
      %814 = vxpose.xlu0.b32.cont [9/16] 0.0, 128
      %815 = vxpose.xlu0.b32.cont [10/16] 0.0, 128
      %816 = vxpose.xlu0.b32.cont [11/16] 0.0, 128
      %817 = vxpose.xlu0.b32.cont [12/16] 0.0, 128
      %818 = vxpose.xlu0.b32.cont [13/16] 0.0, 128
      %819 = vxpose.xlu0.b32.cont [14/16] 0.0, 128
      %820 = vxpose.xlu0.b32.cont [15/16] 0.0, 128
      %821 = vxpose.xlu0.b32.end [16/16] 0.0, 128
      %v822 = vpop.trf.xlu0
      %v823 = vpop.trf.xlu0
      %v824 = vpop.trf.xlu0
      %v825 = vpop.trf.xlu0
      %v826 = vpop.trf.xlu0
      %v827 = vpop.trf.xlu0
      %v828 = vpop.trf.xlu0
      %v829 = vpop.trf.xlu0
      %v830 = vpop.trf.xlu0
      %v831 = vpop.trf.xlu0
      %v832 = vpop.trf.xlu0
      %v833 = vpop.trf.xlu0
      %v834 = vpop.trf.xlu0
      %v835 = vpop.trf.xlu0
      %v836 = vpop.trf.xlu0
      %v837 = vpop.trf.xlu0
      %v838 = vcvt.f32.s32.to.zero.pseudo %v822
      %v839 = vlaneseq
      %v840 = vshrl.u32 %v839, 7
      %v841 = vsub.s32 0, %v840
      %v842 = vrot.slane %v838, %v841
      %vm843 = vcmp.eq.s32.totalorder %v768, %v842
      %vm844 = vcmp.eq.s32.totalorder %v769, %v842
      %v845 = vsel %vm843, 1, 0
      %v846 = vsel %vm844, 1, 0
      %v847 = vcvt.s32.f32 %v845
      %v848 = vcvt.s32.f32 %v846
      %v849 = vcvt.f32.s32.to.zero.pseudo %v802
      %v850 = vcvt.f32.s32.to.zero.pseudo %v805
      %vm851 = vcmp.eq.s32.totalorder %v771, %v849
      %vm852 = vcmp.eq.s32.totalorder %v771, %v850
      %v853 = vsel %vm851, 1, 0
      %v854 = vsel %vm852, 1, 0
      %v855 = vcvt.s32.f32 %v853
      %v856 = vcvt.s32.f32 %v854
      %v857 = vmul.f32 %v847, %v775
      %v858 = vmul.f32 %v848, %v775
      %v859 = vsel %vm445, %v857, 0.0
      %860 = vadd.xlane.f32.xlu0 %v859
      %v861 = vpop.xlane.xlu0 %860
      %v862 = vsel %vm445, %v858, 0.0
      %863 = vadd.xlane.f32.xlu0 %v862
      %v864 = vpop.xlane.xlu0 %863
      %v866 = vsel %vm445, %v847, 0
      %v869 = vsel %vm445, %v848, 0
      %871 = vmatprep.subr.mxu0 0.0
      %872 = vmatpush1.msra.mxu0 %v688
      %873 = vmatprep.subr.mxu0 0.0
      %874 = vmatpush1.msra.mxu0 %v693
      %875 = vmatprep.subr.mxu0 0.0
      %876 = vmatpush1.msra.mxu0 0.0
      %877 = vmatprep.subr.mxu0 0.0
      %878 = vmatpush1.msra.mxu0 0.0
      %879 = vmatprep.subr.mxu0 0.0
      %880 = vmatpush1.msra.mxu0 0.0
      %881 = vmatprep.subr.mxu0 0.0
      %882 = vmatpush1.msra.mxu0 0.0
      %883 = vmatprep.subr.mxu0 0.0
      %884 = vmatpush1.msra.mxu0 0.0
      %885 = vmatprep.subr.mxu0 0.0
      %886 = vmatpush1.msra.mxu0 0.0
      %887 = vmatprep.subr.mxu0 0.0
      %888 = vmatpush1.msra.mxu0 0.0
      %889 = vmatprep.subr.mxu0 0.0
      %890 = vmatpush1.msra.mxu0 0.0
      %891 = vmatprep.subr.mxu0 0.0
      %892 = vmatpush1.msra.mxu0 0.0
      %893 = vmatprep.subr.mxu0 0.0
      %894 = vmatpush1.msra.mxu0 0.0
      %895 = vmatprep.subr.mxu0 0.0
      %896 = vmatpush1.msra.mxu0 0.0
      %897 = vmatprep.subr.mxu0 0.0
      %898 = vmatpush1.msra.mxu0 0.0
      %899 = vmatprep.subr.mxu0 0.0
      %900 = vmatpush1.msra.mxu0 0.0
      %901 = vmatprep.subr.mxu0 0.0
      %902 = vmatpush1.msra.mxu0 0.0
      %903 = vmatprep.subr.mxu0 0.0
      %904 = vmatpush1.msra.mxu0 0.0
      %905 = vmatprep.subr.mxu0 0.0
      %906 = vmatpush1.msra.mxu0 0.0
      %907 = vmatprep.subr.mxu0 0.0
      %908 = vmatpush1.msra.mxu0 0.0
      %909 = vmatprep.subr.mxu0 0.0
      %910 = vmatpush1.msra.mxu0 0.0
      %911 = vmatprep.subr.mxu0 0.0
      %912 = vmatpush1.msra.mxu0 0.0
      %913 = vmatprep.subr.mxu0 0.0
      %914 = vmatpush1.msra.mxu0 0.0
      %915 = vmatprep.subr.mxu0 0.0
      %916 = vmatpush1.msra.mxu0 0.0
      %917 = vmatprep.subr.mxu0 0.0
      %918 = vmatpush1.msra.mxu0 0.0
      %919 = vmatprep.subr.mxu0 0.0
      %920 = vmatpush1.msra.mxu0 0.0
      %921 = vmatprep.subr.mxu0 0.0
      %922 = vmatpush1.msra.mxu0 0.0
      %923 = vmatprep.subr.mxu0 0.0
      %924 = vmatpush1.msra.mxu0 0.0
      %925 = vmatprep.subr.mxu0 0.0
      %926 = vmatpush1.msra.mxu0 0.0
      %927 = vmatprep.subr.mxu0 0.0
      %928 = vmatpush1.msra.mxu0 0.0
      %929 = vmatprep.subr.mxu0 0.0
      %930 = vmatpush1.msra.mxu0 0.0
      %931 = vmatprep.subr.mxu0 0.0
      %932 = vmatpush1.msra.mxu0 0.0
      %933 = vmatprep.subr.mxu0 0.0
      %934 = vmatpush1.msra.mxu0 0.0
      %935 = vmatprep.mubr.f32.mxu0 0.0
      %936 = vmatmul.mubr.f32.gmra.mrb[0].mxu0 %v866
      %v937 = vpop.f32.mrb[0].mxu0
      %v938 = vadd.f32 0.0, %v937
      %v939 = vpop.f32.mrb[0].mxu0
      %940 = vmatprep.mubr.f32.mxu0 0.0
      %941 = vmatmul.mubr.f32.gmra.mrb[0].mxu0 %v869
      %v942 = vpop.f32.mrb[0].mxu0
      %v943 = vadd.f32 0.0, %v942
      %v944 = vpop.f32.mrb[0].mxu0
      %945 = vdwg.mxu0
      %v946 = vmul.f32 %v938, %v861
      %v947 = vmul.f32 %v943, %v864
      %948 = vmatprep.subr.mxu0 0.0
      %949 = vmatpush1.msra.mxu0 %v434
      %950 = vmatprep.subr.mxu0 0.0
      %951 = vmatpush1.msra.mxu0 %v435
      %952 = vmatprep.subr.mxu0 0.0
      %953 = vmatpush1.msra.mxu0 0.0
      %954 = vmatprep.subr.mxu0 0.0
      %955 = vmatpush1.msra.mxu0 0.0
      %956 = vmatprep.subr.mxu0 0.0
      %957 = vmatpush1.msra.mxu0 0.0
      %958 = vmatprep.subr.mxu0 0.0
      %959 = vmatpush1.msra.mxu0 0.0
      %960 = vmatprep.subr.mxu0 0.0
      %961 = vmatpush1.msra.mxu0 0.0
      %962 = vmatprep.subr.mxu0 0.0
      %963 = vmatpush1.msra.mxu0 0.0
      %964 = vmatprep.subr.mxu0 0.0
      %965 = vmatpush1.msra.mxu0 0.0
      %966 = vmatprep.subr.mxu0 0.0
      %967 = vmatpush1.msra.mxu0 0.0
      %968 = vmatprep.subr.mxu0 0.0
      %969 = vmatpush1.msra.mxu0 0.0
      %970 = vmatprep.subr.mxu0 0.0
      %971 = vmatpush1.msra.mxu0 0.0
      %972 = vmatprep.subr.mxu0 0.0
      %973 = vmatpush1.msra.mxu0 0.0
      %974 = vmatprep.subr.mxu0 0.0
      %975 = vmatpush1.msra.mxu0 0.0
      %976 = vmatprep.subr.mxu0 0.0
      %977 = vmatpush1.msra.mxu0 0.0
      %978 = vmatprep.subr.mxu0 0.0
      %979 = vmatpush1.msra.mxu0 0.0
      %980 = vmatprep.subr.mxu0 0.0
      %981 = vmatpush1.msra.mxu0 0.0
      %982 = vmatprep.subr.mxu0 0.0
      %983 = vmatpush1.msra.mxu0 0.0
      %984 = vmatprep.subr.mxu0 0.0
      %985 = vmatpush1.msra.mxu0 0.0
      %986 = vmatprep.subr.mxu0 0.0
      %987 = vmatpush1.msra.mxu0 0.0
      %988 = vmatprep.subr.mxu0 0.0
      %989 = vmatpush1.msra.mxu0 0.0
      %990 = vmatprep.subr.mxu0 0.0
      %991 = vmatpush1.msra.mxu0 0.0
      %992 = vmatprep.subr.mxu0 0.0
      %993 = vmatpush1.msra.mxu0 0.0
      %994 = vmatprep.subr.mxu0 0.0
      %995 = vmatpush1.msra.mxu0 0.0
      %996 = vmatprep.subr.mxu0 0.0
      %997 = vmatpush1.msra.mxu0 0.0
      %998 = vmatprep.subr.mxu0 0.0
      %999 = vmatpush1.msra.mxu0 0.0
      %1000 = vmatprep.subr.mxu0 0.0
      %1001 = vmatpush1.msra.mxu0 0.0
      %1002 = vmatprep.subr.mxu0 0.0
      %1003 = vmatpush1.msra.mxu0 0.0
      %1004 = vmatprep.subr.mxu0 0.0
      %1005 = vmatpush1.msra.mxu0 0.0
      %1006 = vmatprep.subr.mxu0 0.0
      %1007 = vmatpush1.msra.mxu0 0.0
      %1008 = vmatprep.subr.mxu0 0.0
      %1009 = vmatpush1.msra.mxu0 0.0
      %1010 = vmatprep.subr.mxu0 0.0
      %1011 = vmatpush1.msra.mxu0 0.0
      %1012 = vmatprep.mubr.f32.mxu0 0.0
      %1013 = vmatmul.mubr.f32.gmra.mrb[0].mxu0 %v866
      %v1014 = vpop.f32.mrb[0].mxu0
      %v1015 = vadd.f32 0.0, %v1014
      %v1016 = vpop.f32.mrb[0].mxu0
      %1017 = vmatprep.mubr.f32.mxu0 0.0
      %1018 = vmatmul.mubr.f32.gmra.mrb[0].mxu0 %v869
      %v1019 = vpop.f32.mrb[0].mxu0
      %v1020 = vadd.f32 0.0, %v1019
      %v1021 = vpop.f32.mrb[0].mxu0
      %1022 = vdwg.mxu0
      %v1024 = vsel %vm445, %v1015, 0
      %v1027 = vsel %vm445, %v1020, 0
      %1029 = vmatprep.subr.mxu0 0.0
      %1030 = vmatpush1.msra.mxu0 %v855
      %1031 = vmatprep.subr.mxu0 0.0
      %1032 = vmatpush1.msra.mxu0 %v856
      %1033 = vmatprep.subr.mxu0 0.0
      %1034 = vmatpush1.msra.mxu0 0.0
      %1035 = vmatprep.subr.mxu0 0.0
      %1036 = vmatpush1.msra.mxu0 0.0
      %1037 = vmatprep.subr.mxu0 0.0
      %1038 = vmatpush1.msra.mxu0 0.0
      %1039 = vmatprep.subr.mxu0 0.0
      %1040 = vmatpush1.msra.mxu0 0.0
      %1041 = vmatprep.subr.mxu0 0.0
      %1042 = vmatpush1.msra.mxu0 0.0
      %1043 = vmatprep.subr.mxu0 0.0
      %1044 = vmatpush1.msra.mxu0 0.0
      %1045 = vmatprep.subr.mxu0 0.0
      %1046 = vmatpush1.msra.mxu0 0.0
      %1047 = vmatprep.subr.mxu0 0.0
      %1048 = vmatpush1.msra.mxu0 0.0
      %1049 = vmatprep.subr.mxu0 0.0
      %1050 = vmatpush1.msra.mxu0 0.0
      %1051 = vmatprep.subr.mxu0 0.0
      %1052 = vmatpush1.msra.mxu0 0.0
      %1053 = vmatprep.subr.mxu0 0.0
      %1054 = vmatpush1.msra.mxu0 0.0
      %1055 = vmatprep.subr.mxu0 0.0
      %1056 = vmatpush1.msra.mxu0 0.0
      %1057 = vmatprep.subr.mxu0 0.0
      %1058 = vmatpush1.msra.mxu0 0.0
      %1059 = vmatprep.subr.mxu0 0.0
      %1060 = vmatpush1.msra.mxu0 0.0
      %1061 = vmatprep.subr.mxu0 0.0
      %1062 = vmatpush1.msra.mxu0 0.0
      %1063 = vmatprep.subr.mxu0 0.0
      %1064 = vmatpush1.msra.mxu0 0.0
      %1065 = vmatprep.subr.mxu0 0.0
      %1066 = vmatpush1.msra.mxu0 0.0
      %1067 = vmatprep.subr.mxu0 0.0
      %1068 = vmatpush1.msra.mxu0 0.0
      %1069 = vmatprep.subr.mxu0 0.0
      %1070 = vmatpush1.msra.mxu0 0.0
      %1071 = vmatprep.subr.mxu0 0.0
      %1072 = vmatpush1.msra.mxu0 0.0
      %1073 = vmatprep.subr.mxu0 0.0
      %1074 = vmatpush1.msra.mxu0 0.0
      %1075 = vmatprep.subr.mxu0 0.0
      %1076 = vmatpush1.msra.mxu0 0.0
      %1077 = vmatprep.subr.mxu0 0.0
      %1078 = vmatpush1.msra.mxu0 0.0
      %1079 = vmatprep.subr.mxu0 0.0
      %1080 = vmatpush1.msra.mxu0 0.0
      %1081 = vmatprep.subr.mxu0 0.0
      %1082 = vmatpush1.msra.mxu0 0.0
      %1083 = vmatprep.subr.mxu0 0.0
      %1084 = vmatpush1.msra.mxu0 0.0
      %1085 = vmatprep.subr.mxu0 0.0
      %1086 = vmatpush1.msra.mxu0 0.0
      %1087 = vmatprep.subr.mxu0 0.0
      %1088 = vmatpush1.msra.mxu0 0.0
      %1089 = vmatprep.subr.mxu0 0.0
      %1090 = vmatpush1.msra.mxu0 0.0
      %1091 = vmatprep.subr.mxu0 0.0
      %1092 = vmatpush1.msra.mxu0 0.0
      %1093 = vmatprep.mubr.f32.mxu0 0.0
      %1094 = vmatmul.mubr.f32.gmra.mrb[0].mxu0 %v1024
      %v1095 = vpop.f32.mrb[0].mxu0
      %v1096 = vadd.f32 0.0, %v1095
      %v1097 = vpop.f32.mrb[0].mxu0
      %1098 = vmatprep.mubr.f32.mxu0 0.0
      %1099 = vmatmul.mubr.f32.gmra.mrb[0].mxu0 %v1027
      %v1100 = vpop.f32.mrb[0].mxu0
      %v1101 = vadd.f32 0.0, %v1100
      %v1102 = vpop.f32.mrb[0].mxu0
      %1103 = vdwg.mxu0
      %s1104 = scalar_lea.vmem %s3, 32
      %v1105 = vld [vmem:[%s1104] sm:$0xff]
      %v1106 = vld [vmem:[%s1104 + $0x8] sm:$0xff]
      %v1107 = vld [vmem:[%s1104 + $0x10] sm:$0xff]
      %v1108 = vld [vmem:[%s1104 + $0x18] sm:$0xff]
      %s1109 = scalar_lea.vmem %s4, 2
      %v1110 = vld [vmem:[%s1109] sm:$0x1]
      %v1112 = vsel %vm445, %v1096, 0
      %v1115 = vsel %vm445, %v1101, 0
      %1117 = vmatprep.subr.mxu0 0.0
      %1118 = vmatpush1.msra.mxu0 %v946
      %1119 = vmatprep.subr.mxu0 0.0
      %1120 = vmatpush1.msra.mxu0 %v947
      %1121 = vmatprep.subr.mxu0 0.0
      %1122 = vmatpush1.msra.mxu0 0.0
      %1123 = vmatprep.subr.mxu0 0.0
      %1124 = vmatpush1.msra.mxu0 0.0
      %1125 = vmatprep.subr.mxu0 0.0
      %1126 = vmatpush1.msra.mxu0 0.0
      %1127 = vmatprep.subr.mxu0 0.0
      %1128 = vmatpush1.msra.mxu0 0.0
      %1129 = vmatprep.subr.mxu0 0.0
      %1130 = vmatpush1.msra.mxu0 0.0
      %1131 = vmatprep.subr.mxu0 0.0
      %1132 = vmatpush1.msra.mxu0 0.0
      %1133 = vmatprep.subr.mxu0 0.0
      %1134 = vmatpush1.msra.mxu0 0.0
      %1135 = vmatprep.subr.mxu0 0.0
      %1136 = vmatpush1.msra.mxu0 0.0
      %1137 = vmatprep.subr.mxu0 0.0
      %1138 = vmatpush1.msra.mxu0 0.0
      %1139 = vmatprep.subr.mxu0 0.0
      %1140 = vmatpush1.msra.mxu0 0.0
      %1141 = vmatprep.subr.mxu0 0.0
      %1142 = vmatpush1.msra.mxu0 0.0
      %1143 = vmatprep.subr.mxu0 0.0
      %1144 = vmatpush1.msra.mxu0 0.0
      %1145 = vmatprep.subr.mxu0 0.0
      %1146 = vmatpush1.msra.mxu0 0.0
      %1147 = vmatprep.subr.mxu0 0.0
      %1148 = vmatpush1.msra.mxu0 0.0
      %1149 = vmatprep.subr.mxu0 0.0
      %1150 = vmatpush1.msra.mxu0 0.0
      %1151 = vmatprep.subr.mxu0 0.0
      %1152 = vmatpush1.msra.mxu0 0.0
      %1153 = vmatprep.subr.mxu0 0.0
      %1154 = vmatpush1.msra.mxu0 0.0
      %1155 = vmatprep.subr.mxu0 0.0
      %1156 = vmatpush1.msra.mxu0 0.0
      %1157 = vmatprep.subr.mxu0 0.0
      %1158 = vmatpush1.msra.mxu0 0.0
      %1159 = vmatprep.subr.mxu0 0.0
      %1160 = vmatpush1.msra.mxu0 0.0
      %1161 = vmatprep.subr.mxu0 0.0
      %1162 = vmatpush1.msra.mxu0 0.0
      %1163 = vmatprep.subr.mxu0 0.0
      %1164 = vmatpush1.msra.mxu0 0.0
      %1165 = vmatprep.subr.mxu0 0.0
      %1166 = vmatpush1.msra.mxu0 0.0
      %1167 = vmatprep.subr.mxu0 0.0
      %1168 = vmatpush1.msra.mxu0 0.0
      %1169 = vmatprep.subr.mxu0 0.0
      %1170 = vmatpush1.msra.mxu0 0.0
      %1171 = vmatprep.subr.mxu0 0.0
      %1172 = vmatpush1.msra.mxu0 0.0
      %1173 = vmatprep.subr.mxu0 0.0
      %1174 = vmatpush1.msra.mxu0 0.0
      %1175 = vmatprep.subr.mxu0 0.0
      %1176 = vmatpush1.msra.mxu0 0.0
      %1177 = vmatprep.subr.mxu0 0.0
      %1178 = vmatpush1.msra.mxu0 0.0
      %1179 = vmatprep.subr.mxu0 0.0
      %1180 = vmatpush1.msra.mxu0 0.0
      %1181 = vmatprep.mubr.f32.mxu0 0.0
      %1182 = vmatmul.mubr.f32.gmra.mrb[0].mxu0 %v1112
      %v1183 = vpop.f32.mrb[0].mxu0
      %v1184 = vadd.f32 0.0, %v1183
      %v1185 = vpop.f32.mrb[0].mxu0
      %1186 = vmatprep.mubr.f32.mxu0 0.0
      %1187 = vmatmul.mubr.f32.gmra.mrb[0].mxu0 %v1115
      %v1188 = vpop.f32.mrb[0].mxu0
      %v1189 = vadd.f32 0.0, %v1188
      %v1190 = vpop.f32.mrb[0].mxu0
      %1191 = vdwg.mxu0
      %v1193 = vlaneseq
      %v1194 = vshrl.u32 %v1193, 7
      %v1195 = vsub.s32 0, %v1194
      %v1196 = vrot.slane %v1110, %v1195
      %v1199 = vsel %vm614, %v1184, 0
      %v1202 = vsel %vm614, %v1189, 0
      %1204 = vmatprep.subr.mxu0 0.0
      %1205 = vmatpush1.msra.mxu0 %v1105
      %1206 = vmatprep.subr.mxu0 0.0
      %1207 = vmatpush1.msra.mxu0 %v1106
      %1208 = vmatprep.subr.mxu0 0.0
      %1209 = vmatpush1.msra.mxu0 %v1107
      %1210 = vmatprep.subr.mxu0 0.0
      %1211 = vmatpush1.msra.mxu0 %v1108
      %1212 = vmatprep.subr.mxu0 0.0
      %1213 = vmatpush1.msra.mxu0 0.0
      %1214 = vmatprep.subr.mxu0 0.0
      %1215 = vmatpush1.msra.mxu0 0.0
      %1216 = vmatprep.subr.mxu0 0.0
      %1217 = vmatpush1.msra.mxu0 0.0
      %1218 = vmatprep.subr.mxu0 0.0
      %1219 = vmatpush1.msra.mxu0 0.0
      %1220 = vmatprep.subr.mxu0 0.0
      %1221 = vmatpush1.msra.mxu0 0.0
      %1222 = vmatprep.subr.mxu0 0.0
      %1223 = vmatpush1.msra.mxu0 0.0
      %1224 = vmatprep.subr.mxu0 0.0
      %1225 = vmatpush1.msra.mxu0 0.0
      %1226 = vmatprep.subr.mxu0 0.0
      %1227 = vmatpush1.msra.mxu0 0.0
      %1228 = vmatprep.subr.mxu0 0.0
      %1229 = vmatpush1.msra.mxu0 0.0
      %1230 = vmatprep.subr.mxu0 0.0
      %1231 = vmatpush1.msra.mxu0 0.0
      %1232 = vmatprep.subr.mxu0 0.0
      %1233 = vmatpush1.msra.mxu0 0.0
      %1234 = vmatprep.subr.mxu0 0.0
      %1235 = vmatpush1.msra.mxu0 0.0
      %1236 = vmatprep.subr.mxu0 0.0
      %1237 = vmatpush1.msra.mxu0 0.0
      %1238 = vmatprep.subr.mxu0 0.0
      %1239 = vmatpush1.msra.mxu0 0.0
      %1240 = vmatprep.subr.mxu0 0.0
      %1241 = vmatpush1.msra.mxu0 0.0
      %1242 = vmatprep.subr.mxu0 0.0
      %1243 = vmatpush1.msra.mxu0 0.0
      %1244 = vmatprep.subr.mxu0 0.0
      %1245 = vmatpush1.msra.mxu0 0.0
      %1246 = vmatprep.subr.mxu0 0.0
      %1247 = vmatpush1.msra.mxu0 0.0
      %1248 = vmatprep.subr.mxu0 0.0
      %1249 = vmatpush1.msra.mxu0 0.0
      %1250 = vmatprep.subr.mxu0 0.0
      %1251 = vmatpush1.msra.mxu0 0.0
      %1252 = vmatprep.subr.mxu0 0.0
      %1253 = vmatpush1.msra.mxu0 0.0
      %1254 = vmatprep.subr.mxu0 0.0
      %1255 = vmatpush1.msra.mxu0 0.0
      %1256 = vmatprep.subr.mxu0 0.0
      %1257 = vmatpush1.msra.mxu0 0.0
      %1258 = vmatprep.subr.mxu0 0.0
      %1259 = vmatpush1.msra.mxu0 0.0
      %1260 = vmatprep.subr.mxu0 0.0
      %1261 = vmatpush1.msra.mxu0 0.0
      %1262 = vmatprep.subr.mxu0 0.0
      %1263 = vmatpush1.msra.mxu0 0.0
      %1264 = vmatprep.subr.mxu0 0.0
      %1265 = vmatpush1.msra.mxu0 0.0
      %1266 = vmatprep.subr.mxu0 0.0
      %1267 = vmatpush1.msra.mxu0 0.0
      %1268 = vmatprep.mubr.f32.mxu0 0.0
      %1269 = vmatmul.mubr.f32.gmra.mrb[0].mxu0 %v1199
      %v1270 = vpop.f32.mrb[0].mxu0
      %v1271 = vadd.f32 %v1196, %v1270
      %v1272 = vpop.f32.mrb[0].mxu0
      %1273 = vmatprep.mubr.f32.mxu0 0.0
      %1274 = vmatmul.mubr.f32.gmra.mrb[0].mxu0 %v1202
      %v1275 = vpop.f32.mrb[0].mxu0
      %v1276 = vadd.f32 %v1196, %v1275
      %v1277 = vpop.f32.mrb[0].mxu0
      %1278 = vdwg.mxu0
      %s1279 = scalar_lea.vmem %s5, 1
      %v1280 = vld [vmem:[%s1279] sm:$0x1]
      %v1282 = vlaneseq
      %v1283 = vshrl.u32 %v1282, 7
      %v1284 = vsub.s32 0, %v1283
      %v1285 = vrot.slane %v1280, %v1284
      %v1287 = vmul.f32 %v1271, %v1285
      %v1288 = vmul.f32 %v1276, %v1285
      %v1289 = vsel %vm614, %v1287, 0.0
      %1290 = vadd.xlane.f32.xlu0 %v1289
      %v1291 = vpop.xlane.xlu0 %1290
      %v1292 = vsel %vm614, %v1288, 0.0
      %1293 = vadd.xlane.f32.xlu0 %v1292
      %v1294 = vpop.xlane.xlu0 %1293
      %s1295 = scalar_lea.vmem %s6, 1
      %v1296 = vld [vmem:[%s1295] sm:$0x1]
      %v1298 = vlaneseq
      %v1299 = vshrl.u32 %v1298, 7
      %v1300 = vsub.s32 0, %v1299
      %v1301 = vrot.slane %v1296, %v1300
      %v1303 = vadd.f32 %v1291, %v1301
      %v1304 = vadd.f32 %v1294, %v1301
      %v1305 = vmul.f32 %v1303, %v720
      %v1306 = vmul.f32 %v1304, %v720
      %v1307 = vxor.u32 %v1305, 2147483648
      %v1308 = vxor.u32 %v1306, 2147483648
      %v1309 = vmul.f32 %v1307, 1.442695
      %v1310 = vpow.pop %v1309
      %v1311 = vmul.f32 %v1308, 1.442695
      %v1312 = vpow.pop %v1311
      %v1313 = vadd.f32 %v1310, 1.0
      %v1314 = vadd.f32 %v1312, 1.0
      %v1315 = vrcp.pop %v1313
      %v1316 = vmul.f32 1.0, %v1315
      %v1317 = vrcp.pop %v1314
      %v1318 = vmul.f32 1.0, %v1317
      %1319 = vxpose.xlu0.b32.start [1/16] %v1316, 128
      %1320 = vxpose.xlu0.b32.cont [2/16] %v1318, 128
      %1321 = vxpose.xlu0.b32.cont [3/16] 0.0, 128
      %1322 = vxpose.xlu0.b32.cont [4/16] 0.0, 128
      %1323 = vxpose.xlu0.b32.cont [5/16] 0.0, 128
      %1324 = vxpose.xlu0.b32.cont [6/16] 0.0, 128
      %1325 = vxpose.xlu0.b32.cont [7/16] 0.0, 128
      %1326 = vxpose.xlu0.b32.cont [8/16] 0.0, 128
      %1327 = vxpose.xlu0.b32.cont [9/16] 0.0, 128
      %1328 = vxpose.xlu0.b32.cont [10/16] 0.0, 128
      %1329 = vxpose.xlu0.b32.cont [11/16] 0.0, 128
      %1330 = vxpose.xlu0.b32.cont [12/16] 0.0, 128
      %1331 = vxpose.xlu0.b32.cont [13/16] 0.0, 128
      %1332 = vxpose.xlu0.b32.cont [14/16] 0.0, 128
      %1333 = vxpose.xlu0.b32.cont [15/16] 0.0, 128
      %1334 = vxpose.xlu0.b32.end [16/16] 0.0, 128
      %v1335 = vpop.trf.xlu0
      %v1336 = vpop.trf.xlu0
      %v1337 = vpop.trf.xlu0
      %v1338 = vpop.trf.xlu0
      %v1339 = vpop.trf.xlu0
      %v1340 = vpop.trf.xlu0
      %v1341 = vpop.trf.xlu0
      %v1342 = vpop.trf.xlu0
      %v1343 = vpop.trf.xlu0
      %v1344 = vpop.trf.xlu0
      %v1345 = vpop.trf.xlu0
      %v1346 = vpop.trf.xlu0
      %v1347 = vpop.trf.xlu0
      %v1348 = vpop.trf.xlu0
      %v1349 = vpop.trf.xlu0
      %v1350 = vpop.trf.xlu0
      %v1351 = vlaneseq
      %v1352 = vshrl.u32 %v1351, 7
      %v1353 = vsub.s32 0, %v1352
      %v1354 = vrot.slane %v1335, %v1353
      %1356 = vset.pattern.permute.xlu0 0
      %1357 = vperm.xlu0 %1356, %v1316
      %v1358 = vpop.permute.xlu0 %1357
      %1361 = vset.pattern.permute.xlu0 0
      %1362 = vperm.xlu0 %1361, %v1318
      %v1363 = vpop.permute.xlu0 %1362
      %vm1365 = vcmp.gt.f32.partialorder %v1354, %v1358
      %vm1366 = vcmp.gt.f32.partialorder %v1354, %v1363
      %vm1367 = vcmp.eq.f32.partialorder %v1354, %v1358
      %vm1368 = vcmp.eq.f32.partialorder %v1354, %v1363
      %vm1369 = vmand %vm1367, %vm790
      %vm1370 = vmand %vm1368, %vm791
      %vm1371 = vmor %vm1365, %vm1369
      %vm1372 = vmor %vm1366, %vm1370
      %v1373 = vsel %vm1371, 1, 0
      %v1374 = vsel %vm1372, 1, 0
      %v1375 = vcvt.s32.f32 %v1373
      %v1376 = vcvt.s32.f32 %v1374
      %v1377 = vsel %vm445, %v1375, 0.0
      %1378 = vadd.xlane.f32.xlu0 %v1377
      %v1379 = vpop.xlane.xlu0 %1378
      %v1380 = vsel %vm445, %v1376, 0.0
      %1381 = vadd.xlane.f32.xlu0 %v1380
      %v1382 = vpop.xlane.xlu0 %1381
      %1383 = vxpose.xlu0.b32.start [1/16] %v1379, 128
      %1384 = vxpose.xlu0.b32.cont [2/16] %v1382, 128
      %1385 = vxpose.xlu0.b32.cont [3/16] 0.0, 128
      %1386 = vxpose.xlu0.b32.cont [4/16] 0.0, 128
      %1387 = vxpose.xlu0.b32.cont [5/16] 0.0, 128
      %1388 = vxpose.xlu0.b32.cont [6/16] 0.0, 128
      %1389 = vxpose.xlu0.b32.cont [7/16] 0.0, 128
      %1390 = vxpose.xlu0.b32.cont [8/16] 0.0, 128
      %1391 = vxpose.xlu0.b32.cont [9/16] 0.0, 128
      %1392 = vxpose.xlu0.b32.cont [10/16] 0.0, 128
      %1393 = vxpose.xlu0.b32.cont [11/16] 0.0, 128
      %1394 = vxpose.xlu0.b32.cont [12/16] 0.0, 128
      %1395 = vxpose.xlu0.b32.cont [13/16] 0.0, 128
      %1396 = vxpose.xlu0.b32.cont [14/16] 0.0, 128
      %1397 = vxpose.xlu0.b32.cont [15/16] 0.0, 128
      %1398 = vxpose.xlu0.b32.end [16/16] 0.0, 128
      %v1399 = vpop.trf.xlu0
      %v1400 = vpop.trf.xlu0
      %v1401 = vpop.trf.xlu0
      %v1402 = vpop.trf.xlu0
      %v1403 = vpop.trf.xlu0
      %v1404 = vpop.trf.xlu0
      %v1405 = vpop.trf.xlu0
      %v1406 = vpop.trf.xlu0
      %v1407 = vpop.trf.xlu0
      %v1408 = vpop.trf.xlu0
      %v1409 = vpop.trf.xlu0
      %v1410 = vpop.trf.xlu0
      %v1411 = vpop.trf.xlu0
      %v1412 = vpop.trf.xlu0
      %v1413 = vpop.trf.xlu0
      %v1414 = vpop.trf.xlu0
      %v1415 = vcvt.f32.s32.to.zero.pseudo %v1399
      %v1416 = vlaneseq
      %v1417 = vshrl.u32 %v1416, 7
      %v1418 = vsub.s32 0, %v1417
      %v1419 = vrot.slane %v1415, %v1418
      %vm1420 = vcmp.eq.s32.totalorder %v768, %v1419
      %v1421 = vsel %vm1420, 1, 0
      %v1422 = vcvt.s32.f32 %v1421
      %v1423 = vcvt.f32.s32.to.zero.pseudo %v1379
      %v1424 = vcvt.f32.s32.to.zero.pseudo %v1382
      %vm1425 = vcmp.eq.s32.totalorder %v771, %v1423
      %vm1426 = vcmp.eq.s32.totalorder %v771, %v1424
      %v1427 = vsel %vm1425, 1, 0
      %v1428 = vsel %vm1426, 1, 0
      %v1429 = vcvt.s32.f32 %v1427
      %v1430 = vcvt.s32.f32 %v1428
      %v1431 = vmul.f32 %v1422, %v1354
      %v1432 = vsel %vm445, %v1431, 0.0
      %1433 = vadd.xlane.f32.xlu0 %v1432
      %v1434 = vpop.xlane.xlu0 %1433
      %v1436 = vsel %vm445, %v1422, 0
      %1438 = vmatprep.subr.mxu0 0.0
      %1439 = vmatpush1.msra.mxu0 %v1271
      %1440 = vmatprep.subr.mxu0 0.0
      %1441 = vmatpush1.msra.mxu0 %v1276
      %1442 = vmatprep.subr.mxu0 0.0
      %1443 = vmatpush1.msra.mxu0 0.0
      %1444 = vmatprep.subr.mxu0 0.0
      %1445 = vmatpush1.msra.mxu0 0.0
      %1446 = vmatprep.subr.mxu0 0.0
      %1447 = vmatpush1.msra.mxu0 0.0
      %1448 = vmatprep.subr.mxu0 0.0
      %1449 = vmatpush1.msra.mxu0 0.0
      %1450 = vmatprep.subr.mxu0 0.0
      %1451 = vmatpush1.msra.mxu0 0.0
      %1452 = vmatprep.subr.mxu0 0.0
      %1453 = vmatpush1.msra.mxu0 0.0
      %1454 = vmatprep.subr.mxu0 0.0
      %1455 = vmatpush1.msra.mxu0 0.0
      %1456 = vmatprep.subr.mxu0 0.0
      %1457 = vmatpush1.msra.mxu0 0.0
      %1458 = vmatprep.subr.mxu0 0.0
      %1459 = vmatpush1.msra.mxu0 0.0
      %1460 = vmatprep.subr.mxu0 0.0
      %1461 = vmatpush1.msra.mxu0 0.0
      %1462 = vmatprep.subr.mxu0 0.0
      %1463 = vmatpush1.msra.mxu0 0.0
      %1464 = vmatprep.subr.mxu0 0.0
      %1465 = vmatpush1.msra.mxu0 0.0
      %1466 = vmatprep.subr.mxu0 0.0
      %1467 = vmatpush1.msra.mxu0 0.0
      %1468 = vmatprep.subr.mxu0 0.0
      %1469 = vmatpush1.msra.mxu0 0.0
      %1470 = vmatprep.subr.mxu0 0.0
      %1471 = vmatpush1.msra.mxu0 0.0
      %1472 = vmatprep.subr.mxu0 0.0
      %1473 = vmatpush1.msra.mxu0 0.0
      %1474 = vmatprep.subr.mxu0 0.0
      %1475 = vmatpush1.msra.mxu0 0.0
      %1476 = vmatprep.subr.mxu0 0.0
      %1477 = vmatpush1.msra.mxu0 0.0
      %1478 = vmatprep.subr.mxu0 0.0
      %1479 = vmatpush1.msra.mxu0 0.0
      %1480 = vmatprep.subr.mxu0 0.0
      %1481 = vmatpush1.msra.mxu0 0.0
      %1482 = vmatprep.subr.mxu0 0.0
      %1483 = vmatpush1.msra.mxu0 0.0
      %1484 = vmatprep.subr.mxu0 0.0
      %1485 = vmatpush1.msra.mxu0 0.0
      %1486 = vmatprep.subr.mxu0 0.0
      %1487 = vmatpush1.msra.mxu0 0.0
      %1488 = vmatprep.subr.mxu0 0.0
      %1489 = vmatpush1.msra.mxu0 0.0
      %1490 = vmatprep.subr.mxu0 0.0
      %1491 = vmatpush1.msra.mxu0 0.0
      %1492 = vmatprep.subr.mxu0 0.0
      %1493 = vmatpush1.msra.mxu0 0.0
      %1494 = vmatprep.subr.mxu0 0.0
      %1495 = vmatpush1.msra.mxu0 0.0
      %1496 = vmatprep.subr.mxu0 0.0
      %1497 = vmatpush1.msra.mxu0 0.0
      %1498 = vmatprep.subr.mxu0 0.0
      %1499 = vmatpush1.msra.mxu0 0.0
      %1500 = vmatprep.subr.mxu0 0.0
      %1501 = vmatpush1.msra.mxu0 0.0
      %1502 = vmatprep.mubr.f32.mxu0 0.0
      %1503 = vmatmul.mubr.f32.gmra.mrb[0].mxu0 %v1436
      %v1504 = vpop.f32.mrb[0].mxu0
      %v1505 = vadd.f32 0.0, %v1504
      %v1506 = vpop.f32.mrb[0].mxu0
      %1507 = vdwg.mxu0
      %v1508 = vmul.f32 %v1505, %v1434
      %1509 = vmatprep.subr.mxu0 0.0
      %1510 = vmatpush1.msra.mxu0 %v1096
      %1511 = vmatprep.subr.mxu0 0.0
      %1512 = vmatpush1.msra.mxu0 %v1101
      %1513 = vmatprep.subr.mxu0 0.0
      %1514 = vmatpush1.msra.mxu0 0.0
      %1515 = vmatprep.subr.mxu0 0.0
      %1516 = vmatpush1.msra.mxu0 0.0
      %1517 = vmatprep.subr.mxu0 0.0
      %1518 = vmatpush1.msra.mxu0 0.0
      %1519 = vmatprep.subr.mxu0 0.0
      %1520 = vmatpush1.msra.mxu0 0.0
      %1521 = vmatprep.subr.mxu0 0.0
      %1522 = vmatpush1.msra.mxu0 0.0
      %1523 = vmatprep.subr.mxu0 0.0
      %1524 = vmatpush1.msra.mxu0 0.0
      %1525 = vmatprep.subr.mxu0 0.0
      %1526 = vmatpush1.msra.mxu0 0.0
      %1527 = vmatprep.subr.mxu0 0.0
      %1528 = vmatpush1.msra.mxu0 0.0
      %1529 = vmatprep.subr.mxu0 0.0
      %1530 = vmatpush1.msra.mxu0 0.0
      %1531 = vmatprep.subr.mxu0 0.0
      %1532 = vmatpush1.msra.mxu0 0.0
      %1533 = vmatprep.subr.mxu0 0.0
      %1534 = vmatpush1.msra.mxu0 0.0
      %1535 = vmatprep.subr.mxu0 0.0
      %1536 = vmatpush1.msra.mxu0 0.0
      %1537 = vmatprep.subr.mxu0 0.0
      %1538 = vmatpush1.msra.mxu0 0.0
      %1539 = vmatprep.subr.mxu0 0.0
      %1540 = vmatpush1.msra.mxu0 0.0
      %1541 = vmatprep.subr.mxu0 0.0
      %1542 = vmatpush1.msra.mxu0 0.0
      %1543 = vmatprep.subr.mxu0 0.0
      %1544 = vmatpush1.msra.mxu0 0.0
      %1545 = vmatprep.subr.mxu0 0.0
      %1546 = vmatpush1.msra.mxu0 0.0
      %1547 = vmatprep.subr.mxu0 0.0
      %1548 = vmatpush1.msra.mxu0 0.0
      %1549 = vmatprep.subr.mxu0 0.0
      %1550 = vmatpush1.msra.mxu0 0.0
      %1551 = vmatprep.subr.mxu0 0.0
      %1552 = vmatpush1.msra.mxu0 0.0
      %1553 = vmatprep.subr.mxu0 0.0
      %1554 = vmatpush1.msra.mxu0 0.0
      %1555 = vmatprep.subr.mxu0 0.0
      %1556 = vmatpush1.msra.mxu0 0.0
      %1557 = vmatprep.subr.mxu0 0.0
      %1558 = vmatpush1.msra.mxu0 0.0
      %1559 = vmatprep.subr.mxu0 0.0
      %1560 = vmatpush1.msra.mxu0 0.0
      %1561 = vmatprep.subr.mxu0 0.0
      %1562 = vmatpush1.msra.mxu0 0.0
      %1563 = vmatprep.subr.mxu0 0.0
      %1564 = vmatpush1.msra.mxu0 0.0
      %1565 = vmatprep.subr.mxu0 0.0
      %1566 = vmatpush1.msra.mxu0 0.0
      %1567 = vmatprep.subr.mxu0 0.0
      %1568 = vmatpush1.msra.mxu0 0.0
      %1569 = vmatprep.subr.mxu0 0.0
      %1570 = vmatpush1.msra.mxu0 0.0
      %1571 = vmatprep.subr.mxu0 0.0
      %1572 = vmatpush1.msra.mxu0 0.0
      %1573 = vmatprep.mubr.f32.mxu0 0.0
      %1574 = vmatmul.mubr.f32.gmra.mrb[0].mxu0 %v1436
      %v1575 = vpop.f32.mrb[0].mxu0
      %v1576 = vadd.f32 0.0, %v1575
      %v1577 = vpop.f32.mrb[0].mxu0
      %1578 = vdwg.mxu0
      %v1580 = vsel %vm445, %v1576, 0
      %1582 = vmatprep.subr.mxu0 0.0
      %1583 = vmatpush1.msra.mxu0 %v1429
      %1584 = vmatprep.subr.mxu0 0.0
      %1585 = vmatpush1.msra.mxu0 %v1430
      %1586 = vmatprep.subr.mxu0 0.0
      %1587 = vmatpush1.msra.mxu0 0.0
      %1588 = vmatprep.subr.mxu0 0.0
      %1589 = vmatpush1.msra.mxu0 0.0
      %1590 = vmatprep.subr.mxu0 0.0
      %1591 = vmatpush1.msra.mxu0 0.0
      %1592 = vmatprep.subr.mxu0 0.0
      %1593 = vmatpush1.msra.mxu0 0.0
      %1594 = vmatprep.subr.mxu0 0.0
      %1595 = vmatpush1.msra.mxu0 0.0
      %1596 = vmatprep.subr.mxu0 0.0
      %1597 = vmatpush1.msra.mxu0 0.0
      %1598 = vmatprep.subr.mxu0 0.0
      %1599 = vmatpush1.msra.mxu0 0.0
      %1600 = vmatprep.subr.mxu0 0.0
      %1601 = vmatpush1.msra.mxu0 0.0
      %1602 = vmatprep.subr.mxu0 0.0
      %1603 = vmatpush1.msra.mxu0 0.0
      %1604 = vmatprep.subr.mxu0 0.0
      %1605 = vmatpush1.msra.mxu0 0.0
      %1606 = vmatprep.subr.mxu0 0.0
      %1607 = vmatpush1.msra.mxu0 0.0
      %1608 = vmatprep.subr.mxu0 0.0
      %1609 = vmatpush1.msra.mxu0 0.0
      %1610 = vmatprep.subr.mxu0 0.0
      %1611 = vmatpush1.msra.mxu0 0.0
      %1612 = vmatprep.subr.mxu0 0.0
      %1613 = vmatpush1.msra.mxu0 0.0
      %1614 = vmatprep.subr.mxu0 0.0
      %1615 = vmatpush1.msra.mxu0 0.0
      %1616 = vmatprep.subr.mxu0 0.0
      %1617 = vmatpush1.msra.mxu0 0.0
      %1618 = vmatprep.subr.mxu0 0.0
      %1619 = vmatpush1.msra.mxu0 0.0
      %1620 = vmatprep.subr.mxu0 0.0
      %1621 = vmatpush1.msra.mxu0 0.0
      %1622 = vmatprep.subr.mxu0 0.0
      %1623 = vmatpush1.msra.mxu0 0.0
      %1624 = vmatprep.subr.mxu0 0.0
      %1625 = vmatpush1.msra.mxu0 0.0
      %1626 = vmatprep.subr.mxu0 0.0
      %1627 = vmatpush1.msra.mxu0 0.0
      %1628 = vmatprep.subr.mxu0 0.0
      %1629 = vmatpush1.msra.mxu0 0.0
      %1630 = vmatprep.subr.mxu0 0.0
      %1631 = vmatpush1.msra.mxu0 0.0
      %1632 = vmatprep.subr.mxu0 0.0
      %1633 = vmatpush1.msra.mxu0 0.0
      %1634 = vmatprep.subr.mxu0 0.0
      %1635 = vmatpush1.msra.mxu0 0.0
      %1636 = vmatprep.subr.mxu0 0.0
      %1637 = vmatpush1.msra.mxu0 0.0
      %1638 = vmatprep.subr.mxu0 0.0
      %1639 = vmatpush1.msra.mxu0 0.0
      %1640 = vmatprep.subr.mxu0 0.0
      %1641 = vmatpush1.msra.mxu0 0.0
      %1642 = vmatprep.subr.mxu0 0.0
      %1643 = vmatpush1.msra.mxu0 0.0
      %1644 = vmatprep.subr.mxu0 0.0
      %1645 = vmatpush1.msra.mxu0 0.0
      %1646 = vmatprep.mubr.f32.mxu0 0.0
      %1647 = vmatmul.mubr.f32.gmra.mrb[0].mxu0 %v1580
      %v1648 = vpop.f32.mrb[0].mxu0
      %v1649 = vadd.f32 0.0, %v1648
      %v1650 = vpop.f32.mrb[0].mxu0
      %1651 = vdwg.mxu0
      %s1652 = scalar_lea.vmem %s3, 64
      %v1653 = vld [vmem:[%s1652] sm:$0xff]
      %v1654 = vld [vmem:[%s1652 + $0x8] sm:$0xff]
      %v1655 = vld [vmem:[%s1652 + $0x10] sm:$0xff]
      %v1656 = vld [vmem:[%s1652 + $0x18] sm:$0xff]
      %s1657 = scalar_lea.vmem %s4, 3
      %v1658 = vld [vmem:[%s1657] sm:$0x1]
      %vm1659 = vcmask 64512
      %v1661 = vsel %vm1659, %v1649, 0
      %1663 = vmatprep.subr.mxu0 0.0
      %1664 = vmatpush1.msra.mxu0 %v1508
      %1665 = vmatprep.subr.mxu0 0.0
      %1666 = vmatpush1.msra.mxu0 0.0
      %1667 = vmatprep.subr.mxu0 0.0
      %1668 = vmatpush1.msra.mxu0 0.0
      %1669 = vmatprep.subr.mxu0 0.0
      %1670 = vmatpush1.msra.mxu0 0.0
      %1671 = vmatprep.subr.mxu0 0.0
      %1672 = vmatpush1.msra.mxu0 0.0
      %1673 = vmatprep.subr.mxu0 0.0
      %1674 = vmatpush1.msra.mxu0 0.0
      %1675 = vmatprep.subr.mxu0 0.0
      %1676 = vmatpush1.msra.mxu0 0.0
      %1677 = vmatprep.subr.mxu0 0.0
      %1678 = vmatpush1.msra.mxu0 0.0
      %1679 = vmatprep.subr.mxu0 0.0
      %1680 = vmatpush1.msra.mxu0 0.0
      %1681 = vmatprep.subr.mxu0 0.0
      %1682 = vmatpush1.msra.mxu0 0.0
      %1683 = vmatprep.subr.mxu0 0.0
      %1684 = vmatpush1.msra.mxu0 0.0
      %1685 = vmatprep.subr.mxu0 0.0
      %1686 = vmatpush1.msra.mxu0 0.0
      %1687 = vmatprep.subr.mxu0 0.0
      %1688 = vmatpush1.msra.mxu0 0.0
      %1689 = vmatprep.subr.mxu0 0.0
      %1690 = vmatpush1.msra.mxu0 0.0
      %1691 = vmatprep.subr.mxu0 0.0
      %1692 = vmatpush1.msra.mxu0 0.0
      %1693 = vmatprep.subr.mxu0 0.0
      %1694 = vmatpush1.msra.mxu0 0.0
      %1695 = vmatprep.subr.mxu0 0.0
      %1696 = vmatpush1.msra.mxu0 0.0
      %1697 = vmatprep.subr.mxu0 0.0
      %1698 = vmatpush1.msra.mxu0 0.0
      %1699 = vmatprep.subr.mxu0 0.0
      %1700 = vmatpush1.msra.mxu0 0.0
      %1701 = vmatprep.subr.mxu0 0.0
      %1702 = vmatpush1.msra.mxu0 0.0
      %1703 = vmatprep.subr.mxu0 0.0
      %1704 = vmatpush1.msra.mxu0 0.0
      %1705 = vmatprep.subr.mxu0 0.0
      %1706 = vmatpush1.msra.mxu0 0.0
      %1707 = vmatprep.subr.mxu0 0.0
      %1708 = vmatpush1.msra.mxu0 0.0
      %1709 = vmatprep.subr.mxu0 0.0
      %1710 = vmatpush1.msra.mxu0 0.0
      %1711 = vmatprep.subr.mxu0 0.0
      %1712 = vmatpush1.msra.mxu0 0.0
      %1713 = vmatprep.subr.mxu0 0.0
      %1714 = vmatpush1.msra.mxu0 0.0
      %1715 = vmatprep.subr.mxu0 0.0
      %1716 = vmatpush1.msra.mxu0 0.0
      %1717 = vmatprep.subr.mxu0 0.0
      %1718 = vmatpush1.msra.mxu0 0.0
      %1719 = vmatprep.subr.mxu0 0.0
      %1720 = vmatpush1.msra.mxu0 0.0
      %1721 = vmatprep.subr.mxu0 0.0
      %1722 = vmatpush1.msra.mxu0 0.0
      %1723 = vmatprep.subr.mxu0 0.0
      %1724 = vmatpush1.msra.mxu0 0.0
      %1725 = vmatprep.subr.mxu0 0.0
      %1726 = vmatpush1.msra.mxu0 0.0
      %1727 = vmatprep.mubr.f32.mxu0 0.0
      %1728 = vmatmul.mubr.f32.gmra.mrb[0].mxu0 %v1661
      %v1729 = vpop.f32.mrb[0].mxu0
      %v1730 = vadd.f32 0.0, %v1729
      %v1731 = vpop.f32.mrb[0].mxu0
      %1732 = vdwg.mxu0
      %v1734 = vlaneseq
      %v1735 = vshrl.u32 %v1734, 7
      %v1736 = vsub.s32 0, %v1735
      %v1737 = vrot.slane %v1658, %v1736
      %v1740 = vsel %vm614, %v1730, 0
      %1742 = vmatprep.subr.mxu0 0.0
      %1743 = vmatpush1.msra.mxu0 %v1653
      %1744 = vmatprep.subr.mxu0 0.0
      %1745 = vmatpush1.msra.mxu0 %v1654
      %1746 = vmatprep.subr.mxu0 0.0
      %1747 = vmatpush1.msra.mxu0 %v1655
      %1748 = vmatprep.subr.mxu0 0.0
      %1749 = vmatpush1.msra.mxu0 %v1656
      %1750 = vmatprep.subr.mxu0 0.0
      %1751 = vmatpush1.msra.mxu0 0.0
      %1752 = vmatprep.subr.mxu0 0.0
      %1753 = vmatpush1.msra.mxu0 0.0
      %1754 = vmatprep.subr.mxu0 0.0
      %1755 = vmatpush1.msra.mxu0 0.0
      %1756 = vmatprep.subr.mxu0 0.0
      %1757 = vmatpush1.msra.mxu0 0.0
      %1758 = vmatprep.subr.mxu0 0.0
      %1759 = vmatpush1.msra.mxu0 0.0
      %1760 = vmatprep.subr.mxu0 0.0
      %1761 = vmatpush1.msra.mxu0 0.0
      %1762 = vmatprep.subr.mxu0 0.0
      %1763 = vmatpush1.msra.mxu0 0.0
      %1764 = vmatprep.subr.mxu0 0.0
      %1765 = vmatpush1.msra.mxu0 0.0
      %1766 = vmatprep.subr.mxu0 0.0
      %1767 = vmatpush1.msra.mxu0 0.0
      %1768 = vmatprep.subr.mxu0 0.0
      %1769 = vmatpush1.msra.mxu0 0.0
      %1770 = vmatprep.subr.mxu0 0.0
      %1771 = vmatpush1.msra.mxu0 0.0
      %1772 = vmatprep.subr.mxu0 0.0
      %1773 = vmatpush1.msra.mxu0 0.0
      %1774 = vmatprep.subr.mxu0 0.0
      %1775 = vmatpush1.msra.mxu0 0.0
      %1776 = vmatprep.subr.mxu0 0.0
      %1777 = vmatpush1.msra.mxu0 0.0
      %1778 = vmatprep.subr.mxu0 0.0
      %1779 = vmatpush1.msra.mxu0 0.0
      %1780 = vmatprep.subr.mxu0 0.0
      %1781 = vmatpush1.msra.mxu0 0.0
      %1782 = vmatprep.subr.mxu0 0.0
      %1783 = vmatpush1.msra.mxu0 0.0
      %1784 = vmatprep.subr.mxu0 0.0
      %1785 = vmatpush1.msra.mxu0 0.0
      %1786 = vmatprep.subr.mxu0 0.0
      %1787 = vmatpush1.msra.mxu0 0.0
      %1788 = vmatprep.subr.mxu0 0.0
      %1789 = vmatpush1.msra.mxu0 0.0
      %1790 = vmatprep.subr.mxu0 0.0
      %1791 = vmatpush1.msra.mxu0 0.0
      %1792 = vmatprep.subr.mxu0 0.0
      %1793 = vmatpush1.msra.mxu0 0.0
      %1794 = vmatprep.subr.mxu0 0.0
      %1795 = vmatpush1.msra.mxu0 0.0
      %1796 = vmatprep.subr.mxu0 0.0
      %1797 = vmatpush1.msra.mxu0 0.0
      %1798 = vmatprep.subr.mxu0 0.0
      %1799 = vmatpush1.msra.mxu0 0.0
      %1800 = vmatprep.subr.mxu0 0.0
      %1801 = vmatpush1.msra.mxu0 0.0
      %1802 = vmatprep.subr.mxu0 0.0
      %1803 = vmatpush1.msra.mxu0 0.0
      %1804 = vmatprep.subr.mxu0 0.0
      %1805 = vmatpush1.msra.mxu0 0.0
      %1806 = vmatprep.mubr.f32.mxu0 0.0
      %1807 = vmatmul.mubr.f32.gmra.mrb[0].mxu0 %v1740
      %v1808 = vpop.f32.mrb[0].mxu0
      %v1809 = vadd.f32 %v1737, %v1808
      %v1810 = vpop.f32.mrb[0].mxu0
      %1811 = vdwg.mxu0
      %v1813 = vsel %vm1659, %v1429, 0
      %v1816 = vsel %vm1659, %v1430, 0
      %1818 = vmatprep.subr.mxu0 0.0
      %1819 = vmatpush1.msra.mxu0 %v1809
      %1820 = vmatprep.subr.mxu0 0.0
      %1821 = vmatpush1.msra.mxu0 0.0
      %1822 = vmatprep.subr.mxu0 0.0
      %1823 = vmatpush1.msra.mxu0 0.0
      %1824 = vmatprep.subr.mxu0 0.0
      %1825 = vmatpush1.msra.mxu0 0.0
      %1826 = vmatprep.subr.mxu0 0.0
      %1827 = vmatpush1.msra.mxu0 0.0
      %1828 = vmatprep.subr.mxu0 0.0
      %1829 = vmatpush1.msra.mxu0 0.0
      %1830 = vmatprep.subr.mxu0 0.0
      %1831 = vmatpush1.msra.mxu0 0.0
      %1832 = vmatprep.subr.mxu0 0.0
      %1833 = vmatpush1.msra.mxu0 0.0
      %1834 = vmatprep.subr.mxu0 0.0
      %1835 = vmatpush1.msra.mxu0 0.0
      %1836 = vmatprep.subr.mxu0 0.0
      %1837 = vmatpush1.msra.mxu0 0.0
      %1838 = vmatprep.subr.mxu0 0.0
      %1839 = vmatpush1.msra.mxu0 0.0
      %1840 = vmatprep.subr.mxu0 0.0
      %1841 = vmatpush1.msra.mxu0 0.0
      %1842 = vmatprep.subr.mxu0 0.0
      %1843 = vmatpush1.msra.mxu0 0.0
      %1844 = vmatprep.subr.mxu0 0.0
      %1845 = vmatpush1.msra.mxu0 0.0
      %1846 = vmatprep.subr.mxu0 0.0
      %1847 = vmatpush1.msra.mxu0 0.0
      %1848 = vmatprep.subr.mxu0 0.0
      %1849 = vmatpush1.msra.mxu0 0.0
      %1850 = vmatprep.subr.mxu0 0.0
      %1851 = vmatpush1.msra.mxu0 0.0
      %1852 = vmatprep.subr.mxu0 0.0
      %1853 = vmatpush1.msra.mxu0 0.0
      %1854 = vmatprep.subr.mxu0 0.0
      %1855 = vmatpush1.msra.mxu0 0.0
      %1856 = vmatprep.subr.mxu0 0.0
      %1857 = vmatpush1.msra.mxu0 0.0
      %1858 = vmatprep.subr.mxu0 0.0
      %1859 = vmatpush1.msra.mxu0 0.0
      %1860 = vmatprep.subr.mxu0 0.0
      %1861 = vmatpush1.msra.mxu0 0.0
      %1862 = vmatprep.subr.mxu0 0.0
      %1863 = vmatpush1.msra.mxu0 0.0
      %1864 = vmatprep.subr.mxu0 0.0
      %1865 = vmatpush1.msra.mxu0 0.0
      %1866 = vmatprep.subr.mxu0 0.0
      %1867 = vmatpush1.msra.mxu0 0.0
      %1868 = vmatprep.subr.mxu0 0.0
      %1869 = vmatpush1.msra.mxu0 0.0
      %1870 = vmatprep.subr.mxu0 0.0
      %1871 = vmatpush1.msra.mxu0 0.0
      %1872 = vmatprep.subr.mxu0 0.0
      %1873 = vmatpush1.msra.mxu0 0.0
      %1874 = vmatprep.subr.mxu0 0.0
      %1875 = vmatpush1.msra.mxu0 0.0
      %1876 = vmatprep.subr.mxu0 0.0
      %1877 = vmatpush1.msra.mxu0 0.0
      %1878 = vmatprep.subr.mxu0 0.0
      %1879 = vmatpush1.msra.mxu0 0.0
      %1880 = vmatprep.subr.mxu0 0.0
      %1881 = vmatpush1.msra.mxu0 0.0
      %1882 = vmatprep.mubr.f32.mxu0 0.0
      %1883 = vmatmul.mubr.f32.gmra.mrb[0].mxu0 %v1813
      %v1884 = vpop.f32.mrb[0].mxu0
      %v1885 = vadd.f32 0.0, %v1884
      %v1886 = vpop.f32.mrb[0].mxu0
      %1887 = vmatprep.mubr.f32.mxu0 0.0
      %1888 = vmatmul.mubr.f32.gmra.mrb[0].mxu0 %v1816
      %v1889 = vpop.f32.mrb[0].mxu0
      %v1890 = vadd.f32 0.0, %v1889
      %v1891 = vpop.f32.mrb[0].mxu0
      %1892 = vdwg.mxu0
      %s1893 = scalar_lea.vmem %s3, 96
      %v1894 = vld [vmem:[%s1893] sm:$0xff]
      %v1895 = vld [vmem:[%s1893 + $0x8] sm:$0xff]
      %v1896 = vld [vmem:[%s1893 + $0x10] sm:$0xff]
      %v1897 = vld [vmem:[%s1893 + $0x18] sm:$0xff]
      %s1898 = scalar_lea.vmem %s4, 4
      %v1899 = vld [vmem:[%s1898] sm:$0x1]
      %1900 = vmatprep.subr.mxu0 0.0
      %1901 = vmatpush1.msra.mxu0 %v1885
      %1902 = vmatprep.subr.mxu0 0.0
      %1903 = vmatpush1.msra.mxu0 %v1890
      %1904 = vmatprep.subr.mxu0 0.0
      %1905 = vmatpush1.msra.mxu0 0.0
      %1906 = vmatprep.subr.mxu0 0.0
      %1907 = vmatpush1.msra.mxu0 0.0
      %1908 = vmatprep.subr.mxu0 0.0
      %1909 = vmatpush1.msra.mxu0 0.0
      %1910 = vmatprep.subr.mxu0 0.0
      %1911 = vmatpush1.msra.mxu0 0.0
      %1912 = vmatprep.subr.mxu0 0.0
      %1913 = vmatpush1.msra.mxu0 0.0
      %1914 = vmatprep.subr.mxu0 0.0
      %1915 = vmatpush1.msra.mxu0 0.0
      %1916 = vmatprep.subr.mxu0 0.0
      %1917 = vmatpush1.msra.mxu0 0.0
      %1918 = vmatprep.subr.mxu0 0.0
      %1919 = vmatpush1.msra.mxu0 0.0
      %1920 = vmatprep.subr.mxu0 0.0
      %1921 = vmatpush1.msra.mxu0 0.0
      %1922 = vmatprep.subr.mxu0 0.0
      %1923 = vmatpush1.msra.mxu0 0.0
      %1924 = vmatprep.subr.mxu0 0.0
      %1925 = vmatpush1.msra.mxu0 0.0
      %1926 = vmatprep.subr.mxu0 0.0
      %1927 = vmatpush1.msra.mxu0 0.0
      %1928 = vmatprep.subr.mxu0 0.0
      %1929 = vmatpush1.msra.mxu0 0.0
      %1930 = vmatprep.subr.mxu0 0.0
      %1931 = vmatpush1.msra.mxu0 0.0
      %1932 = vmatprep.subr.mxu0 0.0
      %1933 = vmatpush1.msra.mxu0 0.0
      %1934 = vmatprep.subr.mxu0 0.0
      %1935 = vmatpush1.msra.mxu0 0.0
      %1936 = vmatprep.subr.mxu0 0.0
      %1937 = vmatpush1.msra.mxu0 0.0
      %1938 = vmatprep.subr.mxu0 0.0
      %1939 = vmatpush1.msra.mxu0 0.0
      %1940 = vmatprep.subr.mxu0 0.0
      %1941 = vmatpush1.msra.mxu0 0.0
      %1942 = vmatprep.subr.mxu0 0.0
      %1943 = vmatpush1.msra.mxu0 0.0
      %1944 = vmatprep.subr.mxu0 0.0
      %1945 = vmatpush1.msra.mxu0 0.0
      %1946 = vmatprep.subr.mxu0 0.0
      %1947 = vmatpush1.msra.mxu0 0.0
      %1948 = vmatprep.subr.mxu0 0.0
      %1949 = vmatpush1.msra.mxu0 0.0
      %1950 = vmatprep.subr.mxu0 0.0
      %1951 = vmatpush1.msra.mxu0 0.0
      %1952 = vmatprep.subr.mxu0 0.0
      %1953 = vmatpush1.msra.mxu0 0.0
      %1954 = vmatprep.subr.mxu0 0.0
      %1955 = vmatpush1.msra.mxu0 0.0
      %1956 = vmatprep.subr.mxu0 0.0
      %1957 = vmatpush1.msra.mxu0 0.0
      %1958 = vmatprep.subr.mxu0 0.0
      %1959 = vmatpush1.msra.mxu0 0.0
      %1960 = vmatprep.subr.mxu0 0.0
      %1961 = vmatpush1.msra.mxu0 0.0
      %1962 = vmatprep.subr.mxu0 0.0
      %1963 = vmatpush1.msra.mxu0 0.0
      %1964 = vmatprep.mubr.f32.mxu0 0.0
      %1965 = vmatmul.mubr.f32.gmra.mrb[0].mxu0 %v1112
      %v1966 = vpop.f32.mrb[0].mxu0
      %v1967 = vadd.f32 0.0, %v1966
      %v1968 = vpop.f32.mrb[0].mxu0
      %1969 = vmatprep.mubr.f32.mxu0 0.0
      %1970 = vmatmul.mubr.f32.gmra.mrb[0].mxu0 %v1115
      %v1971 = vpop.f32.mrb[0].mxu0
      %v1972 = vadd.f32 0.0, %v1971
      %v1973 = vpop.f32.mrb[0].mxu0
      %1974 = vdwg.mxu0
      %v1976 = vlaneseq
      %v1977 = vshrl.u32 %v1976, 7
      %v1978 = vsub.s32 0, %v1977
      %v1979 = vrot.slane %v1899, %v1978
      %v1982 = vsel %vm614, %v1967, 0
      %v1985 = vsel %vm614, %v1972, 0
      %1987 = vmatprep.subr.mxu0 0.0
      %1988 = vmatpush1.msra.mxu0 %v1894
      %1989 = vmatprep.subr.mxu0 0.0
      %1990 = vmatpush1.msra.mxu0 %v1895
      %1991 = vmatprep.subr.mxu0 0.0
      %1992 = vmatpush1.msra.mxu0 %v1896
      %1993 = vmatprep.subr.mxu0 0.0
      %1994 = vmatpush1.msra.mxu0 %v1897
      %1995 = vmatprep.subr.mxu0 0.0
      %1996 = vmatpush1.msra.mxu0 0.0
      %1997 = vmatprep.subr.mxu0 0.0
      %1998 = vmatpush1.msra.mxu0 0.0
      %1999 = vmatprep.subr.mxu0 0.0
      %2000 = vmatpush1.msra.mxu0 0.0
      %2001 = vmatprep.subr.mxu0 0.0
      %2002 = vmatpush1.msra.mxu0 0.0
      %2003 = vmatprep.subr.mxu0 0.0
      %2004 = vmatpush1.msra.mxu0 0.0
      %2005 = vmatprep.subr.mxu0 0.0
      %2006 = vmatpush1.msra.mxu0 0.0
      %2007 = vmatprep.subr.mxu0 0.0
      %2008 = vmatpush1.msra.mxu0 0.0
      %2009 = vmatprep.subr.mxu0 0.0
      %2010 = vmatpush1.msra.mxu0 0.0
      %2011 = vmatprep.subr.mxu0 0.0
      %2012 = vmatpush1.msra.mxu0 0.0
      %2013 = vmatprep.subr.mxu0 0.0
      %2014 = vmatpush1.msra.mxu0 0.0
      %2015 = vmatprep.subr.mxu0 0.0
      %2016 = vmatpush1.msra.mxu0 0.0
      %2017 = vmatprep.subr.mxu0 0.0
      %2018 = vmatpush1.msra.mxu0 0.0
      %2019 = vmatprep.subr.mxu0 0.0
      %2020 = vmatpush1.msra.mxu0 0.0
      %2021 = vmatprep.subr.mxu0 0.0
      %2022 = vmatpush1.msra.mxu0 0.0
      %2023 = vmatprep.subr.mxu0 0.0
      %2024 = vmatpush1.msra.mxu0 0.0
      %2025 = vmatprep.subr.mxu0 0.0
      %2026 = vmatpush1.msra.mxu0 0.0
      %2027 = vmatprep.subr.mxu0 0.0
      %2028 = vmatpush1.msra.mxu0 0.0
      %2029 = vmatprep.subr.mxu0 0.0
      %2030 = vmatpush1.msra.mxu0 0.0
      %2031 = vmatprep.subr.mxu0 0.0
      %2032 = vmatpush1.msra.mxu0 0.0
      %2033 = vmatprep.subr.mxu0 0.0
      %2034 = vmatpush1.msra.mxu0 0.0
      %2035 = vmatprep.subr.mxu0 0.0
      %2036 = vmatpush1.msra.mxu0 0.0
      %2037 = vmatprep.subr.mxu0 0.0
      %2038 = vmatpush1.msra.mxu0 0.0
      %2039 = vmatprep.subr.mxu0 0.0
      %2040 = vmatpush1.msra.mxu0 0.0
      %2041 = vmatprep.subr.mxu0 0.0
      %2042 = vmatpush1.msra.mxu0 0.0
      %2043 = vmatprep.subr.mxu0 0.0
      %2044 = vmatpush1.msra.mxu0 0.0
      %2045 = vmatprep.subr.mxu0 0.0
      %2046 = vmatpush1.msra.mxu0 0.0
      %2047 = vmatprep.subr.mxu0 0.0
      %2048 = vmatpush1.msra.mxu0 0.0
      %2049 = vmatprep.subr.mxu0 0.0
      %2050 = vmatpush1.msra.mxu0 0.0
      %2051 = vmatprep.mubr.f32.mxu0 0.0
      %2052 = vmatmul.mubr.f32.gmra.mrb[0].mxu0 %v1982
      %v2053 = vpop.f32.mrb[0].mxu0
      %v2054 = vadd.f32 %v1979, %v2053
      %v2055 = vpop.f32.mrb[0].mxu0
      %2056 = vmatprep.mubr.f32.mxu0 0.0
      %2057 = vmatmul.mubr.f32.gmra.mrb[0].mxu0 %v1985
      %v2058 = vpop.f32.mrb[0].mxu0
      %v2059 = vadd.f32 %v1979, %v2058
      %v2060 = vpop.f32.mrb[0].mxu0
      %2061 = vdwg.mxu0
      %v2062 = vadd.f32 %v2054, %v1271
      %v2063 = vadd.f32 %v2059, %v1276
      %v2065 = vsel %vm445, %v855, 0
      %v2068 = vsel %vm445, %v856, 0
      %2070 = vmatprep.subr.mxu0 0.0
      %2071 = vmatpush1.msra.mxu0 %v2062
      %2072 = vmatprep.subr.mxu0 0.0
      %2073 = vmatpush1.msra.mxu0 %v2063
      %2074 = vmatprep.subr.mxu0 0.0
      %2075 = vmatpush1.msra.mxu0 0.0
      %2076 = vmatprep.subr.mxu0 0.0
      %2077 = vmatpush1.msra.mxu0 0.0
      %2078 = vmatprep.subr.mxu0 0.0
      %2079 = vmatpush1.msra.mxu0 0.0
      %2080 = vmatprep.subr.mxu0 0.0
      %2081 = vmatpush1.msra.mxu0 0.0
      %2082 = vmatprep.subr.mxu0 0.0
      %2083 = vmatpush1.msra.mxu0 0.0
      %2084 = vmatprep.subr.mxu0 0.0
      %2085 = vmatpush1.msra.mxu0 0.0
      %2086 = vmatprep.subr.mxu0 0.0
      %2087 = vmatpush1.msra.mxu0 0.0
      %2088 = vmatprep.subr.mxu0 0.0
      %2089 = vmatpush1.msra.mxu0 0.0
      %2090 = vmatprep.subr.mxu0 0.0
      %2091 = vmatpush1.msra.mxu0 0.0
      %2092 = vmatprep.subr.mxu0 0.0
      %2093 = vmatpush1.msra.mxu0 0.0
      %2094 = vmatprep.subr.mxu0 0.0
      %2095 = vmatpush1.msra.mxu0 0.0
      %2096 = vmatprep.subr.mxu0 0.0
      %2097 = vmatpush1.msra.mxu0 0.0
      %2098 = vmatprep.subr.mxu0 0.0
      %2099 = vmatpush1.msra.mxu0 0.0
      %2100 = vmatprep.subr.mxu0 0.0
      %2101 = vmatpush1.msra.mxu0 0.0
      %2102 = vmatprep.subr.mxu0 0.0
      %2103 = vmatpush1.msra.mxu0 0.0
      %2104 = vmatprep.subr.mxu0 0.0
      %2105 = vmatpush1.msra.mxu0 0.0
      %2106 = vmatprep.subr.mxu0 0.0
      %2107 = vmatpush1.msra.mxu0 0.0
      %2108 = vmatprep.subr.mxu0 0.0
      %2109 = vmatpush1.msra.mxu0 0.0
      %2110 = vmatprep.subr.mxu0 0.0
      %2111 = vmatpush1.msra.mxu0 0.0
      %2112 = vmatprep.subr.mxu0 0.0
      %2113 = vmatpush1.msra.mxu0 0.0
      %2114 = vmatprep.subr.mxu0 0.0
      %2115 = vmatpush1.msra.mxu0 0.0
      %2116 = vmatprep.subr.mxu0 0.0
      %2117 = vmatpush1.msra.mxu0 0.0
      %2118 = vmatprep.subr.mxu0 0.0
      %2119 = vmatpush1.msra.mxu0 0.0
      %2120 = vmatprep.subr.mxu0 0.0
      %2121 = vmatpush1.msra.mxu0 0.0
      %2122 = vmatprep.subr.mxu0 0.0
      %2123 = vmatpush1.msra.mxu0 0.0
      %2124 = vmatprep.subr.mxu0 0.0
      %2125 = vmatpush1.msra.mxu0 0.0
      %2126 = vmatprep.subr.mxu0 0.0
      %2127 = vmatpush1.msra.mxu0 0.0
      %2128 = vmatprep.subr.mxu0 0.0
      %2129 = vmatpush1.msra.mxu0 0.0
      %2130 = vmatprep.subr.mxu0 0.0
      %2131 = vmatpush1.msra.mxu0 0.0
      %2132 = vmatprep.subr.mxu0 0.0
      %2133 = vmatpush1.msra.mxu0 0.0
      %2134 = vmatprep.mubr.f32.mxu0 0.0
      %2135 = vmatmul.mubr.f32.gmra.mrb[0].mxu0 %v2065
      %v2136 = vpop.f32.mrb[0].mxu0
      %v2137 = vadd.f32 0.0, %v2136
      %v2138 = vpop.f32.mrb[0].mxu0
      %2139 = vmatprep.mubr.f32.mxu0 0.0
      %2140 = vmatmul.mubr.f32.gmra.mrb[0].mxu0 %v2068
      %v2141 = vpop.f32.mrb[0].mxu0
      %v2142 = vadd.f32 0.0, %v2141
      %v2143 = vpop.f32.mrb[0].mxu0
      %2144 = vdwg.mxu0
      %s2145 = scalar_lea.vmem %s3, 128
      %v2146 = vld [vmem:[%s2145] sm:$0xff]
      %v2147 = vld [vmem:[%s2145 + $0x8] sm:$0xff]
      %v2148 = vld [vmem:[%s2145 + $0x10] sm:$0xff]
      %v2149 = vld [vmem:[%s2145 + $0x18] sm:$0xff]
      %s2150 = scalar_lea.vmem %s4, 5
      %v2151 = vld [vmem:[%s2150] sm:$0x1]
      %2152 = vmatprep.subr.mxu0 0.0
      %2153 = vmatpush1.msra.mxu0 %v2137
      %2154 = vmatprep.subr.mxu0 0.0
      %2155 = vmatpush1.msra.mxu0 %v2142
      %2156 = vmatprep.subr.mxu0 0.0
      %2157 = vmatpush1.msra.mxu0 0.0
      %2158 = vmatprep.subr.mxu0 0.0
      %2159 = vmatpush1.msra.mxu0 0.0
      %2160 = vmatprep.subr.mxu0 0.0
      %2161 = vmatpush1.msra.mxu0 0.0
      %2162 = vmatprep.subr.mxu0 0.0
      %2163 = vmatpush1.msra.mxu0 0.0
      %2164 = vmatprep.subr.mxu0 0.0
      %2165 = vmatpush1.msra.mxu0 0.0
      %2166 = vmatprep.subr.mxu0 0.0
      %2167 = vmatpush1.msra.mxu0 0.0
      %2168 = vmatprep.subr.mxu0 0.0
      %2169 = vmatpush1.msra.mxu0 0.0
      %2170 = vmatprep.subr.mxu0 0.0
      %2171 = vmatpush1.msra.mxu0 0.0
      %2172 = vmatprep.subr.mxu0 0.0
      %2173 = vmatpush1.msra.mxu0 0.0
      %2174 = vmatprep.subr.mxu0 0.0
      %2175 = vmatpush1.msra.mxu0 0.0
      %2176 = vmatprep.subr.mxu0 0.0
      %2177 = vmatpush1.msra.mxu0 0.0
      %2178 = vmatprep.subr.mxu0 0.0
      %2179 = vmatpush1.msra.mxu0 0.0
      %2180 = vmatprep.subr.mxu0 0.0
      %2181 = vmatpush1.msra.mxu0 0.0
      %2182 = vmatprep.subr.mxu0 0.0
      %2183 = vmatpush1.msra.mxu0 0.0
      %2184 = vmatprep.subr.mxu0 0.0
      %2185 = vmatpush1.msra.mxu0 0.0
      %2186 = vmatprep.subr.mxu0 0.0
      %2187 = vmatpush1.msra.mxu0 0.0
      %2188 = vmatprep.subr.mxu0 0.0
      %2189 = vmatpush1.msra.mxu0 0.0
      %2190 = vmatprep.subr.mxu0 0.0
      %2191 = vmatpush1.msra.mxu0 0.0
      %2192 = vmatprep.subr.mxu0 0.0
      %2193 = vmatpush1.msra.mxu0 0.0
      %2194 = vmatprep.subr.mxu0 0.0
      %2195 = vmatpush1.msra.mxu0 0.0
      %2196 = vmatprep.subr.mxu0 0.0
      %2197 = vmatpush1.msra.mxu0 0.0
      %2198 = vmatprep.subr.mxu0 0.0
      %2199 = vmatpush1.msra.mxu0 0.0
      %2200 = vmatprep.subr.mxu0 0.0
      %2201 = vmatpush1.msra.mxu0 0.0
      %2202 = vmatprep.subr.mxu0 0.0
      %2203 = vmatpush1.msra.mxu0 0.0
      %2204 = vmatprep.subr.mxu0 0.0
      %2205 = vmatpush1.msra.mxu0 0.0
      %2206 = vmatprep.subr.mxu0 0.0
      %2207 = vmatpush1.msra.mxu0 0.0
      %2208 = vmatprep.subr.mxu0 0.0
      %2209 = vmatpush1.msra.mxu0 0.0
      %2210 = vmatprep.subr.mxu0 0.0
      %2211 = vmatpush1.msra.mxu0 0.0
      %2212 = vmatprep.subr.mxu0 0.0
      %2213 = vmatpush1.msra.mxu0 0.0
      %2214 = vmatprep.subr.mxu0 0.0
      %2215 = vmatpush1.msra.mxu0 0.0
      %2216 = vmatprep.mubr.f32.mxu0 0.0
      %2217 = vmatmul.mubr.f32.gmra.mrb[0].mxu0 %v447
      %v2218 = vpop.f32.mrb[0].mxu0
      %v2219 = vadd.f32 0.0, %v2218
      %v2220 = vpop.f32.mrb[0].mxu0
      %2221 = vmatprep.mubr.f32.mxu0 0.0
      %2222 = vmatmul.mubr.f32.gmra.mrb[0].mxu0 %v450
      %v2223 = vpop.f32.mrb[0].mxu0
      %v2224 = vadd.f32 0.0, %v2223
      %v2225 = vpop.f32.mrb[0].mxu0
      %2226 = vdwg.mxu0
      %v2228 = vlaneseq
      %v2229 = vshrl.u32 %v2228, 7
      %v2230 = vsub.s32 0, %v2229
      %v2231 = vrot.slane %v2151, %v2230
      %v2234 = vsel %vm614, %v2219, 0
      %v2237 = vsel %vm614, %v2224, 0
      %2239 = vmatprep.subr.mxu0 0.0
      %2240 = vmatpush1.msra.mxu0 %v2146
      %2241 = vmatprep.subr.mxu0 0.0
      %2242 = vmatpush1.msra.mxu0 %v2147
      %2243 = vmatprep.subr.mxu0 0.0
      %2244 = vmatpush1.msra.mxu0 %v2148
      %2245 = vmatprep.subr.mxu0 0.0
      %2246 = vmatpush1.msra.mxu0 %v2149
      %2247 = vmatprep.subr.mxu0 0.0
      %2248 = vmatpush1.msra.mxu0 0.0
      %2249 = vmatprep.subr.mxu0 0.0
      %2250 = vmatpush1.msra.mxu0 0.0
      %2251 = vmatprep.subr.mxu0 0.0
      %2252 = vmatpush1.msra.mxu0 0.0
      %2253 = vmatprep.subr.mxu0 0.0
      %2254 = vmatpush1.msra.mxu0 0.0
      %2255 = vmatprep.subr.mxu0 0.0
      %2256 = vmatpush1.msra.mxu0 0.0
      %2257 = vmatprep.subr.mxu0 0.0
      %2258 = vmatpush1.msra.mxu0 0.0
      %2259 = vmatprep.subr.mxu0 0.0
      %2260 = vmatpush1.msra.mxu0 0.0
      %2261 = vmatprep.subr.mxu0 0.0
      %2262 = vmatpush1.msra.mxu0 0.0
      %2263 = vmatprep.subr.mxu0 0.0
      %2264 = vmatpush1.msra.mxu0 0.0
      %2265 = vmatprep.subr.mxu0 0.0
      %2266 = vmatpush1.msra.mxu0 0.0
      %2267 = vmatprep.subr.mxu0 0.0
      %2268 = vmatpush1.msra.mxu0 0.0
      %2269 = vmatprep.subr.mxu0 0.0
      %2270 = vmatpush1.msra.mxu0 0.0
      %2271 = vmatprep.subr.mxu0 0.0
      %2272 = vmatpush1.msra.mxu0 0.0
      %2273 = vmatprep.subr.mxu0 0.0
      %2274 = vmatpush1.msra.mxu0 0.0
      %2275 = vmatprep.subr.mxu0 0.0
      %2276 = vmatpush1.msra.mxu0 0.0
      %2277 = vmatprep.subr.mxu0 0.0
      %2278 = vmatpush1.msra.mxu0 0.0
      %2279 = vmatprep.subr.mxu0 0.0
      %2280 = vmatpush1.msra.mxu0 0.0
      %2281 = vmatprep.subr.mxu0 0.0
      %2282 = vmatpush1.msra.mxu0 0.0
      %2283 = vmatprep.subr.mxu0 0.0
      %2284 = vmatpush1.msra.mxu0 0.0
      %2285 = vmatprep.subr.mxu0 0.0
      %2286 = vmatpush1.msra.mxu0 0.0
      %2287 = vmatprep.subr.mxu0 0.0
      %2288 = vmatpush1.msra.mxu0 0.0
      %2289 = vmatprep.subr.mxu0 0.0
      %2290 = vmatpush1.msra.mxu0 0.0
      %2291 = vmatprep.subr.mxu0 0.0
      %2292 = vmatpush1.msra.mxu0 0.0
      %2293 = vmatprep.subr.mxu0 0.0
      %2294 = vmatpush1.msra.mxu0 0.0
      %2295 = vmatprep.subr.mxu0 0.0
      %2296 = vmatpush1.msra.mxu0 0.0
      %2297 = vmatprep.subr.mxu0 0.0
      %2298 = vmatpush1.msra.mxu0 0.0
      %2299 = vmatprep.subr.mxu0 0.0
      %2300 = vmatpush1.msra.mxu0 0.0
      %2301 = vmatprep.subr.mxu0 0.0
      %2302 = vmatpush1.msra.mxu0 0.0
      %2303 = vmatprep.mubr.f32.mxu0 0.0
      %2304 = vmatmul.mubr.f32.gmra.mrb[0].mxu0 %v2234
      %v2305 = vpop.f32.mrb[0].mxu0
      %v2306 = vadd.f32 %v2231, %v2305
      %v2307 = vpop.f32.mrb[0].mxu0
      %2308 = vmatprep.mubr.f32.mxu0 0.0
      %2309 = vmatmul.mubr.f32.gmra.mrb[0].mxu0 %v2237
      %v2310 = vpop.f32.mrb[0].mxu0
      %v2311 = vadd.f32 %v2231, %v2310
      %v2312 = vpop.f32.mrb[0].mxu0
      %2313 = vdwg.mxu0
      %v2314 = vadd.f32 %v2306, %v688
      %v2315 = vadd.f32 %v2311, %v693
      %2316 = vmatprep.subr.mxu0 0.0
      %2317 = vmatpush1.msra.mxu0 %v2314
      %2318 = vmatprep.subr.mxu0 0.0
      %2319 = vmatpush1.msra.mxu0 %v2315
      %2320 = vmatprep.subr.mxu0 0.0
      %2321 = vmatpush1.msra.mxu0 0.0
      %2322 = vmatprep.subr.mxu0 0.0
      %2323 = vmatpush1.msra.mxu0 0.0
      %2324 = vmatprep.subr.mxu0 0.0
      %2325 = vmatpush1.msra.mxu0 0.0
      %2326 = vmatprep.subr.mxu0 0.0
      %2327 = vmatpush1.msra.mxu0 0.0
      %2328 = vmatprep.subr.mxu0 0.0
      %2329 = vmatpush1.msra.mxu0 0.0
      %2330 = vmatprep.subr.mxu0 0.0
      %2331 = vmatpush1.msra.mxu0 0.0
      %2332 = vmatprep.subr.mxu0 0.0
      %2333 = vmatpush1.msra.mxu0 0.0
      %2334 = vmatprep.subr.mxu0 0.0
      %2335 = vmatpush1.msra.mxu0 0.0
      %2336 = vmatprep.subr.mxu0 0.0
      %2337 = vmatpush1.msra.mxu0 0.0
      %2338 = vmatprep.subr.mxu0 0.0
      %2339 = vmatpush1.msra.mxu0 0.0
      %2340 = vmatprep.subr.mxu0 0.0
      %2341 = vmatpush1.msra.mxu0 0.0
      %2342 = vmatprep.subr.mxu0 0.0
      %2343 = vmatpush1.msra.mxu0 0.0
      %2344 = vmatprep.subr.mxu0 0.0
      %2345 = vmatpush1.msra.mxu0 0.0
      %2346 = vmatprep.subr.mxu0 0.0
      %2347 = vmatpush1.msra.mxu0 0.0
      %2348 = vmatprep.subr.mxu0 0.0
      %2349 = vmatpush1.msra.mxu0 0.0
      %2350 = vmatprep.subr.mxu0 0.0
      %2351 = vmatpush1.msra.mxu0 0.0
      %2352 = vmatprep.subr.mxu0 0.0
      %2353 = vmatpush1.msra.mxu0 0.0
      %2354 = vmatprep.subr.mxu0 0.0
      %2355 = vmatpush1.msra.mxu0 0.0
      %2356 = vmatprep.subr.mxu0 0.0
      %2357 = vmatpush1.msra.mxu0 0.0
      %2358 = vmatprep.subr.mxu0 0.0
      %2359 = vmatpush1.msra.mxu0 0.0
      %2360 = vmatprep.subr.mxu0 0.0
      %2361 = vmatpush1.msra.mxu0 0.0
      %2362 = vmatprep.subr.mxu0 0.0
      %2363 = vmatpush1.msra.mxu0 0.0
      %2364 = vmatprep.subr.mxu0 0.0
      %2365 = vmatpush1.msra.mxu0 0.0
      %2366 = vmatprep.subr.mxu0 0.0
      %2367 = vmatpush1.msra.mxu0 0.0
      %2368 = vmatprep.subr.mxu0 0.0
      %2369 = vmatpush1.msra.mxu0 0.0
      %2370 = vmatprep.subr.mxu0 0.0
      %2371 = vmatpush1.msra.mxu0 0.0
      %2372 = vmatprep.subr.mxu0 0.0
      %2373 = vmatpush1.msra.mxu0 0.0
      %2374 = vmatprep.subr.mxu0 0.0
      %2375 = vmatpush1.msra.mxu0 0.0
      %2376 = vmatprep.subr.mxu0 0.0
      %2377 = vmatpush1.msra.mxu0 0.0
      %2378 = vmatprep.subr.mxu0 0.0
      %2379 = vmatpush1.msra.mxu0 0.0
      %2380 = vmatprep.mubr.f32.mxu0 0.0
      %2381 = vmatmul.mubr.f32.gmra.mrb[0].mxu0 %v447
      %v2382 = vpop.f32.mrb[0].mxu0
      %v2383 = vadd.f32 0.0, %v2382
      %v2384 = vpop.f32.mrb[0].mxu0
      %2385 = vmatprep.mubr.f32.mxu0 0.0
      %2386 = vmatmul.mubr.f32.gmra.mrb[0].mxu0 %v450
      %v2387 = vpop.f32.mrb[0].mxu0
      %v2388 = vadd.f32 0.0, %v2387
      %v2389 = vpop.f32.mrb[0].mxu0
      %2390 = vdwg.mxu0
      %v2391 = vld [vmem:[%s7] sm:$0xff]
      %v2392 = vld [vmem:[%s7 + $0x8] sm:$0xff]
      %v2393 = vld [vmem:[%s7 + $0x10] sm:$0xff]
      %v2394 = vld [vmem:[%s7 + $0x18] sm:$0xff]
      %s2395 = scalar_lea.vmem %s7, 32
      %v2396 = vld [vmem:[%s2395] sm:$0xff]
      %v2397 = vld [vmem:[%s2395 + $0x8] sm:$0xff]
      %v2398 = vld [vmem:[%s2395 + $0x10] sm:$0xff]
      %v2399 = vld [vmem:[%s2395 + $0x18] sm:$0xff]
      %2400 = vmatprep.subr.mxu0 0.0
      %2401 = vmatpush1.msra.mxu0 %v2396
      %2402 = vmatprep.subr.mxu0 0.0
      %2403 = vmatpush1.msra.mxu0 %v2397
      %2404 = vmatprep.subr.mxu0 0.0
      %2405 = vmatpush1.msra.mxu0 %v2398
      %2406 = vmatprep.subr.mxu0 0.0
      %2407 = vmatpush1.msra.mxu0 %v2399
      %2408 = vmatprep.subr.mxu0 0.0
      %2409 = vmatpush1.msra.mxu0 0.0
      %2410 = vmatprep.subr.mxu0 0.0
      %2411 = vmatpush1.msra.mxu0 0.0
      %2412 = vmatprep.subr.mxu0 0.0
      %2413 = vmatpush1.msra.mxu0 0.0
      %2414 = vmatprep.subr.mxu0 0.0
      %2415 = vmatpush1.msra.mxu0 0.0
      %2416 = vmatprep.subr.mxu0 0.0
      %2417 = vmatpush1.msra.mxu0 0.0
      %2418 = vmatprep.subr.mxu0 0.0
      %2419 = vmatpush1.msra.mxu0 0.0
      %2420 = vmatprep.subr.mxu0 0.0
      %2421 = vmatpush1.msra.mxu0 0.0
      %2422 = vmatprep.subr.mxu0 0.0
      %2423 = vmatpush1.msra.mxu0 0.0
      %2424 = vmatprep.subr.mxu0 0.0
      %2425 = vmatpush1.msra.mxu0 0.0
      %2426 = vmatprep.subr.mxu0 0.0
      %2427 = vmatpush1.msra.mxu0 0.0
      %2428 = vmatprep.subr.mxu0 0.0
      %2429 = vmatpush1.msra.mxu0 0.0
      %2430 = vmatprep.subr.mxu0 0.0
      %2431 = vmatpush1.msra.mxu0 0.0
      %2432 = vmatprep.subr.mxu0 0.0
      %2433 = vmatpush1.msra.mxu0 0.0
      %2434 = vmatprep.subr.mxu0 0.0
      %2435 = vmatpush1.msra.mxu0 0.0
      %2436 = vmatprep.subr.mxu0 0.0
      %2437 = vmatpush1.msra.mxu0 0.0
      %2438 = vmatprep.subr.mxu0 0.0
      %2439 = vmatpush1.msra.mxu0 0.0
      %2440 = vmatprep.subr.mxu0 0.0
      %2441 = vmatpush1.msra.mxu0 0.0
      %2442 = vmatprep.subr.mxu0 0.0
      %2443 = vmatpush1.msra.mxu0 0.0
      %2444 = vmatprep.subr.mxu0 0.0
      %2445 = vmatpush1.msra.mxu0 0.0
      %2446 = vmatprep.subr.mxu0 0.0
      %2447 = vmatpush1.msra.mxu0 0.0
      %2448 = vmatprep.subr.mxu0 0.0
      %2449 = vmatpush1.msra.mxu0 0.0
      %2450 = vmatprep.subr.mxu0 0.0
      %2451 = vmatpush1.msra.mxu0 0.0
      %2452 = vmatprep.subr.mxu0 0.0
      %2453 = vmatpush1.msra.mxu0 0.0
      %2454 = vmatprep.subr.mxu0 0.0
      %2455 = vmatpush1.msra.mxu0 0.0
      %2456 = vmatprep.subr.mxu0 0.0
      %2457 = vmatpush1.msra.mxu0 0.0
      %2458 = vmatprep.subr.mxu0 0.0
      %2459 = vmatpush1.msra.mxu0 0.0
      %2460 = vmatprep.subr.mxu0 0.0
      %2461 = vmatpush1.msra.mxu0 0.0
      %2462 = vmatprep.subr.mxu0 0.0
      %2463 = vmatpush1.msra.mxu0 0.0
      %2464 = vmatprep.mubr.f32.mxu0 0.0
      %2465 = vmatmul.mubr.f32.gmra.mrb[0].mxu0 %v616
      %v2466 = vpop.f32.mrb[0].mxu0
      %v2467 = vadd.f32 0.0, %v2466
      %v2468 = vpop.f32.mrb[0].mxu0
      %2469 = vmatprep.mubr.f32.mxu0 0.0
      %2470 = vmatmul.mubr.f32.gmra.mrb[0].mxu0 %v619
      %v2471 = vpop.f32.mrb[0].mxu0
      %v2472 = vadd.f32 0.0, %v2471
      %v2473 = vpop.f32.mrb[0].mxu0
      %2474 = vdwg.mxu0
      %v2476 = vsel %vm614, %v2383, 0
      %v2479 = vsel %vm614, %v2388, 0
      %2481 = vmatprep.subr.mxu0 0.0
      %2482 = vmatpush1.msra.mxu0 %v2391
      %2483 = vmatprep.subr.mxu0 0.0
      %2484 = vmatpush1.msra.mxu0 %v2392
      %2485 = vmatprep.subr.mxu0 0.0
      %2486 = vmatpush1.msra.mxu0 %v2393
      %2487 = vmatprep.subr.mxu0 0.0
      %2488 = vmatpush1.msra.mxu0 %v2394
      %2489 = vmatprep.subr.mxu0 0.0
      %2490 = vmatpush1.msra.mxu0 0.0
      %2491 = vmatprep.subr.mxu0 0.0
      %2492 = vmatpush1.msra.mxu0 0.0
      %2493 = vmatprep.subr.mxu0 0.0
      %2494 = vmatpush1.msra.mxu0 0.0
      %2495 = vmatprep.subr.mxu0 0.0
      %2496 = vmatpush1.msra.mxu0 0.0
      %2497 = vmatprep.subr.mxu0 0.0
      %2498 = vmatpush1.msra.mxu0 0.0
      %2499 = vmatprep.subr.mxu0 0.0
      %2500 = vmatpush1.msra.mxu0 0.0
      %2501 = vmatprep.subr.mxu0 0.0
      %2502 = vmatpush1.msra.mxu0 0.0
      %2503 = vmatprep.subr.mxu0 0.0
      %2504 = vmatpush1.msra.mxu0 0.0
      %2505 = vmatprep.subr.mxu0 0.0
      %2506 = vmatpush1.msra.mxu0 0.0
      %2507 = vmatprep.subr.mxu0 0.0
      %2508 = vmatpush1.msra.mxu0 0.0
      %2509 = vmatprep.subr.mxu0 0.0
      %2510 = vmatpush1.msra.mxu0 0.0
      %2511 = vmatprep.subr.mxu0 0.0
      %2512 = vmatpush1.msra.mxu0 0.0
      %2513 = vmatprep.subr.mxu0 0.0
      %2514 = vmatpush1.msra.mxu0 0.0
      %2515 = vmatprep.subr.mxu0 0.0
      %2516 = vmatpush1.msra.mxu0 0.0
      %2517 = vmatprep.subr.mxu0 0.0
      %2518 = vmatpush1.msra.mxu0 0.0
      %2519 = vmatprep.subr.mxu0 0.0
      %2520 = vmatpush1.msra.mxu0 0.0
      %2521 = vmatprep.subr.mxu0 0.0
      %2522 = vmatpush1.msra.mxu0 0.0
      %2523 = vmatprep.subr.mxu0 0.0
      %2524 = vmatpush1.msra.mxu0 0.0
      %2525 = vmatprep.subr.mxu0 0.0
      %2526 = vmatpush1.msra.mxu0 0.0
      %2527 = vmatprep.subr.mxu0 0.0
      %2528 = vmatpush1.msra.mxu0 0.0
      %2529 = vmatprep.subr.mxu0 0.0
      %2530 = vmatpush1.msra.mxu0 0.0
      %2531 = vmatprep.subr.mxu0 0.0
      %2532 = vmatpush1.msra.mxu0 0.0
      %2533 = vmatprep.subr.mxu0 0.0
      %2534 = vmatpush1.msra.mxu0 0.0
      %2535 = vmatprep.subr.mxu0 0.0
      %2536 = vmatpush1.msra.mxu0 0.0
      %2537 = vmatprep.subr.mxu0 0.0
      %2538 = vmatpush1.msra.mxu0 0.0
      %2539 = vmatprep.subr.mxu0 0.0
      %2540 = vmatpush1.msra.mxu0 0.0
      %2541 = vmatprep.subr.mxu0 0.0
      %2542 = vmatpush1.msra.mxu0 0.0
      %2543 = vmatprep.subr.mxu0 0.0
      %2544 = vmatpush1.msra.mxu0 0.0
      %2545 = vmatprep.mubr.f32.mxu0 0.0
      %2546 = vmatmul.mubr.f32.gmra.mrb[0].mxu0 %v2476
      %v2547 = vpop.f32.mrb[0].mxu0
      %v2548 = vadd.f32 %v2467, %v2547
      %v2549 = vpop.f32.mrb[0].mxu0
      %2550 = vmatprep.mubr.f32.mxu0 0.0
      %2551 = vmatmul.mubr.f32.gmra.mrb[0].mxu0 %v2479
      %v2552 = vpop.f32.mrb[0].mxu0
      %v2553 = vadd.f32 %v2472, %v2552
      %v2554 = vpop.f32.mrb[0].mxu0
      %2555 = vdwg.mxu0
      %v2556 = vld [vmem:[%s8] sm:$0x1]
      %v2558 = vlaneseq
      %v2559 = vshrl.u32 %v2558, 7
      %v2560 = vsub.s32 0, %v2559
      %v2561 = vrot.slane %v2556, %v2560
      %v2563 = vadd.f32 %v2548, %v2561
      %v2564 = vadd.f32 %v2553, %v2561
      %v2565 = vld [vmem:[%s9] sm:$0xff]
      %v2566 = vld [vmem:[%s9 + $0x8] sm:$0xff]
      %v2567 = vld [vmem:[%s9 + $0x10] sm:$0xff]
      %v2568 = vld [vmem:[%s9 + $0x18] sm:$0xff]
      %2573 = vrot.lane.b32.xlu0 %v2565, 112
      %v2574 = vpop.permute.xlu0 %2573
      %2575 = vrot.lane.b32.xlu0 %v2566, 112
      %v2576 = vpop.permute.xlu0 %2575
      %2577 = vrot.lane.b32.xlu0 %v2567, 112
      %v2578 = vpop.permute.xlu0 %2577
      %2579 = vrot.lane.b32.xlu0 %v2568, 112
      %v2580 = vpop.permute.xlu0 %2579
      %v2585 = vadd.f32 %v2565, %v2574
      %v2586 = vadd.f32 %v2566, %v2576
      %v2587 = vadd.f32 %v2567, %v2578
      %v2588 = vadd.f32 %v2568, %v2580
      %v2589 = vld [vmem:[%s428] sm:$0xff]
      %v2590 = vld [vmem:[%s428 + $0x8] sm:$0xff]
      %v2592 = vsel %vm445, %v2585, 0
      %v2595 = vsel %vm445, %v2586, 0
      %v2598 = vsel %vm445, %v2587, 0
      %v2601 = vsel %vm445, %v2588, 0
      %2603 = vmatprep.subr.mxu0 0.0
      %2604 = vmatpush1.msra.mxu0 %v2589
      %2605 = vmatprep.subr.mxu0 0.0
      %2606 = vmatpush1.msra.mxu0 %v2590
      %2607 = vmatprep.subr.mxu0 0.0
      %2608 = vmatpush1.msra.mxu0 0.0
      %2609 = vmatprep.subr.mxu0 0.0
      %2610 = vmatpush1.msra.mxu0 0.0
      %2611 = vmatprep.subr.mxu0 0.0
      %2612 = vmatpush1.msra.mxu0 0.0
      %2613 = vmatprep.subr.mxu0 0.0
      %2614 = vmatpush1.msra.mxu0 0.0
      %2615 = vmatprep.subr.mxu0 0.0
      %2616 = vmatpush1.msra.mxu0 0.0
      %2617 = vmatprep.subr.mxu0 0.0
      %2618 = vmatpush1.msra.mxu0 0.0
      %2619 = vmatprep.subr.mxu0 0.0
      %2620 = vmatpush1.msra.mxu0 0.0
      %2621 = vmatprep.subr.mxu0 0.0
      %2622 = vmatpush1.msra.mxu0 0.0
      %2623 = vmatprep.subr.mxu0 0.0
      %2624 = vmatpush1.msra.mxu0 0.0
      %2625 = vmatprep.subr.mxu0 0.0
      %2626 = vmatpush1.msra.mxu0 0.0
      %2627 = vmatprep.subr.mxu0 0.0
      %2628 = vmatpush1.msra.mxu0 0.0
      %2629 = vmatprep.subr.mxu0 0.0
      %2630 = vmatpush1.msra.mxu0 0.0
      %2631 = vmatprep.subr.mxu0 0.0
      %2632 = vmatpush1.msra.mxu0 0.0
      %2633 = vmatprep.subr.mxu0 0.0
      %2634 = vmatpush1.msra.mxu0 0.0
      %2635 = vmatprep.subr.mxu0 0.0
      %2636 = vmatpush1.msra.mxu0 0.0
      %2637 = vmatprep.subr.mxu0 0.0
      %2638 = vmatpush1.msra.mxu0 0.0
      %2639 = vmatprep.subr.mxu0 0.0
      %2640 = vmatpush1.msra.mxu0 0.0
      %2641 = vmatprep.subr.mxu0 0.0
      %2642 = vmatpush1.msra.mxu0 0.0
      %2643 = vmatprep.subr.mxu0 0.0
      %2644 = vmatpush1.msra.mxu0 0.0
      %2645 = vmatprep.subr.mxu0 0.0
      %2646 = vmatpush1.msra.mxu0 0.0
      %2647 = vmatprep.subr.mxu0 0.0
      %2648 = vmatpush1.msra.mxu0 0.0
      %2649 = vmatprep.subr.mxu0 0.0
      %2650 = vmatpush1.msra.mxu0 0.0
      %2651 = vmatprep.subr.mxu0 0.0
      %2652 = vmatpush1.msra.mxu0 0.0
      %2653 = vmatprep.subr.mxu0 0.0
      %2654 = vmatpush1.msra.mxu0 0.0
      %2655 = vmatprep.subr.mxu0 0.0
      %2656 = vmatpush1.msra.mxu0 0.0
      %2657 = vmatprep.subr.mxu0 0.0
      %2658 = vmatpush1.msra.mxu0 0.0
      %2659 = vmatprep.subr.mxu0 0.0
      %2660 = vmatpush1.msra.mxu0 0.0
      %2661 = vmatprep.subr.mxu0 0.0
      %2662 = vmatpush1.msra.mxu0 0.0
      %2663 = vmatprep.subr.mxu0 0.0
      %2664 = vmatpush1.msra.mxu0 0.0
      %2665 = vmatprep.subr.mxu0 0.0
      %2666 = vmatpush1.msra.mxu0 0.0
      %2667 = vmatprep.mubr.f32.mxu0 0.0
      %2668 = vmatmul.mubr.f32.gmra.mrb[0].mxu0 %v2592
      %v2669 = vpop.f32.mrb[0].mxu0
      %v2670 = vadd.f32 0.0, %v2669
      %v2671 = vpop.f32.mrb[0].mxu0
      %2672 = vmatprep.mubr.f32.mxu0 0.0
      %2673 = vmatmul.mubr.f32.gmra.mrb[0].mxu0 %v2595
      %v2674 = vpop.f32.mrb[0].mxu0
      %v2675 = vadd.f32 0.0, %v2674
      %v2676 = vpop.f32.mrb[0].mxu0
      %2677 = vmatprep.mubr.f32.mxu0 0.0
      %2678 = vmatmul.mubr.f32.gmra.mrb[0].mxu0 %v2598
      %v2679 = vpop.f32.mrb[0].mxu0
      %v2680 = vadd.f32 0.0, %v2679
      %v2681 = vpop.f32.mrb[0].mxu0
      %2682 = vmatprep.mubr.f32.mxu0 0.0
      %2683 = vmatmul.mubr.f32.gmra.mrb[0].mxu0 %v2601
      %v2684 = vpop.f32.mrb[0].mxu0
      %v2685 = vadd.f32 0.0, %v2684
      %v2686 = vpop.f32.mrb[0].mxu0
      %2687 = vdwg.mxu0
      %v2689 = vsel %vm445, %v2670, 0
      %v2692 = vsel %vm445, %v2675, 0
      %v2695 = vsel %vm445, %v2680, 0
      %v2698 = vsel %vm445, %v2685, 0
      %2700 = vmatprep.subr.mxu0 0.0
      %2701 = vmatpush1.msra.mxu0 %v2563
      %2702 = vmatprep.subr.mxu0 0.0
      %2703 = vmatpush1.msra.mxu0 %v2564
      %2704 = vmatprep.subr.mxu0 0.0
      %2705 = vmatpush1.msra.mxu0 0.0
      %2706 = vmatprep.subr.mxu0 0.0
      %2707 = vmatpush1.msra.mxu0 0.0
      %2708 = vmatprep.subr.mxu0 0.0
      %2709 = vmatpush1.msra.mxu0 0.0
      %2710 = vmatprep.subr.mxu0 0.0
      %2711 = vmatpush1.msra.mxu0 0.0
      %2712 = vmatprep.subr.mxu0 0.0
      %2713 = vmatpush1.msra.mxu0 0.0
      %2714 = vmatprep.subr.mxu0 0.0
      %2715 = vmatpush1.msra.mxu0 0.0
      %2716 = vmatprep.subr.mxu0 0.0
      %2717 = vmatpush1.msra.mxu0 0.0
      %2718 = vmatprep.subr.mxu0 0.0
      %2719 = vmatpush1.msra.mxu0 0.0
      %2720 = vmatprep.subr.mxu0 0.0
      %2721 = vmatpush1.msra.mxu0 0.0
      %2722 = vmatprep.subr.mxu0 0.0
      %2723 = vmatpush1.msra.mxu0 0.0
      %2724 = vmatprep.subr.mxu0 0.0
      %2725 = vmatpush1.msra.mxu0 0.0
      %2726 = vmatprep.subr.mxu0 0.0
      %2727 = vmatpush1.msra.mxu0 0.0
      %2728 = vmatprep.subr.mxu0 0.0
      %2729 = vmatpush1.msra.mxu0 0.0
      %2730 = vmatprep.subr.mxu0 0.0
      %2731 = vmatpush1.msra.mxu0 0.0
      %2732 = vmatprep.subr.mxu0 0.0
      %2733 = vmatpush1.msra.mxu0 0.0
      %2734 = vmatprep.subr.mxu0 0.0
      %2735 = vmatpush1.msra.mxu0 0.0
      %2736 = vmatprep.subr.mxu0 0.0
      %2737 = vmatpush1.msra.mxu0 0.0
      %2738 = vmatprep.subr.mxu0 0.0
      %2739 = vmatpush1.msra.mxu0 0.0
      %2740 = vmatprep.subr.mxu0 0.0
      %2741 = vmatpush1.msra.mxu0 0.0
      %2742 = vmatprep.subr.mxu0 0.0
      %2743 = vmatpush1.msra.mxu0 0.0
      %2744 = vmatprep.subr.mxu0 0.0
      %2745 = vmatpush1.msra.mxu0 0.0
      %2746 = vmatprep.subr.mxu0 0.0
      %2747 = vmatpush1.msra.mxu0 0.0
      %2748 = vmatprep.subr.mxu0 0.0
      %2749 = vmatpush1.msra.mxu0 0.0
      %2750 = vmatprep.subr.mxu0 0.0
      %2751 = vmatpush1.msra.mxu0 0.0
      %2752 = vmatprep.subr.mxu0 0.0
      %2753 = vmatpush1.msra.mxu0 0.0
      %2754 = vmatprep.subr.mxu0 0.0
      %2755 = vmatpush1.msra.mxu0 0.0
      %2756 = vmatprep.subr.mxu0 0.0
      %2757 = vmatpush1.msra.mxu0 0.0
      %2758 = vmatprep.subr.mxu0 0.0
      %2759 = vmatpush1.msra.mxu0 0.0
      %2760 = vmatprep.subr.mxu0 0.0
      %2761 = vmatpush1.msra.mxu0 0.0
      %2762 = vmatprep.subr.mxu0 0.0
      %2763 = vmatpush1.msra.mxu0 0.0
      %2764 = vmatprep.mubr.f32.mxu0 0.0
      %2765 = vmatmul.mubr.f32.gmra.mrb[0].mxu0 %v2689
      %v2766 = vpop.f32.mrb[0].mxu0
      %v2767 = vadd.f32 0.0, %v2766
      %v2768 = vpop.f32.mrb[0].mxu0
      %2769 = vmatprep.mubr.f32.mxu0 0.0
      %2770 = vmatmul.mubr.f32.gmra.mrb[0].mxu0 %v2692
      %v2771 = vpop.f32.mrb[0].mxu0
      %v2772 = vadd.f32 0.0, %v2771
      %v2773 = vpop.f32.mrb[0].mxu0
      %2774 = vmatprep.mubr.f32.mxu0 0.0
      %2775 = vmatmul.mubr.f32.gmra.mrb[0].mxu0 %v2695
      %v2776 = vpop.f32.mrb[0].mxu0
      %v2777 = vadd.f32 0.0, %v2776
      %v2778 = vpop.f32.mrb[0].mxu0
      %2779 = vmatprep.mubr.f32.mxu0 0.0
      %2780 = vmatmul.mubr.f32.gmra.mrb[0].mxu0 %v2698
      %v2781 = vpop.f32.mrb[0].mxu0
      %v2782 = vadd.f32 0.0, %v2781
      %v2783 = vpop.f32.mrb[0].mxu0
      %2784 = vdwg.mxu0
      %v2785 = vand.u32 2147483647, %v2767
      %v2786 = vand.u32 2147483647, %v2772
      %v2787 = vand.u32 2147483647, %v2777
      %v2788 = vand.u32 2147483647, %v2782
      %v2789 = vadd.s32 %v768, 16
      %v2790 = vadd.s32 %v768, 24
      %vm2791 = vcmp.eq.s32.totalorder %v768, %v771
      %vm2792 = vcmp.eq.s32.totalorder %v769, %v771
      %vm2793 = vcmp.eq.s32.totalorder %v2789, %v771
      %vm2794 = vcmp.eq.s32.totalorder %v2790, %v771
      %v2795 = vsel %vm2791, 1.0, %v2785
      %v2796 = vsel %vm2792, 1.0, %v2786
      %v2797 = vsel %vm2793, 1.0, %v2787
      %v2798 = vsel %vm2794, 1.0, %v2788
      %v2800 = vsel %vm614, %v2795, 0
      %v2803 = vsel %vm614, %v2796, 0
      %v2806 = vsel %vm614, %v2797, 0
      %v2809 = vsel %vm614, %v2798, 0
      %2811 = vmatprep.subr.mxu0 0.0
      %2812 = vmatpush1.xpose.msra.mxu0 %v2800
      %2813 = vmatprep.subr.mxu0 0.0
      %2814 = vmatpush1.xpose.msra.mxu0 %v2803
      %2815 = vmatprep.subr.mxu0 0.0
      %2816 = vmatpush1.xpose.msra.mxu0 %v2806
      %2817 = vmatprep.subr.mxu0 0.0
      %2818 = vmatpush1.xpose.msra.mxu0 %v2809
      %2819 = vmatprep.subr.mxu0 0.0
      %2820 = vmatpush1.xpose.msra.mxu0 0.0
      %2821 = vmatprep.subr.mxu0 0.0
      %2822 = vmatpush1.xpose.msra.mxu0 0.0
      %2823 = vmatprep.subr.mxu0 0.0
      %2824 = vmatpush1.xpose.msra.mxu0 0.0
      %2825 = vmatprep.subr.mxu0 0.0
      %2826 = vmatpush1.xpose.msra.mxu0 0.0
      %2827 = vmatprep.subr.mxu0 0.0
      %2828 = vmatpush1.xpose.msra.mxu0 0.0
      %2829 = vmatprep.subr.mxu0 0.0
      %2830 = vmatpush1.xpose.msra.mxu0 0.0
      %2831 = vmatprep.subr.mxu0 0.0
      %2832 = vmatpush1.xpose.msra.mxu0 0.0
      %2833 = vmatprep.subr.mxu0 0.0
      %2834 = vmatpush1.xpose.msra.mxu0 0.0
      %2835 = vmatprep.subr.mxu0 0.0
      %2836 = vmatpush1.xpose.msra.mxu0 0.0
      %2837 = vmatprep.subr.mxu0 0.0
      %2838 = vmatpush1.xpose.msra.mxu0 0.0
      %2839 = vmatprep.subr.mxu0 0.0
      %2840 = vmatpush1.xpose.msra.mxu0 0.0
      %2841 = vmatprep.subr.mxu0 0.0
      %2842 = vmatpush1.xpose.msra.mxu0 0.0
      %2843 = vmatprep.subr.mxu0 0.0
      %2844 = vmatpush1.xpose.msra.mxu0 0.0
      %2845 = vmatprep.subr.mxu0 0.0
      %2846 = vmatpush1.xpose.msra.mxu0 0.0
      %2847 = vmatprep.subr.mxu0 0.0
      %2848 = vmatpush1.xpose.msra.mxu0 0.0
      %2849 = vmatprep.subr.mxu0 0.0
      %2850 = vmatpush1.xpose.msra.mxu0 0.0
      %2851 = vmatprep.subr.mxu0 0.0
      %2852 = vmatpush1.xpose.msra.mxu0 0.0
      %2853 = vmatprep.subr.mxu0 0.0
      %2854 = vmatpush1.xpose.msra.mxu0 0.0
      %2855 = vmatprep.subr.mxu0 0.0
      %2856 = vmatpush1.xpose.msra.mxu0 0.0
      %2857 = vmatprep.subr.mxu0 0.0
      %2858 = vmatpush1.xpose.msra.mxu0 0.0
      %2859 = vmatprep.subr.mxu0 0.0
      %2860 = vmatpush1.xpose.msra.mxu0 0.0
      %2861 = vmatprep.subr.mxu0 0.0
      %2862 = vmatpush1.xpose.msra.mxu0 0.0
      %2863 = vmatprep.subr.mxu0 0.0
      %2864 = vmatpush1.xpose.msra.mxu0 0.0
      %2865 = vmatprep.subr.mxu0 0.0
      %2866 = vmatpush1.xpose.msra.mxu0 0.0
      %2867 = vmatprep.subr.mxu0 0.0
      %2868 = vmatpush1.xpose.msra.mxu0 0.0
      %2869 = vmatprep.subr.mxu0 0.0
      %2870 = vmatpush1.xpose.msra.mxu0 0.0
      %2871 = vmatprep.subr.mxu0 0.0
      %2872 = vmatpush1.xpose.msra.mxu0 0.0
      %2873 = vmatprep.subr.mxu0 0.0
      %2874 = vmatpush1.xpose.msra.mxu0 0.0
      %2875 = vmatprep.mubr.f32.mxu0 0.0
      %2876 = vmatmul.mubr.f32.gmra.mrb[0].mxu0 %v2800
      %v2877 = vpop.f32.mrb[0].mxu0
      %v2878 = vadd.f32 0.0, %v2877
      %v2879 = vpop.f32.mrb[0].mxu0
      %2880 = vmatprep.mubr.f32.mxu0 0.0
      %2881 = vmatmul.mubr.f32.gmra.mrb[0].mxu0 %v2803
      %v2882 = vpop.f32.mrb[0].mxu0
      %v2883 = vadd.f32 0.0, %v2882
      %v2884 = vpop.f32.mrb[0].mxu0
      %2885 = vmatprep.mubr.f32.mxu0 0.0
      %2886 = vmatmul.mubr.f32.gmra.mrb[0].mxu0 %v2806
      %v2887 = vpop.f32.mrb[0].mxu0
      %v2888 = vadd.f32 0.0, %v2887
      %v2889 = vpop.f32.mrb[0].mxu0
      %2890 = vmatprep.mubr.f32.mxu0 0.0
      %2891 = vmatmul.mubr.f32.gmra.mrb[0].mxu0 %v2809
      %v2892 = vpop.f32.mrb[0].mxu0
      %v2893 = vadd.f32 0.0, %v2892
      %v2894 = vpop.f32.mrb[0].mxu0
      %2895 = vdwg.mxu0
      %v2896 = vsel %vm2791, 1.0, %v2878
      %v2897 = vsel %vm2792, 1.0, %v2883
      %v2898 = vsel %vm2793, 1.0, %v2888
      %v2899 = vsel %vm2794, 1.0, %v2893
      %v2900 = vand.u32 2147483647, %v2896
      %v2901 = vand.u32 2147483647, %v2897
      %v2902 = vand.u32 2147483647, %v2898
      %v2903 = vand.u32 2147483647, %v2899
      %v2904 = vld [vmem:[%s10] sm:$0xff]
      %v2905 = vld [vmem:[%s10 + $0x8] sm:$0xff]
      %v2906 = vld [vmem:[%s10 + $0x10] sm:$0xff]
      %v2907 = vld [vmem:[%s10 + $0x18] sm:$0xff]
      %v2909 = vsel %vm614, %v2900, 0
      %v2912 = vsel %vm614, %v2901, 0
      %v2915 = vsel %vm614, %v2902, 0
      %v2918 = vsel %vm614, %v2903, 0
      %2920 = vmatprep.subr.mxu0 0.0
      %2921 = vmatpush1.msra.mxu0 %v2904
      %2922 = vmatprep.subr.mxu0 0.0
      %2923 = vmatpush1.msra.mxu0 %v2905
      %2924 = vmatprep.subr.mxu0 0.0
      %2925 = vmatpush1.msra.mxu0 %v2906
      %2926 = vmatprep.subr.mxu0 0.0
      %2927 = vmatpush1.msra.mxu0 %v2907
      %2928 = vmatprep.subr.mxu0 0.0
      %2929 = vmatpush1.msra.mxu0 0.0
      %2930 = vmatprep.subr.mxu0 0.0
      %2931 = vmatpush1.msra.mxu0 0.0
      %2932 = vmatprep.subr.mxu0 0.0
      %2933 = vmatpush1.msra.mxu0 0.0
      %2934 = vmatprep.subr.mxu0 0.0
      %2935 = vmatpush1.msra.mxu0 0.0
      %2936 = vmatprep.subr.mxu0 0.0
      %2937 = vmatpush1.msra.mxu0 0.0
      %2938 = vmatprep.subr.mxu0 0.0
      %2939 = vmatpush1.msra.mxu0 0.0
      %2940 = vmatprep.subr.mxu0 0.0
      %2941 = vmatpush1.msra.mxu0 0.0
      %2942 = vmatprep.subr.mxu0 0.0
      %2943 = vmatpush1.msra.mxu0 0.0
      %2944 = vmatprep.subr.mxu0 0.0
      %2945 = vmatpush1.msra.mxu0 0.0
      %2946 = vmatprep.subr.mxu0 0.0
      %2947 = vmatpush1.msra.mxu0 0.0
      %2948 = vmatprep.subr.mxu0 0.0
      %2949 = vmatpush1.msra.mxu0 0.0
      %2950 = vmatprep.subr.mxu0 0.0
      %2951 = vmatpush1.msra.mxu0 0.0
      %2952 = vmatprep.subr.mxu0 0.0
      %2953 = vmatpush1.msra.mxu0 0.0
      %2954 = vmatprep.subr.mxu0 0.0
      %2955 = vmatpush1.msra.mxu0 0.0
      %2956 = vmatprep.subr.mxu0 0.0
      %2957 = vmatpush1.msra.mxu0 0.0
      %2958 = vmatprep.subr.mxu0 0.0
      %2959 = vmatpush1.msra.mxu0 0.0
      %2960 = vmatprep.subr.mxu0 0.0
      %2961 = vmatpush1.msra.mxu0 0.0
      %2962 = vmatprep.subr.mxu0 0.0
      %2963 = vmatpush1.msra.mxu0 0.0
      %2964 = vmatprep.subr.mxu0 0.0
      %2965 = vmatpush1.msra.mxu0 0.0
      %2966 = vmatprep.subr.mxu0 0.0
      %2967 = vmatpush1.msra.mxu0 0.0
      %2968 = vmatprep.subr.mxu0 0.0
      %2969 = vmatpush1.msra.mxu0 0.0
      %2970 = vmatprep.subr.mxu0 0.0
      %2971 = vmatpush1.msra.mxu0 0.0
      %2972 = vmatprep.subr.mxu0 0.0
      %2973 = vmatpush1.msra.mxu0 0.0
      %2974 = vmatprep.subr.mxu0 0.0
      %2975 = vmatpush1.msra.mxu0 0.0
      %2976 = vmatprep.subr.mxu0 0.0
      %2977 = vmatpush1.msra.mxu0 0.0
      %2978 = vmatprep.subr.mxu0 0.0
      %2979 = vmatpush1.msra.mxu0 0.0
      %2980 = vmatprep.subr.mxu0 0.0
      %2981 = vmatpush1.msra.mxu0 0.0
      %2982 = vmatprep.subr.mxu0 0.0
      %2983 = vmatpush1.msra.mxu0 0.0
      %2984 = vmatprep.mubr.f32.mxu0 0.0
      %2985 = vmatmul.mubr.f32.gmra.mrb[0].mxu0 %v2909
      %v2986 = vpop.f32.mrb[0].mxu0
      %v2987 = vadd.f32 0.0, %v2986
      %v2988 = vpop.f32.mrb[0].mxu0
      %2989 = vmatprep.mubr.f32.mxu0 0.0
      %2990 = vmatmul.mubr.f32.gmra.mrb[0].mxu0 %v2912
      %v2991 = vpop.f32.mrb[0].mxu0
      %v2992 = vadd.f32 0.0, %v2991
      %v2993 = vpop.f32.mrb[0].mxu0
      %2994 = vmatprep.mubr.f32.mxu0 0.0
      %2995 = vmatmul.mubr.f32.gmra.mrb[0].mxu0 %v2915
      %v2996 = vpop.f32.mrb[0].mxu0
      %v2997 = vadd.f32 0.0, %v2996
      %v2998 = vpop.f32.mrb[0].mxu0
      %2999 = vmatprep.mubr.f32.mxu0 0.0
      %3000 = vmatmul.mubr.f32.gmra.mrb[0].mxu0 %v2918
      %v3001 = vpop.f32.mrb[0].mxu0
      %v3002 = vadd.f32 0.0, %v3001
      %v3003 = vpop.f32.mrb[0].mxu0
      %3004 = vdwg.mxu0
      %3005 = vmatprep.subr.mxu0 0.0
      %3006 = vmatpush1.msra.mxu0 %v2987
      %3007 = vmatprep.subr.mxu0 0.0
      %3008 = vmatpush1.msra.mxu0 %v2992
      %3009 = vmatprep.subr.mxu0 0.0
      %3010 = vmatpush1.msra.mxu0 %v2997
      %3011 = vmatprep.subr.mxu0 0.0
      %3012 = vmatpush1.msra.mxu0 %v3002
      %3013 = vmatprep.subr.mxu0 0.0
      %3014 = vmatpush1.msra.mxu0 0.0
      %3015 = vmatprep.subr.mxu0 0.0
      %3016 = vmatpush1.msra.mxu0 0.0
      %3017 = vmatprep.subr.mxu0 0.0
      %3018 = vmatpush1.msra.mxu0 0.0
      %3019 = vmatprep.subr.mxu0 0.0
      %3020 = vmatpush1.msra.mxu0 0.0
      %3021 = vmatprep.subr.mxu0 0.0
      %3022 = vmatpush1.msra.mxu0 0.0
      %3023 = vmatprep.subr.mxu0 0.0
      %3024 = vmatpush1.msra.mxu0 0.0
      %3025 = vmatprep.subr.mxu0 0.0
      %3026 = vmatpush1.msra.mxu0 0.0
      %3027 = vmatprep.subr.mxu0 0.0
      %3028 = vmatpush1.msra.mxu0 0.0
      %3029 = vmatprep.subr.mxu0 0.0
      %3030 = vmatpush1.msra.mxu0 0.0
      %3031 = vmatprep.subr.mxu0 0.0
      %3032 = vmatpush1.msra.mxu0 0.0
      %3033 = vmatprep.subr.mxu0 0.0
      %3034 = vmatpush1.msra.mxu0 0.0
      %3035 = vmatprep.subr.mxu0 0.0
      %3036 = vmatpush1.msra.mxu0 0.0
      %3037 = vmatprep.subr.mxu0 0.0
      %3038 = vmatpush1.msra.mxu0 0.0
      %3039 = vmatprep.subr.mxu0 0.0
      %3040 = vmatpush1.msra.mxu0 0.0
      %3041 = vmatprep.subr.mxu0 0.0
      %3042 = vmatpush1.msra.mxu0 0.0
      %3043 = vmatprep.subr.mxu0 0.0
      %3044 = vmatpush1.msra.mxu0 0.0
      %3045 = vmatprep.subr.mxu0 0.0
      %3046 = vmatpush1.msra.mxu0 0.0
      %3047 = vmatprep.subr.mxu0 0.0
      %3048 = vmatpush1.msra.mxu0 0.0
      %3049 = vmatprep.subr.mxu0 0.0
      %3050 = vmatpush1.msra.mxu0 0.0
      %3051 = vmatprep.subr.mxu0 0.0
      %3052 = vmatpush1.msra.mxu0 0.0
      %3053 = vmatprep.subr.mxu0 0.0
      %3054 = vmatpush1.msra.mxu0 0.0
      %3055 = vmatprep.subr.mxu0 0.0
      %3056 = vmatpush1.msra.mxu0 0.0
      %3057 = vmatprep.subr.mxu0 0.0
      %3058 = vmatpush1.msra.mxu0 0.0
      %3059 = vmatprep.subr.mxu0 0.0
      %3060 = vmatpush1.msra.mxu0 0.0
      %3061 = vmatprep.subr.mxu0 0.0
      %3062 = vmatpush1.msra.mxu0 0.0
      %3063 = vmatprep.subr.mxu0 0.0
      %3064 = vmatpush1.msra.mxu0 0.0
      %3065 = vmatprep.subr.mxu0 0.0
      %3066 = vmatpush1.msra.mxu0 0.0
      %3067 = vmatprep.subr.mxu0 0.0
      %3068 = vmatpush1.msra.mxu0 0.0
      %3069 = vmatprep.mubr.f32.mxu0 0.0
      %3070 = vmatmul.mubr.f32.gmra.mrb[0].mxu0 %v2800
      %v3071 = vpop.f32.mrb[0].mxu0
      %v3072 = vadd.f32 0.0, %v3071
      %v3073 = vpop.f32.mrb[0].mxu0
      %3074 = vmatprep.mubr.f32.mxu0 0.0
      %3075 = vmatmul.mubr.f32.gmra.mrb[0].mxu0 %v2803
      %v3076 = vpop.f32.mrb[0].mxu0
      %v3077 = vadd.f32 0.0, %v3076
      %v3078 = vpop.f32.mrb[0].mxu0
      %3079 = vmatprep.mubr.f32.mxu0 0.0
      %3080 = vmatmul.mubr.f32.gmra.mrb[0].mxu0 %v2806
      %v3081 = vpop.f32.mrb[0].mxu0
      %v3082 = vadd.f32 0.0, %v3081
      %v3083 = vpop.f32.mrb[0].mxu0
      %3084 = vmatprep.mubr.f32.mxu0 0.0
      %3085 = vmatmul.mubr.f32.gmra.mrb[0].mxu0 %v2809
      %v3086 = vpop.f32.mrb[0].mxu0
      %v3087 = vadd.f32 0.0, %v3086
      %v3088 = vpop.f32.mrb[0].mxu0
      %3089 = vdwg.mxu0
      %v3090 = vmax.f32 %v3072, 0.0
      %v3091 = vmax.f32 %v3077, 0.0
      %v3092 = vmax.f32 %v3082, 0.0
      %v3093 = vmax.f32 %v3087, 0.0
      %v3094 = vld [vmem:[%s11] sm:$0xff]
      %v3095 = vld [vmem:[%s11 + $0x8] sm:$0xff]
      %v3096 = vld [vmem:[%s11 + $0x10] sm:$0xff]
      %v3097 = vld [vmem:[%s11 + $0x18] sm:$0xff]
      %v3099 = vsel %vm614, %v3090, 0
      %v3102 = vsel %vm614, %v3091, 0
      %v3105 = vsel %vm614, %v3092, 0
      %v3108 = vsel %vm614, %v3093, 0
      %3110 = vmatprep.subr.mxu0 0.0
      %3111 = vmatpush1.msra.mxu0 %v3094
      %3112 = vmatprep.subr.mxu0 0.0
      %3113 = vmatpush1.msra.mxu0 %v3095
      %3114 = vmatprep.subr.mxu0 0.0
      %3115 = vmatpush1.msra.mxu0 %v3096
      %3116 = vmatprep.subr.mxu0 0.0
      %3117 = vmatpush1.msra.mxu0 %v3097
      %3118 = vmatprep.subr.mxu0 0.0
      %3119 = vmatpush1.msra.mxu0 0.0
      %3120 = vmatprep.subr.mxu0 0.0
      %3121 = vmatpush1.msra.mxu0 0.0
      %3122 = vmatprep.subr.mxu0 0.0
      %3123 = vmatpush1.msra.mxu0 0.0
      %3124 = vmatprep.subr.mxu0 0.0
      %3125 = vmatpush1.msra.mxu0 0.0
      %3126 = vmatprep.subr.mxu0 0.0
      %3127 = vmatpush1.msra.mxu0 0.0
      %3128 = vmatprep.subr.mxu0 0.0
      %3129 = vmatpush1.msra.mxu0 0.0
      %3130 = vmatprep.subr.mxu0 0.0
      %3131 = vmatpush1.msra.mxu0 0.0
      %3132 = vmatprep.subr.mxu0 0.0
      %3133 = vmatpush1.msra.mxu0 0.0
      %3134 = vmatprep.subr.mxu0 0.0
      %3135 = vmatpush1.msra.mxu0 0.0
      %3136 = vmatprep.subr.mxu0 0.0
      %3137 = vmatpush1.msra.mxu0 0.0
      %3138 = vmatprep.subr.mxu0 0.0
      %3139 = vmatpush1.msra.mxu0 0.0
      %3140 = vmatprep.subr.mxu0 0.0
      %3141 = vmatpush1.msra.mxu0 0.0
      %3142 = vmatprep.subr.mxu0 0.0
      %3143 = vmatpush1.msra.mxu0 0.0
      %3144 = vmatprep.subr.mxu0 0.0
      %3145 = vmatpush1.msra.mxu0 0.0
      %3146 = vmatprep.subr.mxu0 0.0
      %3147 = vmatpush1.msra.mxu0 0.0
      %3148 = vmatprep.subr.mxu0 0.0
      %3149 = vmatpush1.msra.mxu0 0.0
      %3150 = vmatprep.subr.mxu0 0.0
      %3151 = vmatpush1.msra.mxu0 0.0
      %3152 = vmatprep.subr.mxu0 0.0
      %3153 = vmatpush1.msra.mxu0 0.0
      %3154 = vmatprep.subr.mxu0 0.0
      %3155 = vmatpush1.msra.mxu0 0.0
      %3156 = vmatprep.subr.mxu0 0.0
      %3157 = vmatpush1.msra.mxu0 0.0
      %3158 = vmatprep.subr.mxu0 0.0
      %3159 = vmatpush1.msra.mxu0 0.0
      %3160 = vmatprep.subr.mxu0 0.0
      %3161 = vmatpush1.msra.mxu0 0.0
      %3162 = vmatprep.subr.mxu0 0.0
      %3163 = vmatpush1.msra.mxu0 0.0
      %3164 = vmatprep.subr.mxu0 0.0
      %3165 = vmatpush1.msra.mxu0 0.0
      %3166 = vmatprep.subr.mxu0 0.0
      %3167 = vmatpush1.msra.mxu0 0.0
      %3168 = vmatprep.subr.mxu0 0.0
      %3169 = vmatpush1.msra.mxu0 0.0
      %3170 = vmatprep.subr.mxu0 0.0
      %3171 = vmatpush1.msra.mxu0 0.0
      %3172 = vmatprep.subr.mxu0 0.0
      %3173 = vmatpush1.msra.mxu0 0.0
      %3174 = vmatprep.mubr.f32.mxu0 0.0
      %3175 = vmatmul.mubr.f32.gmra.mrb[0].mxu0 %v3099
      %v3176 = vpop.f32.mrb[0].mxu0
      %v3177 = vadd.f32 0.0, %v3176
      %v3178 = vpop.f32.mrb[0].mxu0
      %3179 = vmatprep.mubr.f32.mxu0 0.0
      %3180 = vmatmul.mubr.f32.gmra.mrb[0].mxu0 %v3102
      %v3181 = vpop.f32.mrb[0].mxu0
      %v3182 = vadd.f32 0.0, %v3181
      %v3183 = vpop.f32.mrb[0].mxu0
      %3184 = vmatprep.mubr.f32.mxu0 0.0
      %3185 = vmatmul.mubr.f32.gmra.mrb[0].mxu0 %v3105
      %v3186 = vpop.f32.mrb[0].mxu0
      %v3187 = vadd.f32 0.0, %v3186
      %v3188 = vpop.f32.mrb[0].mxu0
      %3189 = vmatprep.mubr.f32.mxu0 0.0
      %3190 = vmatmul.mubr.f32.gmra.mrb[0].mxu0 %v3108
      %v3191 = vpop.f32.mrb[0].mxu0
      %v3192 = vadd.f32 0.0, %v3191
      %v3193 = vpop.f32.mrb[0].mxu0
      %3194 = vdwg.mxu0
      %3195 = vmatprep.subr.mxu0 0.0
      %3196 = vmatpush1.msra.mxu0 %v3177
      %3197 = vmatprep.subr.mxu0 0.0
      %3198 = vmatpush1.msra.mxu0 %v3182
      %3199 = vmatprep.subr.mxu0 0.0
      %3200 = vmatpush1.msra.mxu0 %v3187
      %3201 = vmatprep.subr.mxu0 0.0
      %3202 = vmatpush1.msra.mxu0 %v3192
      %3203 = vmatprep.subr.mxu0 0.0
      %3204 = vmatpush1.msra.mxu0 0.0
      %3205 = vmatprep.subr.mxu0 0.0
      %3206 = vmatpush1.msra.mxu0 0.0
      %3207 = vmatprep.subr.mxu0 0.0
      %3208 = vmatpush1.msra.mxu0 0.0
      %3209 = vmatprep.subr.mxu0 0.0
      %3210 = vmatpush1.msra.mxu0 0.0
      %3211 = vmatprep.subr.mxu0 0.0
      %3212 = vmatpush1.msra.mxu0 0.0
      %3213 = vmatprep.subr.mxu0 0.0
      %3214 = vmatpush1.msra.mxu0 0.0
      %3215 = vmatprep.subr.mxu0 0.0
      %3216 = vmatpush1.msra.mxu0 0.0
      %3217 = vmatprep.subr.mxu0 0.0
      %3218 = vmatpush1.msra.mxu0 0.0
      %3219 = vmatprep.subr.mxu0 0.0
      %3220 = vmatpush1.msra.mxu0 0.0
      %3221 = vmatprep.subr.mxu0 0.0
      %3222 = vmatpush1.msra.mxu0 0.0
      %3223 = vmatprep.subr.mxu0 0.0
      %3224 = vmatpush1.msra.mxu0 0.0
      %3225 = vmatprep.subr.mxu0 0.0
      %3226 = vmatpush1.msra.mxu0 0.0
      %3227 = vmatprep.subr.mxu0 0.0
      %3228 = vmatpush1.msra.mxu0 0.0
      %3229 = vmatprep.subr.mxu0 0.0
      %3230 = vmatpush1.msra.mxu0 0.0
      %3231 = vmatprep.subr.mxu0 0.0
      %3232 = vmatpush1.msra.mxu0 0.0
      %3233 = vmatprep.subr.mxu0 0.0
      %3234 = vmatpush1.msra.mxu0 0.0
      %3235 = vmatprep.subr.mxu0 0.0
      %3236 = vmatpush1.msra.mxu0 0.0
      %3237 = vmatprep.subr.mxu0 0.0
      %3238 = vmatpush1.msra.mxu0 0.0
      %3239 = vmatprep.subr.mxu0 0.0
      %3240 = vmatpush1.msra.mxu0 0.0
      %3241 = vmatprep.subr.mxu0 0.0
      %3242 = vmatpush1.msra.mxu0 0.0
      %3243 = vmatprep.subr.mxu0 0.0
      %3244 = vmatpush1.msra.mxu0 0.0
      %3245 = vmatprep.subr.mxu0 0.0
      %3246 = vmatpush1.msra.mxu0 0.0
      %3247 = vmatprep.subr.mxu0 0.0
      %3248 = vmatpush1.msra.mxu0 0.0
      %3249 = vmatprep.subr.mxu0 0.0
      %3250 = vmatpush1.msra.mxu0 0.0
      %3251 = vmatprep.subr.mxu0 0.0
      %3252 = vmatpush1.msra.mxu0 0.0
      %3253 = vmatprep.subr.mxu0 0.0
      %3254 = vmatpush1.msra.mxu0 0.0
      %3255 = vmatprep.subr.mxu0 0.0
      %3256 = vmatpush1.msra.mxu0 0.0
      %3257 = vmatprep.subr.mxu0 0.0
      %3258 = vmatpush1.msra.mxu0 0.0
      %3259 = vmatprep.mubr.f32.mxu0 0.0
      %3260 = vmatmul.mubr.f32.gmra.mrb[0].mxu0 %v2800
      %v3261 = vpop.f32.mrb[0].mxu0
      %v3262 = vadd.f32 0.0, %v3261
      %v3263 = vpop.f32.mrb[0].mxu0
      %3264 = vmatprep.mubr.f32.mxu0 0.0
      %3265 = vmatmul.mubr.f32.gmra.mrb[0].mxu0 %v2803
      %v3266 = vpop.f32.mrb[0].mxu0
      %v3267 = vadd.f32 0.0, %v3266
      %v3268 = vpop.f32.mrb[0].mxu0
      %3269 = vmatprep.mubr.f32.mxu0 0.0
      %3270 = vmatmul.mubr.f32.gmra.mrb[0].mxu0 %v2806
      %v3271 = vpop.f32.mrb[0].mxu0
      %v3272 = vadd.f32 0.0, %v3271
      %v3273 = vpop.f32.mrb[0].mxu0
      %3274 = vmatprep.mubr.f32.mxu0 0.0
      %3275 = vmatmul.mubr.f32.gmra.mrb[0].mxu0 %v2809
      %v3276 = vpop.f32.mrb[0].mxu0
      %v3277 = vadd.f32 0.0, %v3276
      %v3278 = vpop.f32.mrb[0].mxu0
      %3279 = vdwg.mxu0
      %v3280 = vmax.f32 %v3262, 0.0
      %v3281 = vmax.f32 %v3267, 0.0
      %v3282 = vmax.f32 %v3272, 0.0
      %v3283 = vmax.f32 %v3277, 0.0
      %v3284 = vadd.f32 %v3280, %v2900
      %v3285 = vadd.f32 %v3281, %v2901
      %v3286 = vadd.f32 %v3282, %v2902
      %v3287 = vadd.f32 %v3283, %v2903
      %s3288 = scalar_lea.vmem %s10, 32
      %v3289 = vld [vmem:[%s3288] sm:$0xff]
      %v3290 = vld [vmem:[%s3288 + $0x8] sm:$0xff]
      %v3291 = vld [vmem:[%s3288 + $0x10] sm:$0xff]
      %v3292 = vld [vmem:[%s3288 + $0x18] sm:$0xff]
      %v3294 = vsel %vm614, %v3284, 0
      %v3297 = vsel %vm614, %v3285, 0
      %v3300 = vsel %vm614, %v3286, 0
      %v3303 = vsel %vm614, %v3287, 0
      %3305 = vmatprep.subr.mxu0 0.0
      %3306 = vmatpush1.msra.mxu0 %v3289
      %3307 = vmatprep.subr.mxu0 0.0
      %3308 = vmatpush1.msra.mxu0 %v3290
      %3309 = vmatprep.subr.mxu0 0.0
      %3310 = vmatpush1.msra.mxu0 %v3291
      %3311 = vmatprep.subr.mxu0 0.0
      %3312 = vmatpush1.msra.mxu0 %v3292
      %3313 = vmatprep.subr.mxu0 0.0
      %3314 = vmatpush1.msra.mxu0 0.0
      %3315 = vmatprep.subr.mxu0 0.0
      %3316 = vmatpush1.msra.mxu0 0.0
      %3317 = vmatprep.subr.mxu0 0.0
      %3318 = vmatpush1.msra.mxu0 0.0
      %3319 = vmatprep.subr.mxu0 0.0
      %3320 = vmatpush1.msra.mxu0 0.0
      %3321 = vmatprep.subr.mxu0 0.0
      %3322 = vmatpush1.msra.mxu0 0.0
      %3323 = vmatprep.subr.mxu0 0.0
      %3324 = vmatpush1.msra.mxu0 0.0
      %3325 = vmatprep.subr.mxu0 0.0
      %3326 = vmatpush1.msra.mxu0 0.0
      %3327 = vmatprep.subr.mxu0 0.0
      %3328 = vmatpush1.msra.mxu0 0.0
      %3329 = vmatprep.subr.mxu0 0.0
      %3330 = vmatpush1.msra.mxu0 0.0
      %3331 = vmatprep.subr.mxu0 0.0
      %3332 = vmatpush1.msra.mxu0 0.0
      %3333 = vmatprep.subr.mxu0 0.0
      %3334 = vmatpush1.msra.mxu0 0.0
      %3335 = vmatprep.subr.mxu0 0.0
      %3336 = vmatpush1.msra.mxu0 0.0
      %3337 = vmatprep.subr.mxu0 0.0
      %3338 = vmatpush1.msra.mxu0 0.0
      %3339 = vmatprep.subr.mxu0 0.0
      %3340 = vmatpush1.msra.mxu0 0.0
      %3341 = vmatprep.subr.mxu0 0.0
      %3342 = vmatpush1.msra.mxu0 0.0
      %3343 = vmatprep.subr.mxu0 0.0
      %3344 = vmatpush1.msra.mxu0 0.0
      %3345 = vmatprep.subr.mxu0 0.0
      %3346 = vmatpush1.msra.mxu0 0.0
      %3347 = vmatprep.subr.mxu0 0.0
      %3348 = vmatpush1.msra.mxu0 0.0
      %3349 = vmatprep.subr.mxu0 0.0
      %3350 = vmatpush1.msra.mxu0 0.0
      %3351 = vmatprep.subr.mxu0 0.0
      %3352 = vmatpush1.msra.mxu0 0.0
      %3353 = vmatprep.subr.mxu0 0.0
      %3354 = vmatpush1.msra.mxu0 0.0
      %3355 = vmatprep.subr.mxu0 0.0
      %3356 = vmatpush1.msra.mxu0 0.0
      %3357 = vmatprep.subr.mxu0 0.0
      %3358 = vmatpush1.msra.mxu0 0.0
      %3359 = vmatprep.subr.mxu0 0.0
      %3360 = vmatpush1.msra.mxu0 0.0
      %3361 = vmatprep.subr.mxu0 0.0
      %3362 = vmatpush1.msra.mxu0 0.0
      %3363 = vmatprep.subr.mxu0 0.0
      %3364 = vmatpush1.msra.mxu0 0.0
      %3365 = vmatprep.subr.mxu0 0.0
      %3366 = vmatpush1.msra.mxu0 0.0
      %3367 = vmatprep.subr.mxu0 0.0
      %3368 = vmatpush1.msra.mxu0 0.0
      %3369 = vmatprep.mubr.f32.mxu0 0.0
      %3370 = vmatmul.mubr.f32.gmra.mrb[0].mxu0 %v3294
      %v3371 = vpop.f32.mrb[0].mxu0
      %v3372 = vadd.f32 0.0, %v3371
      %v3373 = vpop.f32.mrb[0].mxu0
      %3374 = vmatprep.mubr.f32.mxu0 0.0
      %3375 = vmatmul.mubr.f32.gmra.mrb[0].mxu0 %v3297
      %v3376 = vpop.f32.mrb[0].mxu0
      %v3377 = vadd.f32 0.0, %v3376
      %v3378 = vpop.f32.mrb[0].mxu0
      %3379 = vmatprep.mubr.f32.mxu0 0.0
      %3380 = vmatmul.mubr.f32.gmra.mrb[0].mxu0 %v3300
      %v3381 = vpop.f32.mrb[0].mxu0
      %v3382 = vadd.f32 0.0, %v3381
      %v3383 = vpop.f32.mrb[0].mxu0
      %3384 = vmatprep.mubr.f32.mxu0 0.0
      %3385 = vmatmul.mubr.f32.gmra.mrb[0].mxu0 %v3303
      %v3386 = vpop.f32.mrb[0].mxu0
      %v3387 = vadd.f32 0.0, %v3386
      %v3388 = vpop.f32.mrb[0].mxu0
      %3389 = vdwg.mxu0
      %3390 = vmatprep.subr.mxu0 0.0
      %3391 = vmatpush1.msra.mxu0 %v3372
      %3392 = vmatprep.subr.mxu0 0.0
      %3393 = vmatpush1.msra.mxu0 %v3377
      %3394 = vmatprep.subr.mxu0 0.0
      %3395 = vmatpush1.msra.mxu0 %v3382
      %3396 = vmatprep.subr.mxu0 0.0
      %3397 = vmatpush1.msra.mxu0 %v3387
      %3398 = vmatprep.subr.mxu0 0.0
      %3399 = vmatpush1.msra.mxu0 0.0
      %3400 = vmatprep.subr.mxu0 0.0
      %3401 = vmatpush1.msra.mxu0 0.0
      %3402 = vmatprep.subr.mxu0 0.0
      %3403 = vmatpush1.msra.mxu0 0.0
      %3404 = vmatprep.subr.mxu0 0.0
      %3405 = vmatpush1.msra.mxu0 0.0
      %3406 = vmatprep.subr.mxu0 0.0
      %3407 = vmatpush1.msra.mxu0 0.0
      %3408 = vmatprep.subr.mxu0 0.0
      %3409 = vmatpush1.msra.mxu0 0.0
      %3410 = vmatprep.subr.mxu0 0.0
      %3411 = vmatpush1.msra.mxu0 0.0
      %3412 = vmatprep.subr.mxu0 0.0
      %3413 = vmatpush1.msra.mxu0 0.0
      %3414 = vmatprep.subr.mxu0 0.0
      %3415 = vmatpush1.msra.mxu0 0.0
      %3416 = vmatprep.subr.mxu0 0.0
      %3417 = vmatpush1.msra.mxu0 0.0
      %3418 = vmatprep.subr.mxu0 0.0
      %3419 = vmatpush1.msra.mxu0 0.0
      %3420 = vmatprep.subr.mxu0 0.0
      %3421 = vmatpush1.msra.mxu0 0.0
      %3422 = vmatprep.subr.mxu0 0.0
      %3423 = vmatpush1.msra.mxu0 0.0
      %3424 = vmatprep.subr.mxu0 0.0
      %3425 = vmatpush1.msra.mxu0 0.0
      %3426 = vmatprep.subr.mxu0 0.0
      %3427 = vmatpush1.msra.mxu0 0.0
      %3428 = vmatprep.subr.mxu0 0.0
      %3429 = vmatpush1.msra.mxu0 0.0
      %3430 = vmatprep.subr.mxu0 0.0
      %3431 = vmatpush1.msra.mxu0 0.0
      %3432 = vmatprep.subr.mxu0 0.0
      %3433 = vmatpush1.msra.mxu0 0.0
      %3434 = vmatprep.subr.mxu0 0.0
      %3435 = vmatpush1.msra.mxu0 0.0
      %3436 = vmatprep.subr.mxu0 0.0
      %3437 = vmatpush1.msra.mxu0 0.0
      %3438 = vmatprep.subr.mxu0 0.0
      %3439 = vmatpush1.msra.mxu0 0.0
      %3440 = vmatprep.subr.mxu0 0.0
      %3441 = vmatpush1.msra.mxu0 0.0
      %3442 = vmatprep.subr.mxu0 0.0
      %3443 = vmatpush1.msra.mxu0 0.0
      %3444 = vmatprep.subr.mxu0 0.0
      %3445 = vmatpush1.msra.mxu0 0.0
      %3446 = vmatprep.subr.mxu0 0.0
      %3447 = vmatpush1.msra.mxu0 0.0
      %3448 = vmatprep.subr.mxu0 0.0
      %3449 = vmatpush1.msra.mxu0 0.0
      %3450 = vmatprep.subr.mxu0 0.0
      %3451 = vmatpush1.msra.mxu0 0.0
      %3452 = vmatprep.subr.mxu0 0.0
      %3453 = vmatpush1.msra.mxu0 0.0
      %3454 = vmatprep.mubr.f32.mxu0 0.0
      %3455 = vmatmul.mubr.f32.gmra.mrb[0].mxu0 %v2800
      %v3456 = vpop.f32.mrb[0].mxu0
      %v3457 = vadd.f32 0.0, %v3456
      %v3458 = vpop.f32.mrb[0].mxu0
      %3459 = vmatprep.mubr.f32.mxu0 0.0
      %3460 = vmatmul.mubr.f32.gmra.mrb[0].mxu0 %v2803
      %v3461 = vpop.f32.mrb[0].mxu0
      %v3462 = vadd.f32 0.0, %v3461
      %v3463 = vpop.f32.mrb[0].mxu0
      %3464 = vmatprep.mubr.f32.mxu0 0.0
      %3465 = vmatmul.mubr.f32.gmra.mrb[0].mxu0 %v2806
      %v3466 = vpop.f32.mrb[0].mxu0
      %v3467 = vadd.f32 0.0, %v3466
      %v3468 = vpop.f32.mrb[0].mxu0
      %3469 = vmatprep.mubr.f32.mxu0 0.0
      %3470 = vmatmul.mubr.f32.gmra.mrb[0].mxu0 %v2809
      %v3471 = vpop.f32.mrb[0].mxu0
      %v3472 = vadd.f32 0.0, %v3471
      %v3473 = vpop.f32.mrb[0].mxu0
      %3474 = vdwg.mxu0
      %v3475 = vmax.f32 %v3457, 0.0
      %v3476 = vmax.f32 %v3462, 0.0
      %v3477 = vmax.f32 %v3467, 0.0
      %v3478 = vmax.f32 %v3472, 0.0
      %s3479 = scalar_lea.vmem %s11, 32
      %v3480 = vld [vmem:[%s3479] sm:$0xff]
      %v3481 = vld [vmem:[%s3479 + $0x8] sm:$0xff]
      %v3482 = vld [vmem:[%s3479 + $0x10] sm:$0xff]
      %v3483 = vld [vmem:[%s3479 + $0x18] sm:$0xff]
      %v3485 = vsel %vm614, %v3475, 0
      %v3488 = vsel %vm614, %v3476, 0
      %v3491 = vsel %vm614, %v3477, 0
      %v3494 = vsel %vm614, %v3478, 0
      %3496 = vmatprep.subr.mxu0 0.0
      %3497 = vmatpush1.msra.mxu0 %v3480
      %3498 = vmatprep.subr.mxu0 0.0
      %3499 = vmatpush1.msra.mxu0 %v3481
      %3500 = vmatprep.subr.mxu0 0.0
      %3501 = vmatpush1.msra.mxu0 %v3482
      %3502 = vmatprep.subr.mxu0 0.0
      %3503 = vmatpush1.msra.mxu0 %v3483
      %3504 = vmatprep.subr.mxu0 0.0
      %3505 = vmatpush1.msra.mxu0 0.0
      %3506 = vmatprep.subr.mxu0 0.0
      %3507 = vmatpush1.msra.mxu0 0.0
      %3508 = vmatprep.subr.mxu0 0.0
      %3509 = vmatpush1.msra.mxu0 0.0
      %3510 = vmatprep.subr.mxu0 0.0
      %3511 = vmatpush1.msra.mxu0 0.0
      %3512 = vmatprep.subr.mxu0 0.0
      %3513 = vmatpush1.msra.mxu0 0.0
      %3514 = vmatprep.subr.mxu0 0.0
      %3515 = vmatpush1.msra.mxu0 0.0
      %3516 = vmatprep.subr.mxu0 0.0
      %3517 = vmatpush1.msra.mxu0 0.0
      %3518 = vmatprep.subr.mxu0 0.0
      %3519 = vmatpush1.msra.mxu0 0.0
      %3520 = vmatprep.subr.mxu0 0.0
      %3521 = vmatpush1.msra.mxu0 0.0
      %3522 = vmatprep.subr.mxu0 0.0
      %3523 = vmatpush1.msra.mxu0 0.0
      %3524 = vmatprep.subr.mxu0 0.0
      %3525 = vmatpush1.msra.mxu0 0.0
      %3526 = vmatprep.subr.mxu0 0.0
      %3527 = vmatpush1.msra.mxu0 0.0
      %3528 = vmatprep.subr.mxu0 0.0
      %3529 = vmatpush1.msra.mxu0 0.0
      %3530 = vmatprep.subr.mxu0 0.0
      %3531 = vmatpush1.msra.mxu0 0.0
      %3532 = vmatprep.subr.mxu0 0.0
      %3533 = vmatpush1.msra.mxu0 0.0
      %3534 = vmatprep.subr.mxu0 0.0
      %3535 = vmatpush1.msra.mxu0 0.0
      %3536 = vmatprep.subr.mxu0 0.0
      %3537 = vmatpush1.msra.mxu0 0.0
      %3538 = vmatprep.subr.mxu0 0.0
      %3539 = vmatpush1.msra.mxu0 0.0
      %3540 = vmatprep.subr.mxu0 0.0
      %3541 = vmatpush1.msra.mxu0 0.0
      %3542 = vmatprep.subr.mxu0 0.0
      %3543 = vmatpush1.msra.mxu0 0.0
      %3544 = vmatprep.subr.mxu0 0.0
      %3545 = vmatpush1.msra.mxu0 0.0
      %3546 = vmatprep.subr.mxu0 0.0
      %3547 = vmatpush1.msra.mxu0 0.0
      %3548 = vmatprep.subr.mxu0 0.0
      %3549 = vmatpush1.msra.mxu0 0.0
      %3550 = vmatprep.subr.mxu0 0.0
      %3551 = vmatpush1.msra.mxu0 0.0
      %3552 = vmatprep.subr.mxu0 0.0
      %3553 = vmatpush1.msra.mxu0 0.0
      %3554 = vmatprep.subr.mxu0 0.0
      %3555 = vmatpush1.msra.mxu0 0.0
      %3556 = vmatprep.subr.mxu0 0.0
      %3557 = vmatpush1.msra.mxu0 0.0
      %3558 = vmatprep.subr.mxu0 0.0
      %3559 = vmatpush1.msra.mxu0 0.0
      %3560 = vmatprep.mubr.f32.mxu0 0.0
      %3561 = vmatmul.mubr.f32.gmra.mrb[0].mxu0 %v3485
      %v3562 = vpop.f32.mrb[0].mxu0
      %v3563 = vadd.f32 0.0, %v3562
      %v3564 = vpop.f32.mrb[0].mxu0
      %3565 = vmatprep.mubr.f32.mxu0 0.0
      %3566 = vmatmul.mubr.f32.gmra.mrb[0].mxu0 %v3488
      %v3567 = vpop.f32.mrb[0].mxu0
      %v3568 = vadd.f32 0.0, %v3567
      %v3569 = vpop.f32.mrb[0].mxu0
      %3570 = vmatprep.mubr.f32.mxu0 0.0
      %3571 = vmatmul.mubr.f32.gmra.mrb[0].mxu0 %v3491
      %v3572 = vpop.f32.mrb[0].mxu0
      %v3573 = vadd.f32 0.0, %v3572
      %v3574 = vpop.f32.mrb[0].mxu0
      %3575 = vmatprep.mubr.f32.mxu0 0.0
      %3576 = vmatmul.mubr.f32.gmra.mrb[0].mxu0 %v3494
      %v3577 = vpop.f32.mrb[0].mxu0
      %v3578 = vadd.f32 0.0, %v3577
      %v3579 = vpop.f32.mrb[0].mxu0
      %3580 = vdwg.mxu0
      %3581 = vmatprep.subr.mxu0 0.0
      %3582 = vmatpush1.msra.mxu0 %v3563
      %3583 = vmatprep.subr.mxu0 0.0
      %3584 = vmatpush1.msra.mxu0 %v3568
      %3585 = vmatprep.subr.mxu0 0.0
      %3586 = vmatpush1.msra.mxu0 %v3573
      %3587 = vmatprep.subr.mxu0 0.0
      %3588 = vmatpush1.msra.mxu0 %v3578
      %3589 = vmatprep.subr.mxu0 0.0
      %3590 = vmatpush1.msra.mxu0 0.0
      %3591 = vmatprep.subr.mxu0 0.0
      %3592 = vmatpush1.msra.mxu0 0.0
      %3593 = vmatprep.subr.mxu0 0.0
      %3594 = vmatpush1.msra.mxu0 0.0
      %3595 = vmatprep.subr.mxu0 0.0
      %3596 = vmatpush1.msra.mxu0 0.0
      %3597 = vmatprep.subr.mxu0 0.0
      %3598 = vmatpush1.msra.mxu0 0.0
      %3599 = vmatprep.subr.mxu0 0.0
      %3600 = vmatpush1.msra.mxu0 0.0
      %3601 = vmatprep.subr.mxu0 0.0
      %3602 = vmatpush1.msra.mxu0 0.0
      %3603 = vmatprep.subr.mxu0 0.0
      %3604 = vmatpush1.msra.mxu0 0.0
      %3605 = vmatprep.subr.mxu0 0.0
      %3606 = vmatpush1.msra.mxu0 0.0
      %3607 = vmatprep.subr.mxu0 0.0
      %3608 = vmatpush1.msra.mxu0 0.0
      %3609 = vmatprep.subr.mxu0 0.0
      %3610 = vmatpush1.msra.mxu0 0.0
      %3611 = vmatprep.subr.mxu0 0.0
      %3612 = vmatpush1.msra.mxu0 0.0
      %3613 = vmatprep.subr.mxu0 0.0
      %3614 = vmatpush1.msra.mxu0 0.0
      %3615 = vmatprep.subr.mxu0 0.0
      %3616 = vmatpush1.msra.mxu0 0.0
      %3617 = vmatprep.subr.mxu0 0.0
      %3618 = vmatpush1.msra.mxu0 0.0
      %3619 = vmatprep.subr.mxu0 0.0
      %3620 = vmatpush1.msra.mxu0 0.0
      %3621 = vmatprep.subr.mxu0 0.0
      %3622 = vmatpush1.msra.mxu0 0.0
      %3623 = vmatprep.subr.mxu0 0.0
      %3624 = vmatpush1.msra.mxu0 0.0
      %3625 = vmatprep.subr.mxu0 0.0
      %3626 = vmatpush1.msra.mxu0 0.0
      %3627 = vmatprep.subr.mxu0 0.0
      %3628 = vmatpush1.msra.mxu0 0.0
      %3629 = vmatprep.subr.mxu0 0.0
      %3630 = vmatpush1.msra.mxu0 0.0
      %3631 = vmatprep.subr.mxu0 0.0
      %3632 = vmatpush1.msra.mxu0 0.0
      %3633 = vmatprep.subr.mxu0 0.0
      %3634 = vmatpush1.msra.mxu0 0.0
      %3635 = vmatprep.subr.mxu0 0.0
      %3636 = vmatpush1.msra.mxu0 0.0
      %3637 = vmatprep.subr.mxu0 0.0
      %3638 = vmatpush1.msra.mxu0 0.0
      %3639 = vmatprep.subr.mxu0 0.0
      %3640 = vmatpush1.msra.mxu0 0.0
      %3641 = vmatprep.subr.mxu0 0.0
      %3642 = vmatpush1.msra.mxu0 0.0
      %3643 = vmatprep.subr.mxu0 0.0
      %3644 = vmatpush1.msra.mxu0 0.0
      %3645 = vmatprep.mubr.f32.mxu0 0.0
      %3646 = vmatmul.mubr.f32.gmra.mrb[0].mxu0 %v2800
      %v3647 = vpop.f32.mrb[0].mxu0
      %v3648 = vadd.f32 0.0, %v3647
      %v3649 = vpop.f32.mrb[0].mxu0
      %3650 = vmatprep.mubr.f32.mxu0 0.0
      %3651 = vmatmul.mubr.f32.gmra.mrb[0].mxu0 %v2803
      %v3652 = vpop.f32.mrb[0].mxu0
      %v3653 = vadd.f32 0.0, %v3652
      %v3654 = vpop.f32.mrb[0].mxu0
      %3655 = vmatprep.mubr.f32.mxu0 0.0
      %3656 = vmatmul.mubr.f32.gmra.mrb[0].mxu0 %v2806
      %v3657 = vpop.f32.mrb[0].mxu0
      %v3658 = vadd.f32 0.0, %v3657
      %v3659 = vpop.f32.mrb[0].mxu0
      %3660 = vmatprep.mubr.f32.mxu0 0.0
      %3661 = vmatmul.mubr.f32.gmra.mrb[0].mxu0 %v2809
      %v3662 = vpop.f32.mrb[0].mxu0
      %v3663 = vadd.f32 0.0, %v3662
      %v3664 = vpop.f32.mrb[0].mxu0
      %3665 = vdwg.mxu0
      %v3666 = vmax.f32 %v3648, 0.0
      %v3667 = vmax.f32 %v3653, 0.0
      %v3668 = vmax.f32 %v3658, 0.0
      %v3669 = vmax.f32 %v3663, 0.0
      %v3670 = vadd.f32 %v3666, %v3284
      %v3671 = vadd.f32 %v3667, %v3285
      %v3672 = vadd.f32 %v3668, %v3286
      %v3673 = vadd.f32 %v3669, %v3287
      %3674 = vxpose.xlu0.b32.start [1/16] %v3670, 128
      %3675 = vxpose.xlu0.b32.cont [2/16] %v3671, 128
      %3676 = vxpose.xlu0.b32.cont [3/16] %v3672, 128
      %3677 = vxpose.xlu0.b32.cont [4/16] %v3673, 128
      %3678 = vxpose.xlu0.b32.cont [5/16] 0.0, 128
      %3679 = vxpose.xlu0.b32.cont [6/16] 0.0, 128
      %3680 = vxpose.xlu0.b32.cont [7/16] 0.0, 128
      %3681 = vxpose.xlu0.b32.cont [8/16] 0.0, 128
      %3682 = vxpose.xlu0.b32.cont [9/16] 0.0, 128
      %3683 = vxpose.xlu0.b32.cont [10/16] 0.0, 128
      %3684 = vxpose.xlu0.b32.cont [11/16] 0.0, 128
      %3685 = vxpose.xlu0.b32.cont [12/16] 0.0, 128
      %3686 = vxpose.xlu0.b32.cont [13/16] 0.0, 128
      %3687 = vxpose.xlu0.b32.cont [14/16] 0.0, 128
      %3688 = vxpose.xlu0.b32.cont [15/16] 0.0, 128
      %3689 = vxpose.xlu0.b32.end [16/16] 0.0, 128
      %v3690 = vpop.trf.xlu0
      %v3691 = vpop.trf.xlu0
      %v3692 = vpop.trf.xlu0
      %v3693 = vpop.trf.xlu0
      %v3694 = vpop.trf.xlu0
      %v3695 = vpop.trf.xlu0
      %v3696 = vpop.trf.xlu0
      %v3697 = vpop.trf.xlu0
      %v3698 = vpop.trf.xlu0
      %v3699 = vpop.trf.xlu0
      %v3700 = vpop.trf.xlu0
      %v3701 = vpop.trf.xlu0
      %v3702 = vpop.trf.xlu0
      %v3703 = vpop.trf.xlu0
      %v3704 = vpop.trf.xlu0
      %v3705 = vpop.trf.xlu0
      %v3706 = vadd.f32 %v3670, %v3690
      %v3707 = vadd.f32 %v3671, %v3691
      %v3708 = vadd.f32 %v3672, %v3692
      %v3709 = vadd.f32 %v3673, %v3693
      %v3710 = vmul.f32 %v3706, 0.5
      %v3711 = vmul.f32 %v3707, 0.5
      %v3712 = vmul.f32 %v3708, 0.5
      %v3713 = vmul.f32 %v3709, 0.5
      %v3714 = vsel %vm2791, 1.0, %v3710
      %v3715 = vsel %vm2792, 1.0, %v3711
      %v3716 = vsel %vm2793, 1.0, %v3712
      %v3717 = vsel %vm2794, 1.0, %v3713
      %v3718 = vand.u32 2147483647, %v3714
      %v3719 = vand.u32 2147483647, %v3715
      %v3720 = vand.u32 2147483647, %v3716
      %v3721 = vand.u32 2147483647, %v3717
      %3722 = vrot.lane.b32.xlu0 %v2795, 32
      %v3723 = vpop.permute.xlu0 %3722
      %3724 = vrot.lane.b32.xlu0 %v2796, 32
      %v3725 = vpop.permute.xlu0 %3724
      %3726 = vrot.lane.b32.xlu0 %v2797, 32
      %v3727 = vpop.permute.xlu0 %3726
      %3728 = vrot.lane.b32.xlu0 %v2798, 32
      %v3729 = vpop.permute.xlu0 %3728
      %3737 = vrot.lane.b32.xlu0 %v2563, 64
      %v3738 = vpop.permute.xlu0 %3737
      %3739 = vrot.lane.b32.xlu0 %v2564, 64
      %v3740 = vpop.permute.xlu0 %3739
      %3741 = vrot.lane.b32.xlu0 0.0, 64
      %v3742 = vpop.permute.xlu0 %3741
      %3748 = vrot.lane.b32.xlu0 %v519, 96
      %v3749 = vpop.permute.xlu0 %3748
      %3750 = vrot.lane.b32.xlu0 %v524, 96
      %v3751 = vpop.permute.xlu0 %3750
      %3752 = vrot.lane.b32.xlu0 0.0, 96
      %v3753 = vpop.permute.xlu0 %3752
      %v3757 = vsel %vm614, %v3718, %v3723
      %v3758 = vsel %vm614, %v3719, %v3725
      %v3759 = vsel %vm614, %v3720, %v3727
      %v3760 = vsel %vm614, %v3721, %v3729
      %vm3761 = vcmask 523264
      %v3762 = vsel %vm3761, %v3757, %v3738
      %v3763 = vsel %vm3761, %v3758, %v3740
      %v3764 = vsel %vm3761, %v3759, %v3742
      %v3765 = vsel %vm3761, %v3760, %v3742
      %vm3766 = vcmask 785408
      %v3767 = vsel %vm3766, %v3762, %v3749
      %v3768 = vsel %vm3766, %v3763, %v3751
      %v3769 = vsel %vm3766, %v3764, %v3753
      %v3770 = vsel %vm3766, %v3765, %v3753
      %3771 = vst [vmem:[%s433] sm:$0xff] %v3767
      %3772 = vst [vmem:[%s433 + $0x8] sm:$0xff] %v3768
      %3773 = vst [vmem:[%s433 + $0x10] sm:$0xff] %v3769
      %3774 = vst [vmem:[%s433 + $0x18] sm:$0xff] %v3770
      %p3775 = scmp.lt.s32.totalorder %s23, 1
      %s3776 = scalar_select %p3775, %s23, 1
      %s3777 = smul.addr %s3776, 4
      %s3778 = smul.addr %s3777, 8
      %s3779 = scalar_lea.vmem %s12, %s3778
      // Predicated region
      $region69: #{_lambda_.1} parent=67 // pred_check
        %p3780 = pneg %p303
      $region70: #{_lambda_.1} parent=67 // pred_check_branch
        %3782 = sbr.rel (%p3780) target = $region72
      $region71: #{_lambda_.1} parent=67 // pred_region
        _
      $region72: #{_lambda_.1} parent=67 // pred_fallthru
        _
    $region68: #{_lambda_.1} parent=5 // pred_fallthru
      _
    %p3783 = scmp.le.s32.totalorder 2, %s18
    // Predicated region
    $region73: #{_lambda_.1} parent=5 // pred_check
      %p3784 = pneg %p3783
    $region74: #{_lambda_.1} parent=5 // pred_check_branch
      %3786 = sbr.rel (%p3784) target = $region76
    $region75: #{_lambda_.1} parent=5 // pred_region
      %s3787 = ssub.s32 %s18, 2
      // Predicated region
      $region77: #{_lambda_.1} parent=75 // pred_check
        %p3788 = pneg %p309
      $region78: #{_lambda_.1} parent=75 // pred_check_branch
        %3790 = sbr.rel (%p3788) target = $region80
      $region79: #{_lambda_.1} parent=75 // pred_region
        %p3791 = scmp.lt.s32.totalorder %s24, 1
        %s3792 = scalar_select %p3791, %s24, 1
        %s3793 = smul.addr %s3792, 4
        %s3794 = smul.addr %s3793, 8
        %s3795 = scalar_lea.vmem %s12, %s3794
      $region80: #{_lambda_.1} parent=75 // pred_fallthru
        _
    $region76: #{_lambda_.1} parent=5 // pred_fallthru
      _
  $region6: #{_lambda_.1} parent=0 // loop_footer
    %s22 = sadd.s32 1, %s18
  $region7: #{_lambda_.1} parent=0 // loop_footer_branch
    %17 = sbr.rel target = $region3
  $region8: #{_lambda_.1} parent=0 // loop_exit
    _

</llo_original>
